<compile_context>
chip_gen: v7x
topology: tpu7x:2x2x1
jax: 0.10.0
libtpu: 0.0.40
codegen_flags: <defaults>
</compile_context>

<pallas_src>
import functools

import numpy as np
import jax
import jax.numpy as jnp
from jax import lax
from jax.experimental import pallas as pl
from jax.experimental.pallas import tpu as pltpu


# ----------------------------------------------------------------------------
# Pallas kernel: one batch TILE (bt elements) per grid step, channel-last.
# ----------------------------------------------------------------------------
def gcnext_kernel(x_ref, wbig_ref, wg_ref, w3_ref, wgs_ref, ws3_ref, bias_ref,
                  o_ref, *, n_pts, k, cdt):
    f32 = jnp.float32
    xb = x_ref[...]                                   # (bt, N, C) f32
    bt, n, c = xb.shape
    m = bt * n
    x = xb.reshape(m, c)                              # flattened for 1x1 convs
    width = wg_ref.shape[-1]

    # Packed biases: one (8, max(width, C)) f32 tile.
    b1  = bias_ref[0:1, :width]
    bg  = bias_ref[1:2, :width]
    b3  = bias_ref[2:3, :c]
    bs1 = bias_ref[3:4, :width]
    bs2 = bias_ref[4:5, :width]
    bs3 = bias_ref[5:6, :c]

    # ---- single fused matmul for the three projections that share LHS x ----
    big = jnp.dot(x.astype(cdt), wbig_ref[...], preferred_element_type=f32)  # (M, 3w)
    h1  = jnp.maximum(big[:, :width] + b1, 0.0)        # tconv1 + ReLU
    s1x = big[:, width:2 * width] + bs1                # x-half of sconv1 (+ bias)
    xw  = big[:, 2 * width:3 * width]                  # neighbor-half, pre-gather

    # ---- temporal branch: +-1 shifts via XLU roll + batch-boundary masks ----
    rid = lax.broadcasted_iota(jnp.int32, (m, 1), 0)
    h_prev = jnp.where((rid % n_pts) == 0, 0.0,
                       pltpu.roll(h1, shift=1, axis=0))
    h_next = jnp.where((rid % n_pts) == (n_pts - 1), 0.0,
                       pltpu.roll(h1, shift=m - 1, axis=0))
    h2 = (jnp.dot(h_prev.astype(cdt), wg_ref[0], preferred_element_type=f32)
          + jnp.dot(h1.astype(cdt), wg_ref[1], preferred_element_type=f32)
          + jnp.dot(h_next.astype(cdt), wg_ref[2], preferred_element_type=f32))
    h2 = jnp.maximum(h2 + bg, 0.0)
    tout = jnp.dot(h2.astype(cdt), w3_ref[...], preferred_element_type=f32) + b3   # (M, C)

    # ---- graph branch: kNN selection stays f32 so ordering matches top_k ----
    gram = jnp.einsum('bmc,bnc->bmn', xb, xb, preferred_element_type=f32)   # (bt,N,N)
    row = lax.broadcasted_iota(jnp.int32, (bt, n, n), 1)
    col = lax.broadcasted_iota(jnp.int32, (bt, n, n), 2)
    # ||x_n||^2 from gram's diagonal (no extra reduce/transpose/ones-matmul).
    col_sq = jnp.sum(jnp.where(row == col, gram, 0.0), axis=1, keepdims=True)  # (bt,1,N)
    # The true distance is score - ||x_m||^2 (a per-row constant): identical
    # argmax and tie structure, so selection matches lax.top_k on the full pd.
    score = 2.0 * gram - col_sq
    neg_inf = jnp.float32(jnp.finfo(jnp.float32).min)

    xw_b = xw.reshape(bt, n, width).astype(cdt)        # projected neighbors, per batch
    wgs = wgs_ref[...]
    ws3 = ws3_ref[...]
    bs2_b = jnp.broadcast_to(bs2, (m, width))          # hoisted broadcast

    smax = None
    for _ in range(k):                                 # k is small & static
        rowmax = jnp.max(score, axis=-1, keepdims=True)
        idx = jnp.min(jnp.where(score == rowmax, col, n_pts), axis=-1, keepdims=True)
        sel = (col == idx)
        score = jnp.where(sel, neg_inf, score)         # exclude for next round
        onehot = sel.astype(cdt)
        # gather the ALREADY-PROJECTED neighbors (linearity hoist of Ws1n).
        s1nb = jnp.einsum('bmn,bnw->bmw', onehot, xw_b, preferred_element_type=f32)
        s1 = jnp.maximum(s1nb.reshape(m, width) + s1x, 0.0)
        s2 = jnp.maximum(jnp.dot(s1.astype(cdt), wgs, preferred_element_type=f32)
                         + bs2_b, 0.0)
        s3 = jnp.dot(s2.astype(cdt), ws3, preferred_element_type=f32)
        smax = s3 if smax is None else jnp.maximum(smax, s3)
    sout = smax + bs3                                  # bias hoisted out of the max

    out = jnp.maximum(tout + x + sout, 0.0)            # enable_scale=False path + ReLU
    o_ref[...] = out.reshape(bt, n_pts, c).astype(o_ref.dtype)


# ----------------------------------------------------------------------------
# Wrapper: layout, tiling heuristic, weight fusion, pallas_call.
# ----------------------------------------------------------------------------
def gcnext_forward(x, params, k=3, batch_tile=None, compute_dtype=jnp.bfloat16,
                   channels_last_io=False, vmem_budget_bytes=40 * 2**20):
    f32 = jnp.float32
    if channels_last_io:
        # TODO(synk): for a stack of GCNeXt blocks keep (B, N, C) throughout and
        # only convert at the ends — this flag skips the per-call transposes.
        B, N, C = x.shape
        x_bnc = x.astype(f32)
    else:
        B, C, N = x.shape
        x_bnc = jnp.transpose(x, (0, 2, 1)).astype(f32)
    Cout = params["b3"].shape[0]
    assert C == Cout, "GCNeXt residual add requires channel_in == channel_out"
    k = min(k, N)
    width = params["b1"].shape[0]
    cdt = jnp.dtype(compute_dtype)

    # ---- per-step VMEM estimate (activation blocks, kNN temps, matmul temps, weights)
    def vmem_estimate(bt_):
        m_ = bt_ * N
        act = bt_ * N * C * 4
        knn = 6 * bt_ * N * N * 4
        mm = m_ * (3 * width) * 4 + 6 * m_ * width * 4 + 3 * m_ * C * 4
        wbytes = (3 * C * width + 4 * width * width + 2 * width * C) * cdt.itemsize
        wbytes += 8 * max(width, C) * 4
        return 4 * act + wbytes + knn + mm             # 2x in + 2x out buffers

    # ---- batch tile: target M = bt*N ~ 512, pad B instead of divisor fallback
    if batch_tile is None:
        bt = max(1, min(B, -(-512 // N)))
        while bt > 1 and vmem_estimate(bt) > vmem_budget_bytes:
            bt -= 1
        # prefer >= 2 grid steps (v7x: 2 TensorCores) when M stays >= 256
        if -(-B // bt) < 2 and B >= 2 and (-(-B // 2)) * N >= 256:
            bt = -(-B // 2)
    else:
        bt = batch_tile
    grid_len = -(-B // bt)
    b_pad = grid_len * bt
    if b_pad != B:
        # zero-filled pad elements: inert for gram/kNN and sliced off below.
        x_bnc = jnp.pad(x_bnc, ((0, b_pad - B), (0, 0), (0, 0)))

    # ---- weights: fuse the three x-LHS projections, densified grouped convs ----
    W1t = params["W1t"].astype(f32)                    # (C, w)
    Ws1t = params["Ws1t"].astype(f32)                  # (2C, w): [neighbor-half ; x-half]
    Wbig = jnp.concatenate([W1t, Ws1t[C:], Ws1t[:C]], axis=1).astype(cdt)   # (C, 3w)
    Wg = params["Wg"].astype(cdt)                      # (3, w, w) block-diagonal
    W3t = params["W3t"].astype(cdt)                    # (w, C)
    Wgs = params["Wgs"].astype(cdt)                    # (w, w)  block-diagonal
    Ws3t = params["Ws3t"].astype(cdt)                  # (w, C)

    P = max(width, C)
    bias = jnp.zeros((8, P), f32)
    bias = bias.at[0, :width].set(params["b1"].astype(f32))
    bias = bias.at[1, :width].set(params["bg"].astype(f32))
    bias = bias.at[2, :Cout].set(params["b3"].astype(f32))
    bias = bias.at[3, :width].set(params["bs1"].astype(f32))
    bias = bias.at[4, :width].set(params["bs2"].astype(f32))
    bias = bias.at[5, :Cout].set(params["bs3"].astype(f32))

    weights = [Wbig, Wg, W3t, Wgs, Ws3t, bias]
    vmem_limit = int(min(64 * 2**20, max(32 * 2**20, 2 * vmem_estimate(bt))))

    def build(pipeline_mode):
        def rep_spec(arr):
            nd = arr.ndim
            if pipeline_mode is None:
                return pl.BlockSpec(arr.shape, lambda g, _n=nd: (0,) * _n)
            return pl.BlockSpec(arr.shape, lambda g, _n=nd: (0,) * _n,
                                pipeline_mode=pipeline_mode)
        return pl.pallas_call(
            functools.partial(gcnext_kernel, n_pts=N, k=k, cdt=cdt),
            out_shape=jax.ShapeDtypeStruct((b_pad, N, C), f32),
            grid_spec=pltpu.PrefetchScalarGridSpec(
                num_scalar_prefetch=0,
                grid=(grid_len,),
                in_specs=[pl.BlockSpec((bt, N, C), lambda g: (g, 0, 0))]
                         + [rep_spec(w) for w in weights],
                out_specs=pl.BlockSpec((bt, N, C), lambda g: (g, 0, 0)),
            ),
            compiler_params=pltpu.CompilerParams(
                dimension_semantics=("parallel",),
                vmem_limit_bytes=vmem_limit),
        )

    try:
        # Weights/bias are grid-invariant: single-buffer them to save VMEM.
        out = build(pl.Buffered(1))(x_bnc, *weights)
    except Exception:
        out = build(None)(x_bnc, *weights)             # fallback: default buffering

    out = out[:B]
    if channels_last_io:
        return out
    return jnp.transpose(out, (0, 2, 1))               # back to (B, C, N)


# ----------------------------------------------------------------------------
# Deterministic parameter init (synthetic, matches nn.Module shapes).
# ----------------------------------------------------------------------------
def init_params(key, channel_in, channel_out, groups=32, width_group=4):
    width = width_group * groups
    in_pg = width // groups
    ks = jax.random.split(key, 12)
    s = 0.1
    W1 = jax.random.normal(ks[0], (width, channel_in), jnp.float32) * s        # Conv1d(C,width,1)
    b1 = jax.random.normal(ks[1], (width,), jnp.float32) * s
    Wg_t = jax.random.normal(ks[2], (width, in_pg, 3), jnp.float32) * s        # grouped Conv1d k3
    bg = jax.random.normal(ks[3], (width,), jnp.float32) * s
    W3 = jax.random.normal(ks[4], (channel_out, width), jnp.float32) * s       # Conv1d(width,Cout,1)
    b3 = jax.random.normal(ks[5], (channel_out,), jnp.float32) * s
    Ws1 = jax.random.normal(ks[6], (width, 2 * channel_in), jnp.float32) * s   # Conv2d(2C,width,1)
    bs1 = jax.random.normal(ks[7], (width,), jnp.float32) * s
    Wgs_t = jax.random.normal(ks[8], (width, in_pg), jnp.float32) * s          # grouped Conv2d 1x1
    bs2 = jax.random.normal(ks[9], (width,), jnp.float32) * s
    Ws3 = jax.random.normal(ks[10], (channel_out, width), jnp.float32) * s     # Conv2d(width,Cout,1)
    bs3 = jax.random.normal(ks[11], (channel_out,), jnp.float32) * s

    # Densify grouped weights into block-diagonal (C_in, C_out) matrices.
    g_of = jnp.arange(width) // in_pg
    mask = (g_of[:, None] == g_of[None, :]).astype(jnp.float32)                # (w_in, w_out)
    local_in = jnp.arange(width) % in_pg
    tmp = jnp.transpose(Wg_t, (2, 1, 0))                                       # (3, in_pg, w_out)
    Wg_dense = tmp[:, local_in, :] * mask[None, :, :]                          # (3, w, w)
    Wgs_dense = Wgs_t.T[local_in, :] * mask                                    # (w, w)

    return dict(W1t=W1.T, b1=b1, Wg=Wg_dense, bg=bg, W3t=W3.T, b3=b3,
                Ws1t=Ws1.T, bs1=bs1, Wgs=Wgs_dense, bs2=bs2, Ws3t=Ws3.T, bs3=bs3)


# ----------------------------------------------------------------------------
# Pure-JAX reference (follows the PyTorch code, NCW layout).
# ----------------------------------------------------------------------------
def ref_forward(x_bcn, p, k=3):
    relu = lambda a: jnp.maximum(a, 0.0)
    B, C, N = x_bcn.shape
    k = min(k, N)
    # tconvs
    h = relu(jnp.einsum("bcn,cw->bwn", x_bcn, p["W1t"]) + p["b1"][None, :, None])
    hp = jnp.pad(h, ((0, 0), (0, 0), (1, 1)))
    h2 = sum(jnp.einsum("bcn,cw->bwn", hp[:, :, d:d + N], p["Wg"][d]) for d in range(3))
    h2 = relu(h2 + p["bg"][None, :, None])
    tout = jnp.einsum("bcn,cw->bwn", h2, p["W3t"]) + p["b3"][None, :, None]
    # knn + get_graph_feature (style=1)
    inner = -2.0 * jnp.einsum("bcm,bcn->bmn", x_bcn, x_bcn)
    xx = jnp.sum(x_bcn ** 2, axis=1, keepdims=True)
    pd = -xx - inner - jnp.transpose(xx, (0, 2, 1))
    _, idx = lax.top_k(pd, k)                                    # (B, N, k)
    xt = jnp.transpose(x_bcn, (0, 2, 1))                         # (B, N, C)
    feature = jax.vmap(lambda xb, ib: xb[ib])(xt, idx)           # (B, N, k, C)
    xrep = jnp.broadcast_to(xt[:, :, None, :], feature.shape)
    f = jnp.transpose(jnp.concatenate([feature, xrep], axis=3), (0, 3, 1, 2))  # (B, 2C, N, k)
    # sconvs (all 1x1)
    s1 = relu(jnp.einsum("bcnk,cw->bwnk", f, p["Ws1t"]) + p["bs1"][None, :, None, None])
    s2 = relu(jnp.einsum("bcnk,cw->bwnk", s1, p["Wgs"]) + p["bs2"][None, :, None, None])
    s3 = jnp.einsum("bcnk,cw->bwnk", s2, p["Ws3t"]) + p["bs3"][None, :, None, None]
    sout = jnp.max(s3, axis=-1)
    return relu(tout + x_bcn + sout)


if __name__ == "__main__":
    key = jax.random.PRNGKey(0)
    kx, kp = jax.random.split(key)
    B, C, N = 2, 32, 16                 # channel_in == channel_out (residual add)
    x = jax.random.normal(kx, (B, C, N), dtype=jnp.float32)
    params = init_params(kp, C, C, groups=32, width_group=4)
    ref = ref_forward(x, params, k=3)

    # Exact path (f32 matmuls) — must match the f32 reference tightly.
    out_f32 = jax.block_until_ready(
        gcnext_forward(x, params, k=3, compute_dtype=jnp.float32))
    np.testing.assert_allclose(np.asarray(out_f32), np.asarray(ref),
                               rtol=1e-4, atol=1e-4)

    # bf16-MXU path (default; kNN selection stays f32) — looser tolerance.
    out_bf16 = jax.block_until_ready(gcnext_forward(x, params, k=3))
    np.testing.assert_allclose(np.asarray(out_bf16), np.asarray(ref),
                               rtol=3e-2, atol=3e-2)
    print("KERNEL_OK")
</pallas_src>

<mosaic_0001>
module attributes {stable_mosaic.version = 11 : i64} {
  func.func @gcnext_kernel(%arg0: i32, %arg1: memref<2x16x32xf32, #tpu.memory_space<vmem>>, %arg2: memref<32x384xf32, #tpu.memory_space<vmem>>, %arg3: memref<3x128x128xf32, #tpu.memory_space<vmem>>, %arg4: memref<128x32xf32, #tpu.memory_space<vmem>>, %arg5: memref<128x128xf32, #tpu.memory_space<vmem>>, %arg6: memref<128x32xf32, #tpu.memory_space<vmem>>, %arg7: memref<8x128xf32, #tpu.memory_space<vmem>>, %arg8: memref<2x16x32xf32, #tpu.memory_space<vmem>>) attributes {dimension_semantics = [#tpu.dimension_semantics<parallel>], iteration_bounds = array<i64: 1>, scalar_prefetch = 0 : i64, scratch_operands = 0 : i64, tpu.core_type = #tpu.core_type<tc>, window_params = [{transform_indices = @transform_0, window_bounds = array<i64: 2, 16, 32>}, {pipeline_mode = #tpu.pipeline_mode<synchronous>, transform_indices = @transform_1, window_bounds = array<i64: 32, 384>}, {pipeline_mode = #tpu.pipeline_mode<synchronous>, transform_indices = @transform_2, window_bounds = array<i64: 3, 128, 128>}, {pipeline_mode = #tpu.pipeline_mode<synchronous>, transform_indices = @transform_3, window_bounds = array<i64: 128, 32>}, {pipeline_mode = #tpu.pipeline_mode<synchronous>, transform_indices = @transform_4, window_bounds = array<i64: 128, 128>}, {pipeline_mode = #tpu.pipeline_mode<synchronous>, transform_indices = @transform_5, window_bounds = array<i64: 128, 32>}, {pipeline_mode = #tpu.pipeline_mode<synchronous>, transform_indices = @transform_6, window_bounds = array<i64: 8, 128>}, {transform_indices = @transform_7, window_bounds = array<i64: 2, 16, 32>}]} {
    %c0 = arith.constant 0 : index
    %c0_0 = arith.constant 0 : index
    %c0_1 = arith.constant 0 : index
    %0 = vector.load %arg1[%c0, %c0_0, %c0_1] : memref<2x16x32xf32, #tpu.memory_space<vmem>>, vector<2x16x32xf32>
    %1 = vector.shape_cast %0 : vector<2x16x32xf32> to vector<32x32xf32>
    %c0_2 = arith.constant 0 : index
    %c0_3 = arith.constant 0 : index
    %2 = vector.load %arg7[%c0_2, %c0_3] : memref<8x128xf32, #tpu.memory_space<vmem>>, vector<1x128xf32>
    %c1 = arith.constant 1 : index
    %c0_4 = arith.constant 0 : index
    %3 = vector.load %arg7[%c1, %c0_4] : memref<8x128xf32, #tpu.memory_space<vmem>>, vector<1x128xf32>
    %c2 = arith.constant 2 : index
    %c0_5 = arith.constant 0 : index
    %4 = vector.load %arg7[%c2, %c0_5] : memref<8x128xf32, #tpu.memory_space<vmem>>, vector<1x32xf32>
    %c3 = arith.constant 3 : index
    %c0_6 = arith.constant 0 : index
    %5 = vector.load %arg7[%c3, %c0_6] : memref<8x128xf32, #tpu.memory_space<vmem>>, vector<1x128xf32>
    %c4 = arith.constant 4 : index
    %c0_7 = arith.constant 0 : index
    %6 = vector.load %arg7[%c4, %c0_7] : memref<8x128xf32, #tpu.memory_space<vmem>>, vector<1x128xf32>
    %c5 = arith.constant 5 : index
    %c0_8 = arith.constant 0 : index
    %7 = vector.load %arg7[%c5, %c0_8] : memref<8x128xf32, #tpu.memory_space<vmem>>, vector<1x32xf32>
    %c0_9 = arith.constant 0 : index
    %c0_10 = arith.constant 0 : index
    %8 = vector.load %arg2[%c0_9, %c0_10] : memref<32x384xf32, #tpu.memory_space<vmem>>, vector<32x384xf32>
    %cst = arith.constant dense<0.000000e+00> : vector<32x384xf32>
    %9 = tpu.matmul %1, %8, %cst {dimension_numbers = #tpu.dot_dimension_numbers<[1], [0], [0], [1], [0, 0, 1, 1], [], []>} : vector<32x32xf32>, vector<32x384xf32>, vector<32x384xf32> -> vector<32x384xf32>
    %10 = vector.extract_strided_slice %9 {offsets = [0, 0], sizes = [32, 128], strides = [1, 1]} : vector<32x384xf32> to vector<32x128xf32>
    %11 = vector.broadcast %2 : vector<1x128xf32> to vector<32x128xf32>
    %12 = arith.addf %10, %11 : vector<32x128xf32>
    %cst_11 = arith.constant 0.000000e+00 : f32
    %13 = vector.broadcast %cst_11 : f32 to vector<32x128xf32>
    %14 = arith.maximumf %12, %13 : vector<32x128xf32>
    %15 = vector.extract_strided_slice %9 {offsets = [0, 128], sizes = [32, 128], strides = [1, 1]} : vector<32x384xf32> to vector<32x128xf32>
    %16 = vector.broadcast %5 : vector<1x128xf32> to vector<32x128xf32>
    %17 = arith.addf %15, %16 : vector<32x128xf32>
    %18 = vector.extract_strided_slice %9 {offsets = [0, 256], sizes = [32, 128], strides = [1, 1]} : vector<32x384xf32> to vector<32x128xf32>
    %19 = tpu.iota {dimensions = array<i32: 0>} : vector<32x1xi32>
    %c16_i32 = arith.constant 16 : i32
    %c0_i32 = arith.constant 0 : i32
    %20 = arith.cmpi eq, %c16_i32, %c0_i32 : i32
    %c1_i32 = arith.constant 1 : i32
    %21 = arith.select %20, %c1_i32, %c16_i32 : i32
    %22 = vector.broadcast %21 : i32 to vector<32x1xi32>
    %23 = arith.remsi %19, %22 : vector<32x1xi32>
    %c0_i32_12 = arith.constant 0 : i32
    %24 = vector.broadcast %c0_i32_12 : i32 to vector<32x1xi32>
    %25 = arith.cmpi ne, %23, %24 : vector<32x1xi32>
    %c0_i32_13 = arith.constant 0 : i32
    %26 = vector.broadcast %c0_i32_13 : i32 to vector<32x1xi32>
    %27 = arith.cmpi slt, %23, %26 : vector<32x1xi32>
    %c0_i32_14 = arith.constant 0 : i32
    %28 = arith.cmpi slt, %21, %c0_i32_14 : i32
    %29 = vector.broadcast %28 : i1 to vector<32x1xi1>
    %30 = vector.broadcast %29 : vector<32x1xi1> to vector<32x1xi1>
    %31 = arith.xori %27, %30 : vector<32x1xi1>
    %32 = arith.andi %31, %25 : vector<32x1xi1>
    %33 = vector.broadcast %21 : i32 to vector<32x1xi32>
    %34 = arith.addi %23, %33 : vector<32x1xi32>
    %35 = arith.select %32, %34, %23 : vector<32x1xi1>, vector<32x1xi32>
    %c0_i32_15 = arith.constant 0 : i32
    %36 = vector.broadcast %c0_i32_15 : i32 to vector<32x1xi32>
    %37 = arith.cmpi eq, %35, %36 : vector<32x1xi32>
    %c1_i32_16 = arith.constant 1 : i32
    %38 = tpu.dynamic_rotate %14 by %c1_i32_16 dim 0 : vector<32x128xf32>, i32 -> vector<32x128xf32>
    %cst_17 = arith.constant 0.000000e+00 : f32
    %39 = vector.shape_cast %37 : vector<32x1xi1> to vector<32x1xi1>
    %40 = vector.broadcast %39 : vector<32x1xi1> to vector<32x128xi1>
    %41 = vector.broadcast %cst_17 : f32 to vector<32x128xf32>
    %42 = arith.select %40, %41, %38 : vector<32x128xi1>, vector<32x128xf32>
    %c16_i32_18 = arith.constant 16 : i32
    %c0_i32_19 = arith.constant 0 : i32
    %43 = arith.cmpi eq, %c16_i32_18, %c0_i32_19 : i32
    %c1_i32_20 = arith.constant 1 : i32
    %44 = arith.select %43, %c1_i32_20, %c16_i32_18 : i32
    %45 = vector.broadcast %44 : i32 to vector<32x1xi32>
    %46 = arith.remsi %19, %45 : vector<32x1xi32>
    %c0_i32_21 = arith.constant 0 : i32
    %47 = vector.broadcast %c0_i32_21 : i32 to vector<32x1xi32>
    %48 = arith.cmpi ne, %46, %47 : vector<32x1xi32>
    %c0_i32_22 = arith.constant 0 : i32
    %49 = vector.broadcast %c0_i32_22 : i32 to vector<32x1xi32>
    %50 = arith.cmpi slt, %46, %49 : vector<32x1xi32>
    %c0_i32_23 = arith.constant 0 : i32
    %51 = arith.cmpi slt, %44, %c0_i32_23 : i32
    %52 = vector.broadcast %51 : i1 to vector<32x1xi1>
    %53 = vector.broadcast %52 : vector<32x1xi1> to vector<32x1xi1>
    %54 = arith.xori %50, %53 : vector<32x1xi1>
    %55 = arith.andi %54, %48 : vector<32x1xi1>
    %56 = vector.broadcast %44 : i32 to vector<32x1xi32>
    %57 = arith.addi %46, %56 : vector<32x1xi32>
    %58 = arith.select %55, %57, %46 : vector<32x1xi1>, vector<32x1xi32>
    %c15_i32 = arith.constant 15 : i32
    %59 = vector.broadcast %c15_i32 : i32 to vector<32x1xi32>
    %60 = arith.cmpi eq, %58, %59 : vector<32x1xi32>
    %c31_i32 = arith.constant 31 : i32
    %61 = tpu.dynamic_rotate %14 by %c31_i32 dim 0 : vector<32x128xf32>, i32 -> vector<32x128xf32>
    %cst_24 = arith.constant 0.000000e+00 : f32
    %62 = vector.shape_cast %60 : vector<32x1xi1> to vector<32x1xi1>
    %63 = vector.broadcast %62 : vector<32x1xi1> to vector<32x128xi1>
    %64 = vector.broadcast %cst_24 : f32 to vector<32x128xf32>
    %65 = arith.select %63, %64, %61 : vector<32x128xi1>, vector<32x128xf32>
    %c0_25 = arith.constant 0 : index
    %c0_26 = arith.constant 0 : index
    %c0_27 = arith.constant 0 : index
    %66 = vector.load %arg3[%c0_25, %c0_26, %c0_27] : memref<3x128x128xf32, #tpu.memory_space<vmem>>, vector<1x128x128xf32>
    %67 = vector.shape_cast %66 : vector<1x128x128xf32> to vector<128x128xf32>
    %cst_28 = arith.constant dense<0.000000e+00> : vector<32x128xf32>
    %68 = tpu.matmul %42, %67, %cst_28 {dimension_numbers = #tpu.dot_dimension_numbers<[1], [0], [0], [1], [0, 0, 1, 1], [], []>} : vector<32x128xf32>, vector<128x128xf32>, vector<32x128xf32> -> vector<32x128xf32>
    %c1_29 = arith.constant 1 : index
    %c0_30 = arith.constant 0 : index
    %c0_31 = arith.constant 0 : index
    %69 = vector.load %arg3[%c1_29, %c0_30, %c0_31] : memref<3x128x128xf32, #tpu.memory_space<vmem>>, vector<1x128x128xf32>
    %70 = vector.shape_cast %69 : vector<1x128x128xf32> to vector<128x128xf32>
    %cst_32 = arith.constant dense<0.000000e+00> : vector<32x128xf32>
    %71 = tpu.matmul %14, %70, %cst_32 {dimension_numbers = #tpu.dot_dimension_numbers<[1], [0], [0], [1], [0, 0, 1, 1], [], []>} : vector<32x128xf32>, vector<128x128xf32>, vector<32x128xf32> -> vector<32x128xf32>
    %72 = arith.addf %68, %71 : vector<32x128xf32>
    %c2_33 = arith.constant 2 : index
    %c0_34 = arith.constant 0 : index
    %c0_35 = arith.constant 0 : index
    %73 = vector.load %arg3[%c2_33, %c0_34, %c0_35] : memref<3x128x128xf32, #tpu.memory_space<vmem>>, vector<1x128x128xf32>
    %74 = vector.shape_cast %73 : vector<1x128x128xf32> to vector<128x128xf32>
    %cst_36 = arith.constant dense<0.000000e+00> : vector<32x128xf32>
    %75 = tpu.matmul %65, %74, %cst_36 {dimension_numbers = #tpu.dot_dimension_numbers<[1], [0], [0], [1], [0, 0, 1, 1], [], []>} : vector<32x128xf32>, vector<128x128xf32>, vector<32x128xf32> -> vector<32x128xf32>
    %76 = arith.addf %72, %75 : vector<32x128xf32>
    %77 = vector.broadcast %3 : vector<1x128xf32> to vector<32x128xf32>
    %78 = arith.addf %76, %77 : vector<32x128xf32>
    %cst_37 = arith.constant 0.000000e+00 : f32
    %79 = vector.broadcast %cst_37 : f32 to vector<32x128xf32>
    %80 = arith.maximumf %78, %79 : vector<32x128xf32>
    %c0_38 = arith.constant 0 : index
    %c0_39 = arith.constant 0 : index
    %81 = vector.load %arg4[%c0_38, %c0_39] : memref<128x32xf32, #tpu.memory_space<vmem>>, vector<128x32xf32>
    %cst_40 = arith.constant dense<0.000000e+00> : vector<32x32xf32>
    %82 = tpu.matmul %80, %81, %cst_40 {dimension_numbers = #tpu.dot_dimension_numbers<[1], [0], [0], [1], [0, 0, 1, 1], [], []>} : vector<32x128xf32>, vector<128x32xf32>, vector<32x32xf32> -> vector<32x32xf32>
    %83 = vector.broadcast %4 : vector<1x32xf32> to vector<32x32xf32>
    %84 = arith.addf %82, %83 : vector<32x32xf32>
    "tpu.trace_start"() <{level = 10 : i32, message = "bmc,bnc->bmn"}> : () -> ()
    %cst_41 = arith.constant dense<0.000000e+00> : vector<2x16x16xf32>
    %85 = tpu.matmul %0, %0, %cst_41 {dimension_numbers = #tpu.dot_dimension_numbers<[2], [2], [1], [1], [0, 0, 0, 1, 1, 1], [0], [0]>} : vector<2x16x32xf32>, vector<2x16x32xf32>, vector<2x16x16xf32> -> vector<2x16x16xf32>
    "tpu.trace_stop"() : () -> ()
    %86 = tpu.iota {dimensions = array<i32: 1>} : vector<2x16x16xi32>
    %87 = tpu.iota {dimensions = array<i32: 2>} : vector<2x16x16xi32>
    %88 = arith.cmpi eq, %86, %87 : vector<2x16x16xi32>
    %cst_42 = arith.constant 0.000000e+00 : f32
    %89 = vector.broadcast %cst_42 : f32 to vector<2x16x16xf32>
    %90 = arith.select %88, %85, %89 : vector<2x16x16xi1>, vector<2x16x16xf32>
    %cst_43 = arith.constant dense<0.000000e+00> : vector<2x16xf32>
    %91 = vector.multi_reduction <add>, %90, %cst_43 [1] : vector<2x16x16xf32> to vector<2x16xf32>
    %92 = vector.shape_cast %91 : vector<2x16xf32> to vector<2x1x16xf32>
    %cst_44 = arith.constant 2.000000e+00 : f32
    %93 = vector.broadcast %cst_44 : f32 to vector<2x16x16xf32>
    %94 = arith.mulf %93, %85 : vector<2x16x16xf32>
    %95 = vector.broadcast %92 : vector<2x1x16xf32> to vector<2x16x16xf32>
    %96 = arith.subf %94, %95 : vector<2x16x16xf32>
    %97 = vector.shape_cast %18 : vector<32x128xf32> to vector<2x16x128xf32>
    %c0_45 = arith.constant 0 : index
    %c0_46 = arith.constant 0 : index
    %98 = vector.load %arg5[%c0_45, %c0_46] : memref<128x128xf32, #tpu.memory_space<vmem>>, vector<128x128xf32>
    %c0_47 = arith.constant 0 : index
    %c0_48 = arith.constant 0 : index
    %99 = vector.load %arg6[%c0_47, %c0_48] : memref<128x32xf32, #tpu.memory_space<vmem>>, vector<128x32xf32>
    %100 = vector.shape_cast %6 : vector<1x128xf32> to vector<1x128xf32>
    %101 = vector.broadcast %100 : vector<1x128xf32> to vector<32x128xf32>
    %cst_49 = arith.constant dense<0xFF800000> : vector<2x16xf32>
    %102 = vector.multi_reduction <maximumf>, %96, %cst_49 [2] : vector<2x16x16xf32> to vector<2x16xf32>
    %103 = vector.shape_cast %102 : vector<2x16xf32> to vector<2x16x1xf32>
    %104 = vector.broadcast %103 : vector<2x16x1xf32> to vector<2x16x16xf32>
    %105 = arith.cmpf oeq, %96, %104 : vector<2x16x16xf32>
    %c16_i32_50 = arith.constant 16 : i32
    %106 = vector.broadcast %c16_i32_50 : i32 to vector<2x16x16xi32>
    %107 = arith.select %105, %87, %106 : vector<2x16x16xi1>, vector<2x16x16xi32>
    %cst_51 = arith.constant dense<2147483647> : vector<2x16xi32>
    %108 = vector.multi_reduction <minsi>, %107, %cst_51 [2] : vector<2x16x16xi32> to vector<2x16xi32>
    %109 = vector.shape_cast %108 : vector<2x16xi32> to vector<2x16x1xi32>
    %110 = vector.broadcast %109 : vector<2x16x1xi32> to vector<2x16x16xi32>
    %111 = arith.cmpi eq, %87, %110 : vector<2x16x16xi32>
    %cst_52 = arith.constant -3.40282347E+38 : f32
    %112 = vector.broadcast %cst_52 : f32 to vector<2x16x16xf32>
    %113 = arith.select %111, %112, %96 : vector<2x16x16xi1>, vector<2x16x16xf32>
    %114 = arith.extui %111 : vector<2x16x16xi1> to vector<2x16x16xi32>
    %115 = arith.sitofp %114 : vector<2x16x16xi32> to vector<2x16x16xf32>
    "tpu.trace_start"() <{level = 10 : i32, message = "bmn,bnw->bmw"}> : () -> ()
    %cst_53 = arith.constant dense<0.000000e+00> : vector<2x16x128xf32>
    %116 = tpu.matmul %115, %97, %cst_53 {dimension_numbers = #tpu.dot_dimension_numbers<[2], [1], [1], [2], [0, 0, 0, 1, 1, 2], [0], [0]>} : vector<2x16x16xf32>, vector<2x16x128xf32>, vector<2x16x128xf32> -> vector<2x16x128xf32>
    "tpu.trace_stop"() : () -> ()
    %117 = vector.shape_cast %116 : vector<2x16x128xf32> to vector<32x128xf32>
    %118 = arith.addf %117, %17 : vector<32x128xf32>
    %cst_54 = arith.constant 0.000000e+00 : f32
    %119 = vector.broadcast %cst_54 : f32 to vector<32x128xf32>
    %120 = arith.maximumf %118, %119 : vector<32x128xf32>
    %cst_55 = arith.constant dense<0.000000e+00> : vector<32x128xf32>
    %121 = tpu.matmul %120, %98, %cst_55 {dimension_numbers = #tpu.dot_dimension_numbers<[1], [0], [0], [1], [0, 0, 1, 1], [], []>} : vector<32x128xf32>, vector<128x128xf32>, vector<32x128xf32> -> vector<32x128xf32>
    %122 = arith.addf %121, %101 : vector<32x128xf32>
    %cst_56 = arith.constant 0.000000e+00 : f32
    %123 = vector.broadcast %cst_56 : f32 to vector<32x128xf32>
    %124 = arith.maximumf %122, %123 : vector<32x128xf32>
    %cst_57 = arith.constant dense<0.000000e+00> : vector<32x32xf32>
    %125 = tpu.matmul %124, %99, %cst_57 {dimension_numbers = #tpu.dot_dimension_numbers<[1], [0], [0], [1], [0, 0, 1, 1], [], []>} : vector<32x128xf32>, vector<128x32xf32>, vector<32x32xf32> -> vector<32x32xf32>
    %cst_58 = arith.constant dense<0xFF800000> : vector<2x16xf32>
    %126 = vector.multi_reduction <maximumf>, %113, %cst_58 [2] : vector<2x16x16xf32> to vector<2x16xf32>
    %127 = vector.shape_cast %126 : vector<2x16xf32> to vector<2x16x1xf32>
    %128 = vector.broadcast %127 : vector<2x16x1xf32> to vector<2x16x16xf32>
    %129 = arith.cmpf oeq, %113, %128 : vector<2x16x16xf32>
    %c16_i32_59 = arith.constant 16 : i32
    %130 = vector.broadcast %c16_i32_59 : i32 to vector<2x16x16xi32>
    %131 = arith.select %129, %87, %130 : vector<2x16x16xi1>, vector<2x16x16xi32>
    %cst_60 = arith.constant dense<2147483647> : vector<2x16xi32>
    %132 = vector.multi_reduction <minsi>, %131, %cst_60 [2] : vector<2x16x16xi32> to vector<2x16xi32>
    %133 = vector.shape_cast %132 : vector<2x16xi32> to vector<2x16x1xi32>
    %134 = vector.broadcast %133 : vector<2x16x1xi32> to vector<2x16x16xi32>
    %135 = arith.cmpi eq, %87, %134 : vector<2x16x16xi32>
    %cst_61 = arith.constant -3.40282347E+38 : f32
    %136 = vector.broadcast %cst_61 : f32 to vector<2x16x16xf32>
    %137 = arith.select %135, %136, %113 : vector<2x16x16xi1>, vector<2x16x16xf32>
    %138 = arith.extui %135 : vector<2x16x16xi1> to vector<2x16x16xi32>
    %139 = arith.sitofp %138 : vector<2x16x16xi32> to vector<2x16x16xf32>
    "tpu.trace_start"() <{level = 10 : i32, message = "bmn,bnw->bmw"}> : () -> ()
    %cst_62 = arith.constant dense<0.000000e+00> : vector<2x16x128xf32>
    %140 = tpu.matmul %139, %97, %cst_62 {dimension_numbers = #tpu.dot_dimension_numbers<[2], [1], [1], [2], [0, 0, 0, 1, 1, 2], [0], [0]>} : vector<2x16x16xf32>, vector<2x16x128xf32>, vector<2x16x128xf32> -> vector<2x16x128xf32>
    "tpu.trace_stop"() : () -> ()
    %141 = vector.shape_cast %140 : vector<2x16x128xf32> to vector<32x128xf32>
    %142 = arith.addf %141, %17 : vector<32x128xf32>
    %cst_63 = arith.constant 0.000000e+00 : f32
    %143 = vector.broadcast %cst_63 : f32 to vector<32x128xf32>
    %144 = arith.maximumf %142, %143 : vector<32x128xf32>
    %cst_64 = arith.constant dense<0.000000e+00> : vector<32x128xf32>
    %145 = tpu.matmul %144, %98, %cst_64 {dimension_numbers = #tpu.dot_dimension_numbers<[1], [0], [0], [1], [0, 0, 1, 1], [], []>} : vector<32x128xf32>, vector<128x128xf32>, vector<32x128xf32> -> vector<32x128xf32>
    %146 = arith.addf %145, %101 : vector<32x128xf32>
    %cst_65 = arith.constant 0.000000e+00 : f32
    %147 = vector.broadcast %cst_65 : f32 to vector<32x128xf32>
    %148 = arith.maximumf %146, %147 : vector<32x128xf32>
    %cst_66 = arith.constant dense<0.000000e+00> : vector<32x32xf32>
    %149 = tpu.matmul %148, %99, %cst_66 {dimension_numbers = #tpu.dot_dimension_numbers<[1], [0], [0], [1], [0, 0, 1, 1], [], []>} : vector<32x128xf32>, vector<128x32xf32>, vector<32x32xf32> -> vector<32x32xf32>
    %150 = arith.maximumf %125, %149 : vector<32x32xf32>
    %cst_67 = arith.constant dense<0xFF800000> : vector<2x16xf32>
    %151 = vector.multi_reduction <maximumf>, %137, %cst_67 [2] : vector<2x16x16xf32> to vector<2x16xf32>
    %152 = vector.shape_cast %151 : vector<2x16xf32> to vector<2x16x1xf32>
    %153 = vector.broadcast %152 : vector<2x16x1xf32> to vector<2x16x16xf32>
    %154 = arith.cmpf oeq, %137, %153 : vector<2x16x16xf32>
    %c16_i32_68 = arith.constant 16 : i32
    %155 = vector.broadcast %c16_i32_68 : i32 to vector<2x16x16xi32>
    %156 = arith.select %154, %87, %155 : vector<2x16x16xi1>, vector<2x16x16xi32>
    %cst_69 = arith.constant dense<2147483647> : vector<2x16xi32>
    %157 = vector.multi_reduction <minsi>, %156, %cst_69 [2] : vector<2x16x16xi32> to vector<2x16xi32>
    %158 = vector.shape_cast %157 : vector<2x16xi32> to vector<2x16x1xi32>
    %159 = vector.broadcast %158 : vector<2x16x1xi32> to vector<2x16x16xi32>
    %160 = arith.cmpi eq, %87, %159 : vector<2x16x16xi32>
    %161 = arith.extui %160 : vector<2x16x16xi1> to vector<2x16x16xi32>
    %162 = arith.sitofp %161 : vector<2x16x16xi32> to vector<2x16x16xf32>
    "tpu.trace_start"() <{level = 10 : i32, message = "bmn,bnw->bmw"}> : () -> ()
    %cst_70 = arith.constant dense<0.000000e+00> : vector<2x16x128xf32>
    %163 = tpu.matmul %162, %97, %cst_70 {dimension_numbers = #tpu.dot_dimension_numbers<[2], [1], [1], [2], [0, 0, 0, 1, 1, 2], [0], [0]>} : vector<2x16x16xf32>, vector<2x16x128xf32>, vector<2x16x128xf32> -> vector<2x16x128xf32>
    "tpu.trace_stop"() : () -> ()
    %164 = vector.shape_cast %163 : vector<2x16x128xf32> to vector<32x128xf32>
    %165 = arith.addf %164, %17 : vector<32x128xf32>
    %cst_71 = arith.constant 0.000000e+00 : f32
    %166 = vector.broadcast %cst_71 : f32 to vector<32x128xf32>
    %167 = arith.maximumf %165, %166 : vector<32x128xf32>
    %cst_72 = arith.constant dense<0.000000e+00> : vector<32x128xf32>
    %168 = tpu.matmul %167, %98, %cst_72 {dimension_numbers = #tpu.dot_dimension_numbers<[1], [0], [0], [1], [0, 0, 1, 1], [], []>} : vector<32x128xf32>, vector<128x128xf32>, vector<32x128xf32> -> vector<32x128xf32>
    %169 = arith.addf %168, %101 : vector<32x128xf32>
    %cst_73 = arith.constant 0.000000e+00 : f32
    %170 = vector.broadcast %cst_73 : f32 to vector<32x128xf32>
    %171 = arith.maximumf %169, %170 : vector<32x128xf32>
    %cst_74 = arith.constant dense<0.000000e+00> : vector<32x32xf32>
    %172 = tpu.matmul %171, %99, %cst_74 {dimension_numbers = #tpu.dot_dimension_numbers<[1], [0], [0], [1], [0, 0, 1, 1], [], []>} : vector<32x128xf32>, vector<128x32xf32>, vector<32x32xf32> -> vector<32x32xf32>
    %173 = arith.maximumf %150, %172 : vector<32x32xf32>
    %174 = vector.broadcast %7 : vector<1x32xf32> to vector<32x32xf32>
    %175 = arith.addf %173, %174 : vector<32x32xf32>
    %176 = arith.addf %84, %1 : vector<32x32xf32>
    %177 = arith.addf %176, %175 : vector<32x32xf32>
    %cst_75 = arith.constant 0.000000e+00 : f32
    %178 = vector.broadcast %cst_75 : f32 to vector<32x32xf32>
    %179 = arith.maximumf %177, %178 : vector<32x32xf32>
    %180 = vector.shape_cast %179 : vector<32x32xf32> to vector<2x16x32xf32>
    %c0_76 = arith.constant 0 : index
    %c0_77 = arith.constant 0 : index
    %c0_78 = arith.constant 0 : index
    %181 = vector.load %arg8[%c0_76, %c0_77, %c0_78] : memref<2x16x32xf32, #tpu.memory_space<vmem>>, vector<2x16x32xf32>
    tpu.vector_store %arg8[%c0_76, %c0_77, %c0_78], %180 {strides = array<i32>} : memref<2x16x32xf32, #tpu.memory_space<vmem>>, vector<2x16x32xf32>,
    return
  }
  func.func @transform_0(%arg0: i32) -> (i32, i32, i32) {
    %c0_i32 = arith.constant 0 : i32
    %c0_i32_0 = arith.constant 0 : i32
    %c0_i32_1 = arith.constant 0 : i32
    return %arg0, %c0_i32, %c0_i32_0 : i32, i32, i32
  }
  func.func @transform_1(%arg0: i32) -> (i32, i32) {
    %c0_i32 = arith.constant 0 : i32
    %c0_i32_0 = arith.constant 0 : i32
    %c0_i32_1 = arith.constant 0 : i32
    return %c0_i32, %c0_i32_0 : i32, i32
  }
  func.func @transform_2(%arg0: i32) -> (i32, i32, i32) {
    %c0_i32 = arith.constant 0 : i32
    %c0_i32_0 = arith.constant 0 : i32
    %c0_i32_1 = arith.constant 0 : i32
    %c0_i32_2 = arith.constant 0 : i32
    return %c0_i32, %c0_i32_0, %c0_i32_1 : i32, i32, i32
  }
  func.func @transform_3(%arg0: i32) -> (i32, i32) {
    %c0_i32 = arith.constant 0 : i32
    %c0_i32_0 = arith.constant 0 : i32
    %c0_i32_1 = arith.constant 0 : i32
    return %c0_i32, %c0_i32_0 : i32, i32
  }
  func.func @transform_4(%arg0: i32) -> (i32, i32) {
    %c0_i32 = arith.constant 0 : i32
    %c0_i32_0 = arith.constant 0 : i32
    %c0_i32_1 = arith.constant 0 : i32
    return %c0_i32, %c0_i32_0 : i32, i32
  }
  func.func @transform_5(%arg0: i32) -> (i32, i32) {
    %c0_i32 = arith.constant 0 : i32
    %c0_i32_0 = arith.constant 0 : i32
    %c0_i32_1 = arith.constant 0 : i32
    return %c0_i32, %c0_i32_0 : i32, i32
  }
  func.func @transform_6(%arg0: i32) -> (i32, i32) {
    %c0_i32 = arith.constant 0 : i32
    %c0_i32_0 = arith.constant 0 : i32
    %c0_i32_1 = arith.constant 0 : i32
    return %c0_i32, %c0_i32_0 : i32, i32
  }
  func.func @transform_7(%arg0: i32) -> (i32, i32, i32) {
    %c0_i32 = arith.constant 0 : i32
    %c0_i32_0 = arith.constant 0 : i32
    %c0_i32_1 = arith.constant 0 : i32
    return %arg0, %c0_i32, %c0_i32_0 : i32, i32, i32
  }
}

module attributes {stable_mosaic.version = 11 : i64} {
  func.func @gcnext_kernel(%arg0: i32, %arg1: memref<2x16x32xf32, #tpu.memory_space<vmem>>, %arg2: memref<32x384xf32, #tpu.memory_space<vmem>>, %arg3: memref<3x128x128xf32, #tpu.memory_space<vmem>>, %arg4: memref<128x32xf32, #tpu.memory_space<vmem>>, %arg5: memref<128x128xf32, #tpu.memory_space<vmem>>, %arg6: memref<128x32xf32, #tpu.memory_space<vmem>>, %arg7: memref<8x128xf32, #tpu.memory_space<vmem>>, %arg8: memref<2x16x32xf32, #tpu.memory_space<vmem>>) attributes {dimension_semantics = [#tpu.dimension_semantics<parallel>], iteration_bounds = array<i64: 1>, scalar_prefetch = 0 : i64, scratch_operands = 0 : i64, tpu.core_type = #tpu.core_type<tc>, window_params = [{transform_indices = @transform_0, window_bounds = array<i64: 2, 16, 32>}, {pipeline_mode = #tpu.pipeline_mode<synchronous>, transform_indices = @transform_1, window_bounds = array<i64: 32, 384>}, {pipeline_mode = #tpu.pipeline_mode<synchronous>, transform_indices = @transform_2, window_bounds = array<i64: 3, 128, 128>}, {pipeline_mode = #tpu.pipeline_mode<synchronous>, transform_indices = @transform_3, window_bounds = array<i64: 128, 32>}, {pipeline_mode = #tpu.pipeline_mode<synchronous>, transform_indices = @transform_4, window_bounds = array<i64: 128, 128>}, {pipeline_mode = #tpu.pipeline_mode<synchronous>, transform_indices = @transform_5, window_bounds = array<i64: 128, 32>}, {pipeline_mode = #tpu.pipeline_mode<synchronous>, transform_indices = @transform_6, window_bounds = array<i64: 8, 128>}, {transform_indices = @transform_7, window_bounds = array<i64: 2, 16, 32>}]} {
    %c0 = arith.constant 0 : index
    %c0_0 = arith.constant 0 : index
    %c0_1 = arith.constant 0 : index
    %0 = vector.load %arg1[%c0, %c0_0, %c0_1] : memref<2x16x32xf32, #tpu.memory_space<vmem>>, vector<2x16x32xf32>
    %1 = vector.shape_cast %0 : vector<2x16x32xf32> to vector<32x32xf32>
    %c0_2 = arith.constant 0 : index
    %c0_3 = arith.constant 0 : index
    %2 = vector.load %arg7[%c0_2, %c0_3] : memref<8x128xf32, #tpu.memory_space<vmem>>, vector<1x128xf32>
    %c1 = arith.constant 1 : index
    %c0_4 = arith.constant 0 : index
    %3 = vector.load %arg7[%c1, %c0_4] : memref<8x128xf32, #tpu.memory_space<vmem>>, vector<1x128xf32>
    %c2 = arith.constant 2 : index
    %c0_5 = arith.constant 0 : index
    %4 = vector.load %arg7[%c2, %c0_5] : memref<8x128xf32, #tpu.memory_space<vmem>>, vector<1x32xf32>
    %c3 = arith.constant 3 : index
    %c0_6 = arith.constant 0 : index
    %5 = vector.load %arg7[%c3, %c0_6] : memref<8x128xf32, #tpu.memory_space<vmem>>, vector<1x128xf32>
    %c4 = arith.constant 4 : index
    %c0_7 = arith.constant 0 : index
    %6 = vector.load %arg7[%c4, %c0_7] : memref<8x128xf32, #tpu.memory_space<vmem>>, vector<1x128xf32>
    %c5 = arith.constant 5 : index
    %c0_8 = arith.constant 0 : index
    %7 = vector.load %arg7[%c5, %c0_8] : memref<8x128xf32, #tpu.memory_space<vmem>>, vector<1x32xf32>
    %c0_9 = arith.constant 0 : index
    %c0_10 = arith.constant 0 : index
    %8 = vector.load %arg2[%c0_9, %c0_10] : memref<32x384xf32, #tpu.memory_space<vmem>>, vector<32x384xf32>
    %cst = arith.constant dense<0.000000e+00> : vector<32x384xf32>
    %9 = tpu.matmul %1, %8, %cst {dimension_numbers = #tpu.dot_dimension_numbers<[1], [0], [0], [1], [0, 0, 1, 1], [], []>} : vector<32x32xf32>, vector<32x384xf32>, vector<32x384xf32> -> vector<32x384xf32>
    %10 = vector.extract_strided_slice %9 {offsets = [0, 0], sizes = [32, 128], strides = [1, 1]} : vector<32x384xf32> to vector<32x128xf32>
    %11 = vector.broadcast %2 : vector<1x128xf32> to vector<32x128xf32>
    %12 = arith.addf %10, %11 : vector<32x128xf32>
    %cst_11 = arith.constant 0.000000e+00 : f32
    %13 = vector.broadcast %cst_11 : f32 to vector<32x128xf32>
    %14 = arith.maximumf %12, %13 : vector<32x128xf32>
    %15 = vector.extract_strided_slice %9 {offsets = [0, 128], sizes = [32, 128], strides = [1, 1]} : vector<32x384xf32> to vector<32x128xf32>
    %16 = vector.broadcast %5 : vector<1x128xf32> to vector<32x128xf32>
    %17 = arith.addf %15, %16 : vector<32x128xf32>
    %18 = vector.extract_strided_slice %9 {offsets = [0, 256], sizes = [32, 128], strides = [1, 1]} : vector<32x384xf32> to vector<32x128xf32>
    %19 = tpu.iota {dimensions = array<i32: 0>} : vector<32x1xi32>
    %c16_i32 = arith.constant 16 : i32
    %c0_i32 = arith.constant 0 : i32
    %20 = arith.cmpi eq, %c16_i32, %c0_i32 : i32
    %c1_i32 = arith.constant 1 : i32
    %21 = arith.select %20, %c1_i32, %c16_i32 : i32
    %22 = vector.broadcast %21 : i32 to vector<32x1xi32>
    %23 = arith.remsi %19, %22 : vector<32x1xi32>
    %c0_i32_12 = arith.constant 0 : i32
    %24 = vector.broadcast %c0_i32_12 : i32 to vector<32x1xi32>
    %25 = arith.cmpi ne, %23, %24 : vector<32x1xi32>
    %c0_i32_13 = arith.constant 0 : i32
    %26 = vector.broadcast %c0_i32_13 : i32 to vector<32x1xi32>
    %27 = arith.cmpi slt, %23, %26 : vector<32x1xi32>
    %c0_i32_14 = arith.constant 0 : i32
    %28 = arith.cmpi slt, %21, %c0_i32_14 : i32
    %29 = vector.broadcast %28 : i1 to vector<32x1xi1>
    %30 = vector.broadcast %29 : vector<32x1xi1> to vector<32x1xi1>
    %31 = arith.xori %27, %30 : vector<32x1xi1>
    %32 = arith.andi %31, %25 : vector<32x1xi1>
    %33 = vector.broadcast %21 : i32 to vector<32x1xi32>
    %34 = arith.addi %23, %33 : vector<32x1xi32>
    %35 = arith.select %32, %34, %23 : vector<32x1xi1>, vector<32x1xi32>
    %c0_i32_15 = arith.constant 0 : i32
    %36 = vector.broadcast %c0_i32_15 : i32 to vector<32x1xi32>
    %37 = arith.cmpi eq, %35, %36 : vector<32x1xi32>
    %c1_i32_16 = arith.constant 1 : i32
    %38 = tpu.dynamic_rotate %14 by %c1_i32_16 dim 0 : vector<32x128xf32>, i32 -> vector<32x128xf32>
    %cst_17 = arith.constant 0.000000e+00 : f32
    %39 = vector.shape_cast %37 : vector<32x1xi1> to vector<32x1xi1>
    %40 = vector.broadcast %39 : vector<32x1xi1> to vector<32x128xi1>
    %41 = vector.broadcast %cst_17 : f32 to vector<32x128xf32>
    %42 = arith.select %40, %41, %38 : vector<32x128xi1>, vector<32x128xf32>
    %c16_i32_18 = arith.constant 16 : i32
    %c0_i32_19 = arith.constant 0 : i32
    %43 = arith.cmpi eq, %c16_i32_18, %c0_i32_19 : i32
    %c1_i32_20 = arith.constant 1 : i32
    %44 = arith.select %43, %c1_i32_20, %c16_i32_18 : i32
    %45 = vector.broadcast %44 : i32 to vector<32x1xi32>
    %46 = arith.remsi %19, %45 : vector<32x1xi32>
    %c0_i32_21 = arith.constant 0 : i32
    %47 = vector.broadcast %c0_i32_21 : i32 to vector<32x1xi32>
    %48 = arith.cmpi ne, %46, %47 : vector<32x1xi32>
    %c0_i32_22 = arith.constant 0 : i32
    %49 = vector.broadcast %c0_i32_22 : i32 to vector<32x1xi32>
    %50 = arith.cmpi slt, %46, %49 : vector<32x1xi32>
    %c0_i32_23 = arith.constant 0 : i32
    %51 = arith.cmpi slt, %44, %c0_i32_23 : i32
    %52 = vector.broadcast %51 : i1 to vector<32x1xi1>
    %53 = vector.broadcast %52 : vector<32x1xi1> to vector<32x1xi1>
    %54 = arith.xori %50, %53 : vector<32x1xi1>
    %55 = arith.andi %54, %48 : vector<32x1xi1>
    %56 = vector.broadcast %44 : i32 to vector<32x1xi32>
    %57 = arith.addi %46, %56 : vector<32x1xi32>
    %58 = arith.select %55, %57, %46 : vector<32x1xi1>, vector<32x1xi32>
    %c15_i32 = arith.constant 15 : i32
    %59 = vector.broadcast %c15_i32 : i32 to vector<32x1xi32>
    %60 = arith.cmpi eq, %58, %59 : vector<32x1xi32>
    %c31_i32 = arith.constant 31 : i32
    %61 = tpu.dynamic_rotate %14 by %c31_i32 dim 0 : vector<32x128xf32>, i32 -> vector<32x128xf32>
    %cst_24 = arith.constant 0.000000e+00 : f32
    %62 = vector.shape_cast %60 : vector<32x1xi1> to vector<32x1xi1>
    %63 = vector.broadcast %62 : vector<32x1xi1> to vector<32x128xi1>
    %64 = vector.broadcast %cst_24 : f32 to vector<32x128xf32>
    %65 = arith.select %63, %64, %61 : vector<32x128xi1>, vector<32x128xf32>
    %c0_25 = arith.constant 0 : index
    %c0_26 = arith.constant 0 : index
    %c0_27 = arith.constant 0 : index
    %66 = vector.load %arg3[%c0_25, %c0_26, %c0_27] : memref<3x128x128xf32, #tpu.memory_space<vmem>>, vector<1x128x128xf32>
    %67 = vector.shape_cast %66 : vector<1x128x128xf32> to vector<128x128xf32>
    %cst_28 = arith.constant dense<0.000000e+00> : vector<32x128xf32>
    %68 = tpu.matmul %42, %67, %cst_28 {dimension_numbers = #tpu.dot_dimension_numbers<[1], [0], [0], [1], [0, 0, 1, 1], [], []>} : vector<32x128xf32>, vector<128x128xf32>, vector<32x128xf32> -> vector<32x128xf32>
    %c1_29 = arith.constant 1 : index
    %c0_30 = arith.constant 0 : index
    %c0_31 = arith.constant 0 : index
    %69 = vector.load %arg3[%c1_29, %c0_30, %c0_31] : memref<3x128x128xf32, #tpu.memory_space<vmem>>, vector<1x128x128xf32>
    %70 = vector.shape_cast %69 : vector<1x128x128xf32> to vector<128x128xf32>
    %cst_32 = arith.constant dense<0.000000e+00> : vector<32x128xf32>
    %71 = tpu.matmul %14, %70, %cst_32 {dimension_numbers = #tpu.dot_dimension_numbers<[1], [0], [0], [1], [0, 0, 1, 1], [], []>} : vector<32x128xf32>, vector<128x128xf32>, vector<32x128xf32> -> vector<32x128xf32>
    %72 = arith.addf %68, %71 : vector<32x128xf32>
    %c2_33 = arith.constant 2 : index
    %c0_34 = arith.constant 0 : index
    %c0_35 = arith.constant 0 : index
    %73 = vector.load %arg3[%c2_33, %c0_34, %c0_35] : memref<3x128x128xf32, #tpu.memory_space<vmem>>, vector<1x128x128xf32>
    %74 = vector.shape_cast %73 : vector<1x128x128xf32> to vector<128x128xf32>
    %cst_36 = arith.constant dense<0.000000e+00> : vector<32x128xf32>
    %75 = tpu.matmul %65, %74, %cst_36 {dimension_numbers = #tpu.dot_dimension_numbers<[1], [0], [0], [1], [0, 0, 1, 1], [], []>} : vector<32x128xf32>, vector<128x128xf32>, vector<32x128xf32> -> vector<32x128xf32>
    %76 = arith.addf %72, %75 : vector<32x128xf32>
    %77 = vector.broadcast %3 : vector<1x128xf32> to vector<32x128xf32>
    %78 = arith.addf %76, %77 : vector<32x128xf32>
    %cst_37 = arith.constant 0.000000e+00 : f32
    %79 = vector.broadcast %cst_37 : f32 to vector<32x128xf32>
    %80 = arith.maximumf %78, %79 : vector<32x128xf32>
    %c0_38 = arith.constant 0 : index
    %c0_39 = arith.constant 0 : index
    %81 = vector.load %arg4[%c0_38, %c0_39] : memref<128x32xf32, #tpu.memory_space<vmem>>, vector<128x32xf32>
    %cst_40 = arith.constant dense<0.000000e+00> : vector<32x32xf32>
    %82 = tpu.matmul %80, %81, %cst_40 {dimension_numbers = #tpu.dot_dimension_numbers<[1], [0], [0], [1], [0, 0, 1, 1], [], []>} : vector<32x128xf32>, vector<128x32xf32>, vector<32x32xf32> -> vector<32x32xf32>
    %83 = vector.broadcast %4 : vector<1x32xf32> to vector<32x32xf32>
    %84 = arith.addf %82, %83 : vector<32x32xf32>
    "tpu.trace_start"() <{level = 10 : i32, message = "bmc,bnc->bmn"}> : () -> ()
    %cst_41 = arith.constant dense<0.000000e+00> : vector<2x16x16xf32>
    %85 = tpu.matmul %0, %0, %cst_41 {dimension_numbers = #tpu.dot_dimension_numbers<[2], [2], [1], [1], [0, 0, 0, 1, 1, 1], [0], [0]>} : vector<2x16x32xf32>, vector<2x16x32xf32>, vector<2x16x16xf32> -> vector<2x16x16xf32>
    "tpu.trace_stop"() : () -> ()
    %86 = tpu.iota {dimensions = array<i32: 1>} : vector<2x16x16xi32>
    %87 = tpu.iota {dimensions = array<i32: 2>} : vector<2x16x16xi32>
    %88 = arith.cmpi eq, %86, %87 : vector<2x16x16xi32>
    %cst_42 = arith.constant 0.000000e+00 : f32
    %89 = vector.broadcast %cst_42 : f32 to vector<2x16x16xf32>
    %90 = arith.select %88, %85, %89 : vector<2x16x16xi1>, vector<2x16x16xf32>
    %cst_43 = arith.constant dense<0.000000e+00> : vector<2x16xf32>
    %91 = vector.multi_reduction <add>, %90, %cst_43 [1] : vector<2x16x16xf32> to vector<2x16xf32>
    %92 = vector.shape_cast %91 : vector<2x16xf32> to vector<2x1x16xf32>
    %cst_44 = arith.constant 2.000000e+00 : f32
    %93 = vector.broadcast %cst_44 : f32 to vector<2x16x16xf32>
    %94 = arith.mulf %93, %85 : vector<2x16x16xf32>
    %95 = vector.broadcast %92 : vector<2x1x16xf32> to vector<2x16x16xf32>
    %96 = arith.subf %94, %95 : vector<2x16x16xf32>
    %97 = vector.shape_cast %18 : vector<32x128xf32> to vector<2x16x128xf32>
    %c0_45 = arith.constant 0 : index
    %c0_46 = arith.constant 0 : index
    %98 = vector.load %arg5[%c0_45, %c0_46] : memref<128x128xf32, #tpu.memory_space<vmem>>, vector<128x128xf32>
    %c0_47 = arith.constant 0 : index
    %c0_48 = arith.constant 0 : index
    %99 = vector.load %arg6[%c0_47, %c0_48] : memref<128x32xf32, #tpu.memory_space<vmem>>, vector<128x32xf32>
    %100 = vector.shape_cast %6 : vector<1x128xf32> to vector<1x128xf32>
    %101 = vector.broadcast %100 : vector<1x128xf32> to vector<32x128xf32>
    %cst_49 = arith.constant dense<0xFF800000> : vector<2x16xf32>
    %102 = vector.multi_reduction <maximumf>, %96, %cst_49 [2] : vector<2x16x16xf32> to vector<2x16xf32>
    %103 = vector.shape_cast %102 : vector<2x16xf32> to vector<2x16x1xf32>
    %104 = vector.broadcast %103 : vector<2x16x1xf32> to vector<2x16x16xf32>
    %105 = arith.cmpf oeq, %96, %104 : vector<2x16x16xf32>
    %c16_i32_50 = arith.constant 16 : i32
    %106 = vector.broadcast %c16_i32_50 : i32 to vector<2x16x16xi32>
    %107 = arith.select %105, %87, %106 : vector<2x16x16xi1>, vector<2x16x16xi32>
    %cst_51 = arith.constant dense<2147483647> : vector<2x16xi32>
    %108 = vector.multi_reduction <minsi>, %107, %cst_51 [2] : vector<2x16x16xi32> to vector<2x16xi32>
    %109 = vector.shape_cast %108 : vector<2x16xi32> to vector<2x16x1xi32>
    %110 = vector.broadcast %109 : vector<2x16x1xi32> to vector<2x16x16xi32>
    %111 = arith.cmpi eq, %87, %110 : vector<2x16x16xi32>
    %cst_52 = arith.constant -3.40282347E+38 : f32
    %112 = vector.broadcast %cst_52 : f32 to vector<2x16x16xf32>
    %113 = arith.select %111, %112, %96 : vector<2x16x16xi1>, vector<2x16x16xf32>
    %114 = arith.extui %111 : vector<2x16x16xi1> to vector<2x16x16xi32>
    %115 = arith.sitofp %114 : vector<2x16x16xi32> to vector<2x16x16xf32>
    "tpu.trace_start"() <{level = 10 : i32, message = "bmn,bnw->bmw"}> : () -> ()
    %cst_53 = arith.constant dense<0.000000e+00> : vector<2x16x128xf32>
    %116 = tpu.matmul %115, %97, %cst_53 {dimension_numbers = #tpu.dot_dimension_numbers<[2], [1], [1], [2], [0, 0, 0, 1, 1, 2], [0], [0]>} : vector<2x16x16xf32>, vector<2x16x128xf32>, vector<2x16x128xf32> -> vector<2x16x128xf32>
    "tpu.trace_stop"() : () -> ()
    %117 = vector.shape_cast %116 : vector<2x16x128xf32> to vector<32x128xf32>
    %118 = arith.addf %117, %17 : vector<32x128xf32>
    %cst_54 = arith.constant 0.000000e+00 : f32
    %119 = vector.broadcast %cst_54 : f32 to vector<32x128xf32>
    %120 = arith.maximumf %118, %119 : vector<32x128xf32>
    %cst_55 = arith.constant dense<0.000000e+00> : vector<32x128xf32>
    %121 = tpu.matmul %120, %98, %cst_55 {dimension_numbers = #tpu.dot_dimension_numbers<[1], [0], [0], [1], [0, 0, 1, 1], [], []>} : vector<32x128xf32>, vector<128x128xf32>, vector<32x128xf32> -> vector<32x128xf32>
    %122 = arith.addf %121, %101 : vector<32x128xf32>
    %cst_56 = arith.constant 0.000000e+00 : f32
    %123 = vector.broadcast %cst_56 : f32 to vector<32x128xf32>
    %124 = arith.maximumf %122, %123 : vector<32x128xf32>
    %cst_57 = arith.constant dense<0.000000e+00> : vector<32x32xf32>
    %125 = tpu.matmul %124, %99, %cst_57 {dimension_numbers = #tpu.dot_dimension_numbers<[1], [0], [0], [1], [0, 0, 1, 1], [], []>} : vector<32x128xf32>, vector<128x32xf32>, vector<32x32xf32> -> vector<32x32xf32>
    %cst_58 = arith.constant dense<0xFF800000> : vector<2x16xf32>
    %126 = vector.multi_reduction <maximumf>, %113, %cst_58 [2] : vector<2x16x16xf32> to vector<2x16xf32>
    %127 = vector.shape_cast %126 : vector<2x16xf32> to vector<2x16x1xf32>
    %128 = vector.broadcast %127 : vector<2x16x1xf32> to vector<2x16x16xf32>
    %129 = arith.cmpf oeq, %113, %128 : vector<2x16x16xf32>
    %c16_i32_59 = arith.constant 16 : i32
    %130 = vector.broadcast %c16_i32_59 : i32 to vector<2x16x16xi32>
    %131 = arith.select %129, %87, %130 : vector<2x16x16xi1>, vector<2x16x16xi32>
    %cst_60 = arith.constant dense<2147483647> : vector<2x16xi32>
    %132 = vector.multi_reduction <minsi>, %131, %cst_60 [2] : vector<2x16x16xi32> to vector<2x16xi32>
    %133 = vector.shape_cast %132 : vector<2x16xi32> to vector<2x16x1xi32>
    %134 = vector.broadcast %133 : vector<2x16x1xi32> to vector<2x16x16xi32>
    %135 = arith.cmpi eq, %87, %134 : vector<2x16x16xi32>
    %cst_61 = arith.constant -3.40282347E+38 : f32
    %136 = vector.broadcast %cst_61 : f32 to vector<2x16x16xf32>
    %137 = arith.select %135, %136, %113 : vector<2x16x16xi1>, vector<2x16x16xf32>
    %138 = arith.extui %135 : vector<2x16x16xi1> to vector<2x16x16xi32>
    %139 = arith.sitofp %138 : vector<2x16x16xi32> to vector<2x16x16xf32>
    "tpu.trace_start"() <{level = 10 : i32, message = "bmn,bnw->bmw"}> : () -> ()
    %cst_62 = arith.constant dense<0.000000e+00> : vector<2x16x128xf32>
    %140 = tpu.matmul %139, %97, %cst_62 {dimension_numbers = #tpu.dot_dimension_numbers<[2], [1], [1], [2], [0, 0, 0, 1, 1, 2], [0], [0]>} : vector<2x16x16xf32>, vector<2x16x128xf32>, vector<2x16x128xf32> -> vector<2x16x128xf32>
    "tpu.trace_stop"() : () -> ()
    %141 = vector.shape_cast %140 : vector<2x16x128xf32> to vector<32x128xf32>
    %142 = arith.addf %141, %17 : vector<32x128xf32>
    %cst_63 = arith.constant 0.000000e+00 : f32
    %143 = vector.broadcast %cst_63 : f32 to vector<32x128xf32>
    %144 = arith.maximumf %142, %143 : vector<32x128xf32>
    %cst_64 = arith.constant dense<0.000000e+00> : vector<32x128xf32>
    %145 = tpu.matmul %144, %98, %cst_64 {dimension_numbers = #tpu.dot_dimension_numbers<[1], [0], [0], [1], [0, 0, 1, 1], [], []>} : vector<32x128xf32>, vector<128x128xf32>, vector<32x128xf32> -> vector<32x128xf32>
    %146 = arith.addf %145, %101 : vector<32x128xf32>
    %cst_65 = arith.constant 0.000000e+00 : f32
    %147 = vector.broadcast %cst_65 : f32 to vector<32x128xf32>
    %148 = arith.maximumf %146, %147 : vector<32x128xf32>
    %cst_66 = arith.constant dense<0.000000e+00> : vector<32x32xf32>
    %149 = tpu.matmul %148, %99, %cst_66 {dimension_numbers = #tpu.dot_dimension_numbers<[1], [0], [0], [1], [0, 0, 1, 1], [], []>} : vector<32x128xf32>, vector<128x32xf32>, vector<32x32xf32> -> vector<32x32xf32>
    %150 = arith.maximumf %125, %149 : vector<32x32xf32>
    %cst_67 = arith.constant dense<0xFF800000> : vector<2x16xf32>
    %151 = vector.multi_reduction <maximumf>, %137, %cst_67 [2] : vector<2x16x16xf32> to vector<2x16xf32>
    %152 = vector.shape_cast %151 : vector<2x16xf32> to vector<2x16x1xf32>
    %153 = vector.broadcast %152 : vector<2x16x1xf32> to vector<2x16x16xf32>
    %154 = arith.cmpf oeq, %137, %153 : vector<2x16x16xf32>
    %c16_i32_68 = arith.constant 16 : i32
    %155 = vector.broadcast %c16_i32_68 : i32 to vector<2x16x16xi32>
    %156 = arith.select %154, %87, %155 : vector<2x16x16xi1>, vector<2x16x16xi32>
    %cst_69 = arith.constant dense<2147483647> : vector<2x16xi32>
    %157 = vector.multi_reduction <minsi>, %156, %cst_69 [2] : vector<2x16x16xi32> to vector<2x16xi32>
    %158 = vector.shape_cast %157 : vector<2x16xi32> to vector<2x16x1xi32>
    %159 = vector.broadcast %158 : vector<2x16x1xi32> to vector<2x16x16xi32>
    %160 = arith.cmpi eq, %87, %159 : vector<2x16x16xi32>
    %161 = arith.extui %160 : vector<2x16x16xi1> to vector<2x16x16xi32>
    %162 = arith.sitofp %161 : vector<2x16x16xi32> to vector<2x16x16xf32>
    "tpu.trace_start"() <{level = 10 : i32, message = "bmn,bnw->bmw"}> : () -> ()
    %cst_70 = arith.constant dense<0.000000e+00> : vector<2x16x128xf32>
    %163 = tpu.matmul %162, %97, %cst_70 {dimension_numbers = #tpu.dot_dimension_numbers<[2], [1], [1], [2], [0, 0, 0, 1, 1, 2], [0], [0]>} : vector<2x16x16xf32>, vector<2x16x128xf32>, vector<2x16x128xf32> -> vector<2x16x128xf32>
    "tpu.trace_stop"() : () -> ()
    %164 = vector.shape_cast %163 : vector<2x16x128xf32> to vector<32x128xf32>
    %165 = arith.addf %164, %17 : vector<32x128xf32>
    %cst_71 = arith.constant 0.000000e+00 : f32
    %166 = vector.broadcast %cst_71 : f32 to vector<32x128xf32>
    %167 = arith.maximumf %165, %166 : vector<32x128xf32>
    %cst_72 = arith.constant dense<0.000000e+00> : vector<32x128xf32>
    %168 = tpu.matmul %167, %98, %cst_72 {dimension_numbers = #tpu.dot_dimension_numbers<[1], [0], [0], [1], [0, 0, 1, 1], [], []>} : vector<32x128xf32>, vector<128x128xf32>, vector<32x128xf32> -> vector<32x128xf32>
    %169 = arith.addf %168, %101 : vector<32x128xf32>
    %cst_73 = arith.constant 0.000000e+00 : f32
    %170 = vector.broadcast %cst_73 : f32 to vector<32x128xf32>
    %171 = arith.maximumf %169, %170 : vector<32x128xf32>
    %cst_74 = arith.constant dense<0.000000e+00> : vector<32x32xf32>
    %172 = tpu.matmul %171, %99, %cst_74 {dimension_numbers = #tpu.dot_dimension_numbers<[1], [0], [0], [1], [0, 0, 1, 1], [], []>} : vector<32x128xf32>, vector<128x32xf32>, vector<32x32xf32> -> vector<32x32xf32>
    %173 = arith.maximumf %150, %172 : vector<32x32xf32>
    %174 = vector.broadcast %7 : vector<1x32xf32> to vector<32x32xf32>
    %175 = arith.addf %173, %174 : vector<32x32xf32>
    %176 = arith.addf %84, %1 : vector<32x32xf32>
    %177 = arith.addf %176, %175 : vector<32x32xf32>
    %cst_75 = arith.constant 0.000000e+00 : f32
    %178 = vector.broadcast %cst_75 : f32 to vector<32x32xf32>
    %179 = arith.maximumf %177, %178 : vector<32x32xf32>
    %180 = vector.shape_cast %179 : vector<32x32xf32> to vector<2x16x32xf32>
    %c0_76 = arith.constant 0 : index
    %c0_77 = arith.constant 0 : index
    %c0_78 = arith.constant 0 : index
    %181 = vector.load %arg8[%c0_76, %c0_77, %c0_78] : memref<2x16x32xf32, #tpu.memory_space<vmem>>, vector<2x16x32xf32>
    tpu.vector_store %arg8[%c0_76, %c0_77, %c0_78], %180 {strides = array<i32>} : memref<2x16x32xf32, #tpu.memory_space<vmem>>, vector<2x16x32xf32>,
    return
  }
  func.func @transform_0(%arg0: i32) -> (i32, i32, i32) {
    %c0_i32 = arith.constant 0 : i32
    %c0_i32_0 = arith.constant 0 : i32
    %c0_i32_1 = arith.constant 0 : i32
    return %arg0, %c0_i32, %c0_i32_0 : i32, i32, i32
  }
  func.func @transform_1(%arg0: i32) -> (i32, i32) {
    %c0_i32 = arith.constant 0 : i32
    %c0_i32_0 = arith.constant 0 : i32
    %c0_i32_1 = arith.constant 0 : i32
    return %c0_i32, %c0_i32_0 : i32, i32
  }
  func.func @transform_2(%arg0: i32) -> (i32, i32, i32) {
    %c0_i32 = arith.constant 0 : i32
    %c0_i32_0 = arith.constant 0 : i32
    %c0_i32_1 = arith.constant 0 : i32
    %c0_i32_2 = arith.constant 0 : i32
    return %c0_i32, %c0_i32_0, %c0_i32_1 : i32, i32, i32
  }
  func.func @transform_3(%arg0: i32) -> (i32, i32) {
    %c0_i32 = arith.constant 0 : i32
    %c0_i32_0 = arith.constant 0 : i32
    %c0_i32_1 = arith.constant 0 : i32
    return %c0_i32, %c0_i32_0 : i32, i32
  }
  func.func @transform_4(%arg0: i32) -> (i32, i32) {
    %c0_i32 = arith.constant 0 : i32
    %c0_i32_0 = arith.constant 0 : i32
    %c0_i32_1 = arith.constant 0 : i32
    return %c0_i32, %c0_i32_0 : i32, i32
  }
  func.func @transform_5(%arg0: i32) -> (i32, i32) {
    %c0_i32 = arith.constant 0 : i32
    %c0_i32_0 = arith.constant 0 : i32
    %c0_i32_1 = arith.constant 0 : i32
    return %c0_i32, %c0_i32_0 : i32, i32
  }
  func.func @transform_6(%arg0: i32) -> (i32, i32) {
    %c0_i32 = arith.constant 0 : i32
    %c0_i32_0 = arith.constant 0 : i32
    %c0_i32_1 = arith.constant 0 : i32
    return %c0_i32, %c0_i32_0 : i32, i32
  }
  func.func @transform_7(%arg0: i32) -> (i32, i32, i32) {
    %c0_i32 = arith.constant 0 : i32
    %c0_i32_0 = arith.constant 0 : i32
    %c0_i32_1 = arith.constant 0 : i32
    return %arg0, %c0_i32, %c0_i32_0 : i32, i32, i32
  }
}

</mosaic_0001>

<llo_original>
// kernel: tpu_custom_call.1
$region0: #{tpu_custom_call.1}
  #allocation0 [shape = 'u32[]', space=smem, size = 0x4, offset = 0x4, fixed_abs, tag = 'smem constant byte address 0x4 - core index']
  #allocation1 [shape = 'u32[144,128]{1,0:T(1,128)}', space=vmem, size = 0x12000, scoped, tag = 'internal scratch']
  %s0 = inlined_call_operand.vmem [shape: f32[2,16,32], index: 0, kind: input, shape index: {}]
  %s1 = inlined_call_operand.vmem [shape: f32[32,384], index: 1, kind: input, shape index: {}]
  %s2 = inlined_call_operand.hbm [shape: f32[3,128,128], index: 2, kind: input, shape index: {}]
  %s3 = inlined_call_operand.vmem [shape: f32[128,32], index: 3, kind: input, shape index: {}]
  %s4 = inlined_call_operand.vmem [shape: f32[128,128], index: 4, kind: input, shape index: {}]
  %s5 = inlined_call_operand.vmem [shape: f32[128,32], index: 5, kind: input, shape index: {}]
  %s6 = inlined_call_operand.vmem [shape: f32[8,128], index: 6, kind: input, shape index: {}]
  %s7 = inlined_call_operand.hbm [shape: f32[2,16,32], index: 7, kind: output, shape index: {}]
  %s8 = sld [smem:[#allocation0]]
  $region42: #{tpu_custom_call.1} parent=0
    _
  %s10 = ssub.s32 1, %s8
  %s11 = scalar_select 0, %s10, %s8
  $region1: #{tpu_custom_call.1} parent=0
    #allocation2 [shape = 'u8[196608]{0}', space=vmem, size = 0x30000, scoped, tag = 'input window, operand 2, single buffered']
    #allocation3 [shape = 's32[1]{0}', space=sflag, size = 0x4, scoped, tag = 'scoped memory for tpu_custom_call.1']
    #allocation4 [shape = 's32[1]{0}', space=sflag, size = 0x4, scoped, tag = 'scoped memory for tpu_custom_call.1']
    #allocation5 [shape = 'u8[16384]{0}', space=vmem, size = 0x4000, scoped, tag = 'output window, operand 0, single buffered']
    %12 = vsyncpa [#allocation3], 0
    %13 = vsyncpa [#allocation4], 0
    // Predicated region
    $region2: #{tpu_custom_call.1} parent=1 // pred_check
      _
    $region3: #{tpu_custom_call.1} parent=1 // pred_check_branch
      %15 = sbr.rel (0) target = $region5
    $region4: #{tpu_custom_call.1} parent=1 // pred_region
      _
    $region5: #{tpu_custom_call.1} parent=1 // pred_fallthru
      _
    // Predicated region
    $region6: #{tpu_custom_call.1} parent=1 // pred_check
      _
    $region7: #{tpu_custom_call.1} parent=1 // pred_check_branch
      %17 = sbr.rel (0) target = $region9
    $region8: #{tpu_custom_call.1} parent=1 // pred_region
      _
    $region9: #{tpu_custom_call.1} parent=1 // pred_fallthru
      _
    // Predicated region
    $region10: #{tpu_custom_call.1} parent=1 // pred_check
      _
    $region11: #{tpu_custom_call.1} parent=1 // pred_check_branch
      %19 = sbr.rel (0) target = $region13
    $region12: #{tpu_custom_call.1} parent=1 // pred_region
      %s21 = ssub.s32 6144, 6144
      %22 = vsyncadd [#allocation3], %s21
      %s23 = sshll.u32 [#allocation2], 4
      %s24 = int_to_ptr.vmem [resolvable:$true] %s23
      %29 = dma.hbm_to_vmem [thread:$0]  %s2, 6144, %s24, [#allocation3], 128, 128, 8
    $region13: #{tpu_custom_call.1} parent=1 // pred_fallthru
      _
    // Predicated region
    $region14: #{tpu_custom_call.1} parent=1 // pred_check
      _
    $region15: #{tpu_custom_call.1} parent=1 // pred_check_branch
      %31 = sbr.rel (0) target = $region17
    $region16: #{tpu_custom_call.1} parent=1 // pred_region
      _
    $region17: #{tpu_custom_call.1} parent=1 // pred_fallthru
      _
    // Predicated region
    $region18: #{tpu_custom_call.1} parent=1 // pred_check
      _
    $region19: #{tpu_custom_call.1} parent=1 // pred_check_branch
      %33 = sbr.rel (0) target = $region21
    $region20: #{tpu_custom_call.1} parent=1 // pred_region
      _
    $region21: #{tpu_custom_call.1} parent=1 // pred_fallthru
      _
    // Predicated region
    $region22: #{tpu_custom_call.1} parent=1 // pred_check
      _
    $region23: #{tpu_custom_call.1} parent=1 // pred_check_branch
      %35 = sbr.rel (0) target = $region25
    $region24: #{tpu_custom_call.1} parent=1 // pred_region
      _
    $region25: #{tpu_custom_call.1} parent=1 // pred_fallthru
      _
    // Predicated region
    $region26: #{tpu_custom_call.1} parent=1 // pred_check
      _
    $region27: #{tpu_custom_call.1} parent=1 // pred_check_branch
      %37 = sbr.rel (0) target = $region29
    $region28: #{tpu_custom_call.1} parent=1 // pred_region
      _
    $region29: #{tpu_custom_call.1} parent=1 // pred_fallthru
      _
    // Predicated region
    $region30: #{tpu_custom_call.1} parent=1 // pred_check
      _
    $region31: #{tpu_custom_call.1} parent=1 // pred_check_branch
      %39 = sbr.rel (0) target = $region33
    $region32: #{tpu_custom_call.1} parent=1 // pred_region
      %40 = dma.done [#allocation3], 6144
    $region33: #{tpu_custom_call.1} parent=1 // pred_fallthru
      _
    %v41 = vld [vmem:[%s0] sm:$0xff]
    %v42 = vld [vmem:[%s0 + $0x8] sm:$0xff]
    %v43 = vld [vmem:[%s0 + $0x10] sm:$0xff]
    %v44 = vld [vmem:[%s0 + $0x18] sm:$0xff]
    %v45 = vld [vmem:[%s6] sm:$0x1]
    %v46 = vld [vmem:[%s6 + $0x1] sm:$0x1]
    %v47 = vld [vmem:[%s6 + $0x2] sm:$0x1]
    %v48 = vld [vmem:[%s6 + $0x3] sm:$0x1]
    %v49 = vld [vmem:[%s6 + $0x4] sm:$0x1]
    %v50 = vld [vmem:[%s6 + $0x5] sm:$0x1]
    %v51 = vld [vmem:[%s1] sm:$0xff]
    %v52 = vld [vmem:[%s1 + $0x8] sm:$0xff]
    %v53 = vld [vmem:[%s1 + $0x10] sm:$0xff]
    %v54 = vld [vmem:[%s1 + $0x18] sm:$0xff]
    %v55 = vld [vmem:[%s1 + $0x20] sm:$0xff]
    %v56 = vld [vmem:[%s1 + $0x28] sm:$0xff]
    %v57 = vld [vmem:[%s1 + $0x30] sm:$0xff]
    %v58 = vld [vmem:[%s1 + $0x38] sm:$0xff]
    %v59 = vld [vmem:[%s1 + $0x40] sm:$0xff]
    %v60 = vld [vmem:[%s1 + $0x48] sm:$0xff]
    %v61 = vld [vmem:[%s1 + $0x50] sm:$0xff]
    %v62 = vld [vmem:[%s1 + $0x58] sm:$0xff]
    %vm63 = vcmask 261120
    %v65 = vsel %vm63, %v41, 0
    %v68 = vsel %vm63, %v42, 0
    %v71 = vsel %vm63, %v43, 0
    %v74 = vsel %vm63, %v44, 0
    %76 = vmatprep.subr.mxu0 %v52
    %77 = vmatpush1.msra.mxu0 %v51
    %78 = vmatprep.subr.mxu0 %v55
    %79 = vmatpush1.msra.mxu0 %v54
    %80 = vmatprep.subr.mxu0 %v58
    %81 = vmatpush1.msra.mxu0 %v57
    %82 = vmatprep.subr.mxu0 %v61
    %83 = vmatpush1.msra.mxu0 %v60
    %84 = vmatprep.subr.mxu0 0.0
    %85 = vmatpush1.msra.mxu0 0.0
    %86 = vmatprep.subr.mxu0 0.0
    %87 = vmatpush1.msra.mxu0 0.0
    %88 = vmatprep.subr.mxu0 0.0
    %89 = vmatpush1.msra.mxu0 0.0
    %90 = vmatprep.subr.mxu0 0.0
    %91 = vmatpush1.msra.mxu0 0.0
    %92 = vmatprep.subr.mxu0 0.0
    %93 = vmatpush1.msra.mxu0 0.0
    %94 = vmatprep.subr.mxu0 0.0
    %95 = vmatpush1.msra.mxu0 0.0
    %96 = vmatprep.subr.mxu0 0.0
    %97 = vmatpush1.msra.mxu0 0.0
    %98 = vmatprep.subr.mxu0 0.0
    %99 = vmatpush1.msra.mxu0 0.0
    %100 = vmatprep.subr.mxu0 0.0
    %101 = vmatpush1.msra.mxu0 0.0
    %102 = vmatprep.subr.mxu0 0.0
    %103 = vmatpush1.msra.mxu0 0.0
    %104 = vmatprep.subr.mxu0 0.0
    %105 = vmatpush1.msra.mxu0 0.0
    %106 = vmatprep.subr.mxu0 0.0
    %107 = vmatpush1.msra.mxu0 0.0
    %108 = vmatprep.subr.mxu0 0.0
    %109 = vmatpush1.msra.mxu0 0.0
    %110 = vmatprep.subr.mxu0 0.0
    %111 = vmatpush1.msra.mxu0 0.0
    %112 = vmatprep.subr.mxu0 0.0
    %113 = vmatpush1.msra.mxu0 0.0
    %114 = vmatprep.subr.mxu0 0.0
    %115 = vmatpush1.msra.mxu0 0.0
    %116 = vmatprep.subr.mxu0 0.0
    %117 = vmatpush1.msra.mxu0 0.0
    %118 = vmatprep.subr.mxu0 0.0
    %119 = vmatpush1.msra.mxu0 0.0
    %120 = vmatprep.subr.mxu0 0.0
    %121 = vmatpush1.msra.mxu0 0.0
    %122 = vmatprep.subr.mxu0 0.0
    %123 = vmatpush1.msra.mxu0 0.0
    %124 = vmatprep.subr.mxu0 0.0
    %125 = vmatpush1.msra.mxu0 0.0
    %126 = vmatprep.subr.mxu0 0.0
    %127 = vmatpush1.msra.mxu0 0.0
    %128 = vmatprep.subr.mxu0 0.0
    %129 = vmatpush1.msra.mxu0 0.0
    %130 = vmatprep.subr.mxu0 0.0
    %131 = vmatpush1.msra.mxu0 0.0
    %132 = vmatprep.subr.mxu0 0.0
    %133 = vmatpush1.msra.mxu0 0.0
    %134 = vmatprep.subr.mxu0 0.0
    %135 = vmatpush1.msra.mxu0 0.0
    %136 = vmatprep.subr.mxu0 0.0
    %137 = vmatpush1.msra.mxu0 0.0
    %138 = vmatprep.subr.mxu0 0.0
    %139 = vmatpush1.msra.mxu0 0.0
    %140 = vmatprep.mubr.f32.mxu0 0.0
    %141 = vmatmul.mubr.f32.gmra.mrb[0].mxu0 %v65
    %v142 = vpop.f32.mrb[0].mxu0
    %v143 = vadd.f32 0.0, %v142
    %v144 = vpop.f32.mrb[0].mxu0
    %v145 = vadd.f32 0.0, %v144
    %146 = vmatprep.mubr.f32.mxu0 0.0
    %147 = vmatmul.mubr.f32.gmra.mrb[0].mxu0 %v68
    %v148 = vpop.f32.mrb[0].mxu0
    %v149 = vadd.f32 0.0, %v148
    %v150 = vpop.f32.mrb[0].mxu0
    %v151 = vadd.f32 0.0, %v150
    %152 = vmatprep.mubr.f32.mxu0 0.0
    %153 = vmatmul.mubr.f32.gmra.mrb[0].mxu0 %v71
    %v154 = vpop.f32.mrb[0].mxu0
    %v155 = vadd.f32 0.0, %v154
    %v156 = vpop.f32.mrb[0].mxu0
    %v157 = vadd.f32 0.0, %v156
    %158 = vmatprep.mubr.f32.mxu0 0.0
    %159 = vmatmul.mubr.f32.gmra.mrb[0].mxu0 %v74
    %v160 = vpop.f32.mrb[0].mxu0
    %v161 = vadd.f32 0.0, %v160
    %v162 = vpop.f32.mrb[0].mxu0
    %v163 = vadd.f32 0.0, %v162
    %164 = vdwg.mxu0
    %165 = vmatprep.subr.mxu0 0.0
    %166 = vmatpush1.msra.mxu0 %v53
    %167 = vmatprep.subr.mxu0 0.0
    %168 = vmatpush1.msra.mxu0 %v56
    %169 = vmatprep.subr.mxu0 0.0
    %170 = vmatpush1.msra.mxu0 %v59
    %171 = vmatprep.subr.mxu0 0.0
    %172 = vmatpush1.msra.mxu0 %v62
    %173 = vmatprep.subr.mxu0 0.0
    %174 = vmatpush1.msra.mxu0 0.0
    %175 = vmatprep.subr.mxu0 0.0
    %176 = vmatpush1.msra.mxu0 0.0
    %177 = vmatprep.subr.mxu0 0.0
    %178 = vmatpush1.msra.mxu0 0.0
    %179 = vmatprep.subr.mxu0 0.0
    %180 = vmatpush1.msra.mxu0 0.0
    %181 = vmatprep.subr.mxu0 0.0
    %182 = vmatpush1.msra.mxu0 0.0
    %183 = vmatprep.subr.mxu0 0.0
    %184 = vmatpush1.msra.mxu0 0.0
    %185 = vmatprep.subr.mxu0 0.0
    %186 = vmatpush1.msra.mxu0 0.0
    %187 = vmatprep.subr.mxu0 0.0
    %188 = vmatpush1.msra.mxu0 0.0
    %189 = vmatprep.subr.mxu0 0.0
    %190 = vmatpush1.msra.mxu0 0.0
    %191 = vmatprep.subr.mxu0 0.0
    %192 = vmatpush1.msra.mxu0 0.0
    %193 = vmatprep.subr.mxu0 0.0
    %194 = vmatpush1.msra.mxu0 0.0
    %195 = vmatprep.subr.mxu0 0.0
    %196 = vmatpush1.msra.mxu0 0.0
    %197 = vmatprep.subr.mxu0 0.0
    %198 = vmatpush1.msra.mxu0 0.0
    %199 = vmatprep.subr.mxu0 0.0
    %200 = vmatpush1.msra.mxu0 0.0
    %201 = vmatprep.subr.mxu0 0.0
    %202 = vmatpush1.msra.mxu0 0.0
    %203 = vmatprep.subr.mxu0 0.0
    %204 = vmatpush1.msra.mxu0 0.0
    %205 = vmatprep.subr.mxu0 0.0
    %206 = vmatpush1.msra.mxu0 0.0
    %207 = vmatprep.subr.mxu0 0.0
    %208 = vmatpush1.msra.mxu0 0.0
    %209 = vmatprep.subr.mxu0 0.0
    %210 = vmatpush1.msra.mxu0 0.0
    %211 = vmatprep.subr.mxu0 0.0
    %212 = vmatpush1.msra.mxu0 0.0
    %213 = vmatprep.subr.mxu0 0.0
    %214 = vmatpush1.msra.mxu0 0.0
    %215 = vmatprep.subr.mxu0 0.0
    %216 = vmatpush1.msra.mxu0 0.0
    %217 = vmatprep.subr.mxu0 0.0
    %218 = vmatpush1.msra.mxu0 0.0
    %219 = vmatprep.subr.mxu0 0.0
    %220 = vmatpush1.msra.mxu0 0.0
    %221 = vmatprep.subr.mxu0 0.0
    %222 = vmatpush1.msra.mxu0 0.0
    %223 = vmatprep.subr.mxu0 0.0
    %224 = vmatpush1.msra.mxu0 0.0
    %225 = vmatprep.subr.mxu0 0.0
    %226 = vmatpush1.msra.mxu0 0.0
    %227 = vmatprep.subr.mxu0 0.0
    %228 = vmatpush1.msra.mxu0 0.0
    %229 = vmatprep.mubr.f32.mxu0 0.0
    %230 = vmatmul.mubr.f32.gmra.mrb[0].mxu0 %v65
    %v231 = vpop.f32.mrb[0].mxu0
    %v232 = vadd.f32 0.0, %v231
    %v233 = vpop.f32.mrb[0].mxu0
    %234 = vmatprep.mubr.f32.mxu0 0.0
    %235 = vmatmul.mubr.f32.gmra.mrb[0].mxu0 %v68
    %v236 = vpop.f32.mrb[0].mxu0
    %v237 = vadd.f32 0.0, %v236
    %v238 = vpop.f32.mrb[0].mxu0
    %239 = vmatprep.mubr.f32.mxu0 0.0
    %240 = vmatmul.mubr.f32.gmra.mrb[0].mxu0 %v71
    %v241 = vpop.f32.mrb[0].mxu0
    %v242 = vadd.f32 0.0, %v241
    %v243 = vpop.f32.mrb[0].mxu0
    %244 = vmatprep.mubr.f32.mxu0 0.0
    %245 = vmatmul.mubr.f32.gmra.mrb[0].mxu0 %v74
    %v246 = vpop.f32.mrb[0].mxu0
    %v247 = vadd.f32 0.0, %v246
    %v248 = vpop.f32.mrb[0].mxu0
    %249 = vdwg.mxu0
    %v250 = vlaneseq
    %v251 = vshrl.u32 %v250, 7
    %v252 = vsub.s32 0, %v251
    %v253 = vrot.slane %v45, %v252
    %v254 = vadd.f32 %v143, %v253
    %v255 = vadd.f32 %v149, %v253
    %v256 = vadd.f32 %v155, %v253
    %v257 = vadd.f32 %v161, %v253
    %v258 = vmax.f32 %v254, 0.0
    %v259 = vmax.f32 %v255, 0.0
    %v260 = vmax.f32 %v256, 0.0
    %v261 = vmax.f32 %v257, 0.0
    %v262 = vlaneseq
    %v263 = vshrl.u32 %v262, 7
    %v264 = vsub.s32 0, %v263
    %v265 = vrot.slane %v48, %v264
    %v266 = vadd.f32 %v145, %v265
    %v267 = vadd.f32 %v151, %v265
    %v268 = vadd.f32 %v157, %v265
    %v269 = vadd.f32 %v163, %v265
    %v270 = vlaneseq
    %v271 = vshrl.u32 %v270, 7
    %v272 = vadd.s32 %v271, 8
    %v273 = vadd.s32 %v271, 16
    %v274 = vadd.s32 %v271, 24
    %vm275 = vcmp.lt.s32.totalorder %v271, 0
    %v276 = vsub.s32 0, %v271
    %v277 = vsel %vm275, %v276, %v271
    %v278 = vshrl.u32 %v277, 4
    %v279 = vand.u32 %v277, 15
    %v280 = vsub.s32 0, %v279
    %v281 = vsel %vm275, %v280, %v279
    %vm282 = vcmp.lt.s32.totalorder %v272, 0
    %v283 = vsub.s32 0, %v272
    %v284 = vsel %vm282, %v283, %v272
    %v285 = vshrl.u32 %v284, 4
    %v286 = vand.u32 %v284, 15
    %v287 = vsub.s32 0, %v286
    %v288 = vsel %vm282, %v287, %v286
    %vm289 = vcmp.lt.s32.totalorder %v273, 0
    %v290 = vsub.s32 0, %v273
    %v291 = vsel %vm289, %v290, %v273
    %v292 = vshrl.u32 %v291, 4
    %v293 = vand.u32 %v291, 15
    %v294 = vsub.s32 0, %v293
    %v295 = vsel %vm289, %v294, %v293
    %vm296 = vcmp.lt.s32.totalorder %v274, 0
    %v297 = vsub.s32 0, %v274
    %v298 = vsel %vm296, %v297, %v274
    %v299 = vshrl.u32 %v298, 4
    %v300 = vand.u32 %v298, 15
    %v301 = vsub.s32 0, %v300
    %v302 = vsel %vm296, %v301, %v300
    %vm303 = vcmp.ne.s32.totalorder %v281, 0
    %vm304 = vcmp.ne.s32.totalorder %v288, 0
    %vm305 = vcmp.ne.s32.totalorder %v295, 0
    %vm306 = vcmp.ne.s32.totalorder %v302, 0
    %vm307 = vcmp.lt.s32.totalorder %v281, 0
    %vm308 = vcmp.lt.s32.totalorder %v288, 0
    %vm309 = vcmp.lt.s32.totalorder %v295, 0
    %vm310 = vcmp.lt.s32.totalorder %v302, 0
    %vm311 = vmand %vm307, %vm303
    %vm312 = vmand %vm308, %vm304
    %vm313 = vmand %vm309, %vm305
    %vm314 = vmand %vm310, %vm306
    %v315 = vadd.s32 %v281, 16
    %v316 = vadd.s32 %v288, 16
    %v317 = vadd.s32 %v295, 16
    %v318 = vadd.s32 %v302, 16
    %v319 = vsel %vm311, %v315, %v281
    %v320 = vsel %vm312, %v316, %v288
    %v321 = vsel %vm313, %v317, %v295
    %v322 = vsel %vm314, %v318, %v302
    %vm323 = vcmp.eq.s32.totalorder %v319, 0
    %vm324 = vcmp.eq.s32.totalorder %v320, 0
    %vm325 = vcmp.eq.s32.totalorder %v321, 0
    %vm326 = vcmp.eq.s32.totalorder %v322, 0
    %v327 = vrot.slane %v258, 7
    %v328 = vrot.slane %v259, 7
    %v329 = vrot.slane %v260, 7
    %v330 = vrot.slane %v261, 7
    %vm331 = vcmp.lt.s32.totalorder %v271, 1
    %v332 = vsel %vm331, %v329, %v330
    %v333 = vsel %vm331, %v328, %v329
    %v334 = vsel %vm331, %v327, %v328
    %v335 = vsel %vm331, %v330, %v327
    %v336 = vsel %vm323, 1, 0
    %v337 = vsel %vm324, 1, 0
    %v338 = vsel %vm325, 1, 0
    %v339 = vsel %vm326, 1, 0
    %vm340 = vcmp.eq.s32.totalorder %v336, 1
    %vm341 = vcmp.eq.s32.totalorder %v337, 1
    %vm342 = vcmp.eq.s32.totalorder %v338, 1
    %vm343 = vcmp.eq.s32.totalorder %v339, 1
    %v344 = vsel %vm340, 0.0, %v335
    %v345 = vsel %vm341, 0.0, %v334
    %v346 = vsel %vm342, 0.0, %v333
    %v347 = vsel %vm343, 0.0, %v332
    %vm348 = vcmp.eq.s32.totalorder %v319, 15
    %vm349 = vcmp.eq.s32.totalorder %v320, 15
    %vm350 = vcmp.eq.s32.totalorder %v321, 15
    %vm351 = vcmp.eq.s32.totalorder %v322, 15
    %v352 = vrot.slane %v258, 1
    %v353 = vrot.slane %v259, 1
    %v354 = vrot.slane %v260, 1
    %v355 = vrot.slane %v261, 1
    %vm356 = vcmp.lt.s32.totalorder %v271, 7
    %v357 = vsel %vm356, %v354, %v355
    %v358 = vsel %vm356, %v353, %v354
    %v359 = vsel %vm356, %v352, %v353
    %v360 = vsel %vm356, %v355, %v352
    %v361 = vsel %vm348, 1, 0
    %v362 = vsel %vm349, 1, 0
    %v363 = vsel %vm350, 1, 0
    %v364 = vsel %vm351, 1, 0
    %vm365 = vcmp.eq.s32.totalorder %v361, 1
    %vm366 = vcmp.eq.s32.totalorder %v362, 1
    %vm367 = vcmp.eq.s32.totalorder %v363, 1
    %vm368 = vcmp.eq.s32.totalorder %v364, 1
    %v369 = vsel %vm365, 0.0, %v359
    %v370 = vsel %vm366, 0.0, %v358
    %v371 = vsel %vm367, 0.0, %v357
    %v372 = vsel %vm368, 0.0, %v360
    %v373 = vld [vmem:[#allocation2] sm:$0xff]
    %v374 = vld [vmem:[#allocation2 + $0x8] sm:$0xff]
    %v375 = vld [vmem:[#allocation2 + $0x10] sm:$0xff]
    %v376 = vld [vmem:[#allocation2 + $0x18] sm:$0xff]
    %v377 = vld [vmem:[#allocation2 + $0x20] sm:$0xff]
    %v378 = vld [vmem:[#allocation2 + $0x28] sm:$0xff]
    %v379 = vld [vmem:[#allocation2 + $0x30] sm:$0xff]
    %v380 = vld [vmem:[#allocation2 + $0x38] sm:$0xff]
    %v381 = vld [vmem:[#allocation2 + $0x40] sm:$0xff]
    %v382 = vld [vmem:[#allocation2 + $0x48] sm:$0xff]
    %v383 = vld [vmem:[#allocation2 + $0x50] sm:$0xff]
    %v384 = vld [vmem:[#allocation2 + $0x58] sm:$0xff]
    %v385 = vld [vmem:[#allocation2 + $0x60] sm:$0xff]
    %v386 = vld [vmem:[#allocation2 + $0x68] sm:$0xff]
    %v387 = vld [vmem:[#allocation2 + $0x70] sm:$0xff]
    %v388 = vld [vmem:[#allocation2 + $0x78] sm:$0xff]
    %s389 = scalar_lea.vmem [#allocation2], 128
    %v390 = vld [vmem:[%s389] sm:$0xff]
    %v391 = vld [vmem:[%s389 + $0x8] sm:$0xff]
    %v392 = vld [vmem:[%s389 + $0x10] sm:$0xff]
    %v393 = vld [vmem:[%s389 + $0x18] sm:$0xff]
    %v394 = vld [vmem:[%s389 + $0x20] sm:$0xff]
    %v395 = vld [vmem:[%s389 + $0x28] sm:$0xff]
    %v396 = vld [vmem:[%s389 + $0x30] sm:$0xff]
    %v397 = vld [vmem:[%s389 + $0x38] sm:$0xff]
    %v398 = vld [vmem:[%s389 + $0x40] sm:$0xff]
    %v399 = vld [vmem:[%s389 + $0x48] sm:$0xff]
    %v400 = vld [vmem:[%s389 + $0x50] sm:$0xff]
    %v401 = vld [vmem:[%s389 + $0x58] sm:$0xff]
    %v402 = vld [vmem:[%s389 + $0x60] sm:$0xff]
    %v403 = vld [vmem:[%s389 + $0x68] sm:$0xff]
    %v404 = vld [vmem:[%s389 + $0x70] sm:$0xff]
    %v405 = vld [vmem:[%s389 + $0x78] sm:$0xff]
    %406 = vmatprep.subr.mxu0 0.0
    %407 = vmatpush1.msra.mxu0 %v390
    %408 = vmatprep.subr.mxu0 0.0
    %409 = vmatpush1.msra.mxu0 %v391
    %410 = vmatprep.subr.mxu0 0.0
    %411 = vmatpush1.msra.mxu0 %v392
    %412 = vmatprep.subr.mxu0 0.0
    %413 = vmatpush1.msra.mxu0 %v393
    %414 = vmatprep.subr.mxu0 0.0
    %415 = vmatpush1.msra.mxu0 %v394
    %416 = vmatprep.subr.mxu0 0.0
    %417 = vmatpush1.msra.mxu0 %v395
    %418 = vmatprep.subr.mxu0 0.0
    %419 = vmatpush1.msra.mxu0 %v396
    %420 = vmatprep.subr.mxu0 0.0
    %421 = vmatpush1.msra.mxu0 %v397
    %422 = vmatprep.subr.mxu0 0.0
    %423 = vmatpush1.msra.mxu0 %v398
    %424 = vmatprep.subr.mxu0 0.0
    %425 = vmatpush1.msra.mxu0 %v399
    %426 = vmatprep.subr.mxu0 0.0
    %427 = vmatpush1.msra.mxu0 %v400
    %428 = vmatprep.subr.mxu0 0.0
    %429 = vmatpush1.msra.mxu0 %v401
    %430 = vmatprep.subr.mxu0 0.0
    %431 = vmatpush1.msra.mxu0 %v402
    %432 = vmatprep.subr.mxu0 0.0
    %433 = vmatpush1.msra.mxu0 %v403
    %434 = vmatprep.subr.mxu0 0.0
    %435 = vmatpush1.msra.mxu0 %v404
    %436 = vmatprep.subr.mxu0 0.0
    %437 = vmatpush1.msra.mxu0 %v405
    %438 = vmatprep.subr.mxu0 0.0
    %439 = vmatpush1.msra.mxu0 0.0
    %440 = vmatprep.subr.mxu0 0.0
    %441 = vmatpush1.msra.mxu0 0.0
    %442 = vmatprep.subr.mxu0 0.0
    %443 = vmatpush1.msra.mxu0 0.0
    %444 = vmatprep.subr.mxu0 0.0
    %445 = vmatpush1.msra.mxu0 0.0
    %446 = vmatprep.subr.mxu0 0.0
    %447 = vmatpush1.msra.mxu0 0.0
    %448 = vmatprep.subr.mxu0 0.0
    %449 = vmatpush1.msra.mxu0 0.0
    %450 = vmatprep.subr.mxu0 0.0
    %451 = vmatpush1.msra.mxu0 0.0
    %452 = vmatprep.subr.mxu0 0.0
    %453 = vmatpush1.msra.mxu0 0.0
    %454 = vmatprep.subr.mxu0 0.0
    %455 = vmatpush1.msra.mxu0 0.0
    %456 = vmatprep.subr.mxu0 0.0
    %457 = vmatpush1.msra.mxu0 0.0
    %458 = vmatprep.subr.mxu0 0.0
    %459 = vmatpush1.msra.mxu0 0.0
    %460 = vmatprep.subr.mxu0 0.0
    %461 = vmatpush1.msra.mxu0 0.0
    %462 = vmatprep.subr.mxu0 0.0
    %463 = vmatpush1.msra.mxu0 0.0
    %464 = vmatprep.subr.mxu0 0.0
    %465 = vmatpush1.msra.mxu0 0.0
    %466 = vmatprep.subr.mxu0 0.0
    %467 = vmatpush1.msra.mxu0 0.0
    %468 = vmatprep.subr.mxu0 0.0
    %469 = vmatpush1.msra.mxu0 0.0
    %470 = vmatprep.mubr.f32.mxu0 0.0
    %471 = vmatmul.mubr.f32.gmra.mrb[0].mxu0 %v258
    %v472 = vpop.f32.mrb[0].mxu0
    %v473 = vadd.f32 0.0, %v472
    %v474 = vpop.f32.mrb[0].mxu0
    %475 = vmatprep.mubr.f32.mxu0 0.0
    %476 = vmatmul.mubr.f32.gmra.mrb[0].mxu0 %v259
    %v477 = vpop.f32.mrb[0].mxu0
    %v478 = vadd.f32 0.0, %v477
    %v479 = vpop.f32.mrb[0].mxu0
    %480 = vmatprep.mubr.f32.mxu0 0.0
    %481 = vmatmul.mubr.f32.gmra.mrb[0].mxu0 %v260
    %v482 = vpop.f32.mrb[0].mxu0
    %v483 = vadd.f32 0.0, %v482
    %v484 = vpop.f32.mrb[0].mxu0
    %485 = vmatprep.mubr.f32.mxu0 0.0
    %486 = vmatmul.mubr.f32.gmra.mrb[0].mxu0 %v261
    %v487 = vpop.f32.mrb[0].mxu0
    %v488 = vadd.f32 0.0, %v487
    %v489 = vpop.f32.mrb[0].mxu0
    %490 = vdwg.mxu0
    %491 = vmatprep.subr.mxu0 0.0
    %492 = vmatpush1.msra.mxu0 %v373
    %493 = vmatprep.subr.mxu0 0.0
    %494 = vmatpush1.msra.mxu0 %v374
    %495 = vmatprep.subr.mxu0 0.0
    %496 = vmatpush1.msra.mxu0 %v375
    %497 = vmatprep.subr.mxu0 0.0
    %498 = vmatpush1.msra.mxu0 %v376
    %499 = vmatprep.subr.mxu0 0.0
    %500 = vmatpush1.msra.mxu0 %v377
    %501 = vmatprep.subr.mxu0 0.0
    %502 = vmatpush1.msra.mxu0 %v378
    %503 = vmatprep.subr.mxu0 0.0
    %504 = vmatpush1.msra.mxu0 %v379
    %505 = vmatprep.subr.mxu0 0.0
    %506 = vmatpush1.msra.mxu0 %v380
    %507 = vmatprep.subr.mxu0 0.0
    %508 = vmatpush1.msra.mxu0 %v381
    %509 = vmatprep.subr.mxu0 0.0
    %510 = vmatpush1.msra.mxu0 %v382
    %511 = vmatprep.subr.mxu0 0.0
    %512 = vmatpush1.msra.mxu0 %v383
    %513 = vmatprep.subr.mxu0 0.0
    %514 = vmatpush1.msra.mxu0 %v384
    %515 = vmatprep.subr.mxu0 0.0
    %516 = vmatpush1.msra.mxu0 %v385
    %517 = vmatprep.subr.mxu0 0.0
    %518 = vmatpush1.msra.mxu0 %v386
    %519 = vmatprep.subr.mxu0 0.0
    %520 = vmatpush1.msra.mxu0 %v387
    %521 = vmatprep.subr.mxu0 0.0
    %522 = vmatpush1.msra.mxu0 %v388
    %523 = vmatprep.subr.mxu0 0.0
    %524 = vmatpush1.msra.mxu0 0.0
    %525 = vmatprep.subr.mxu0 0.0
    %526 = vmatpush1.msra.mxu0 0.0
    %527 = vmatprep.subr.mxu0 0.0
    %528 = vmatpush1.msra.mxu0 0.0
    %529 = vmatprep.subr.mxu0 0.0
    %530 = vmatpush1.msra.mxu0 0.0
    %531 = vmatprep.subr.mxu0 0.0
    %532 = vmatpush1.msra.mxu0 0.0
    %533 = vmatprep.subr.mxu0 0.0
    %534 = vmatpush1.msra.mxu0 0.0
    %535 = vmatprep.subr.mxu0 0.0
    %536 = vmatpush1.msra.mxu0 0.0
    %537 = vmatprep.subr.mxu0 0.0
    %538 = vmatpush1.msra.mxu0 0.0
    %539 = vmatprep.subr.mxu0 0.0
    %540 = vmatpush1.msra.mxu0 0.0
    %541 = vmatprep.subr.mxu0 0.0
    %542 = vmatpush1.msra.mxu0 0.0
    %543 = vmatprep.subr.mxu0 0.0
    %544 = vmatpush1.msra.mxu0 0.0
    %545 = vmatprep.subr.mxu0 0.0
    %546 = vmatpush1.msra.mxu0 0.0
    %547 = vmatprep.subr.mxu0 0.0
    %548 = vmatpush1.msra.mxu0 0.0
    %549 = vmatprep.subr.mxu0 0.0
    %550 = vmatpush1.msra.mxu0 0.0
    %551 = vmatprep.subr.mxu0 0.0
    %552 = vmatpush1.msra.mxu0 0.0
    %553 = vmatprep.subr.mxu0 0.0
    %554 = vmatpush1.msra.mxu0 0.0
    %555 = vmatprep.mubr.f32.mxu0 0.0
    %556 = vmatmul.mubr.f32.gmra.mrb[0].mxu0 %v344
    %v557 = vpop.f32.mrb[0].mxu0
    %v558 = vadd.f32 %v473, %v557
    %v559 = vpop.f32.mrb[0].mxu0
    %560 = vmatprep.mubr.f32.mxu0 0.0
    %561 = vmatmul.mubr.f32.gmra.mrb[0].mxu0 %v345
    %v562 = vpop.f32.mrb[0].mxu0
    %v563 = vadd.f32 %v478, %v562
    %v564 = vpop.f32.mrb[0].mxu0
    %565 = vmatprep.mubr.f32.mxu0 0.0
    %566 = vmatmul.mubr.f32.gmra.mrb[0].mxu0 %v346
    %v567 = vpop.f32.mrb[0].mxu0
    %v568 = vadd.f32 %v483, %v567
    %v569 = vpop.f32.mrb[0].mxu0
    %570 = vmatprep.mubr.f32.mxu0 0.0
    %571 = vmatmul.mubr.f32.gmra.mrb[0].mxu0 %v347
    %v572 = vpop.f32.mrb[0].mxu0
    %v573 = vadd.f32 %v488, %v572
    %v574 = vpop.f32.mrb[0].mxu0
    %575 = vdwg.mxu0
    %s576 = scalar_lea.vmem [#allocation2], 256
    %v577 = vld [vmem:[%s576] sm:$0xff]
    %v578 = vld [vmem:[%s576 + $0x8] sm:$0xff]
    %v579 = vld [vmem:[%s576 + $0x10] sm:$0xff]
    %v580 = vld [vmem:[%s576 + $0x18] sm:$0xff]
    %v581 = vld [vmem:[%s576 + $0x20] sm:$0xff]
    %v582 = vld [vmem:[%s576 + $0x28] sm:$0xff]
    %v583 = vld [vmem:[%s576 + $0x30] sm:$0xff]
    %v584 = vld [vmem:[%s576 + $0x38] sm:$0xff]
    %v585 = vld [vmem:[%s576 + $0x40] sm:$0xff]
    %v586 = vld [vmem:[%s576 + $0x48] sm:$0xff]
    %v587 = vld [vmem:[%s576 + $0x50] sm:$0xff]
    %v588 = vld [vmem:[%s576 + $0x58] sm:$0xff]
    %v589 = vld [vmem:[%s576 + $0x60] sm:$0xff]
    %v590 = vld [vmem:[%s576 + $0x68] sm:$0xff]
    %v591 = vld [vmem:[%s576 + $0x70] sm:$0xff]
    %v592 = vld [vmem:[%s576 + $0x78] sm:$0xff]
    %593 = vmatprep.subr.mxu0 0.0
    %594 = vmatpush1.msra.mxu0 %v577
    %595 = vmatprep.subr.mxu0 0.0
    %596 = vmatpush1.msra.mxu0 %v578
    %597 = vmatprep.subr.mxu0 0.0
    %598 = vmatpush1.msra.mxu0 %v579
    %599 = vmatprep.subr.mxu0 0.0
    %600 = vmatpush1.msra.mxu0 %v580
    %601 = vmatprep.subr.mxu0 0.0
    %602 = vmatpush1.msra.mxu0 %v581
    %603 = vmatprep.subr.mxu0 0.0
    %604 = vmatpush1.msra.mxu0 %v582
    %605 = vmatprep.subr.mxu0 0.0
    %606 = vmatpush1.msra.mxu0 %v583
    %607 = vmatprep.subr.mxu0 0.0
    %608 = vmatpush1.msra.mxu0 %v584
    %609 = vmatprep.subr.mxu0 0.0
    %610 = vmatpush1.msra.mxu0 %v585
    %611 = vmatprep.subr.mxu0 0.0
    %612 = vmatpush1.msra.mxu0 %v586
    %613 = vmatprep.subr.mxu0 0.0
    %614 = vmatpush1.msra.mxu0 %v587
    %615 = vmatprep.subr.mxu0 0.0
    %616 = vmatpush1.msra.mxu0 %v588
    %617 = vmatprep.subr.mxu0 0.0
    %618 = vmatpush1.msra.mxu0 %v589
    %619 = vmatprep.subr.mxu0 0.0
    %620 = vmatpush1.msra.mxu0 %v590
    %621 = vmatprep.subr.mxu0 0.0
    %622 = vmatpush1.msra.mxu0 %v591
    %623 = vmatprep.subr.mxu0 0.0
    %624 = vmatpush1.msra.mxu0 %v592
    %625 = vmatprep.subr.mxu0 0.0
    %626 = vmatpush1.msra.mxu0 0.0
    %627 = vmatprep.subr.mxu0 0.0
    %628 = vmatpush1.msra.mxu0 0.0
    %629 = vmatprep.subr.mxu0 0.0
    %630 = vmatpush1.msra.mxu0 0.0
    %631 = vmatprep.subr.mxu0 0.0
    %632 = vmatpush1.msra.mxu0 0.0
    %633 = vmatprep.subr.mxu0 0.0
    %634 = vmatpush1.msra.mxu0 0.0
    %635 = vmatprep.subr.mxu0 0.0
    %636 = vmatpush1.msra.mxu0 0.0
    %637 = vmatprep.subr.mxu0 0.0
    %638 = vmatpush1.msra.mxu0 0.0
    %639 = vmatprep.subr.mxu0 0.0
    %640 = vmatpush1.msra.mxu0 0.0
    %641 = vmatprep.subr.mxu0 0.0
    %642 = vmatpush1.msra.mxu0 0.0
    %643 = vmatprep.subr.mxu0 0.0
    %644 = vmatpush1.msra.mxu0 0.0
    %645 = vmatprep.subr.mxu0 0.0
    %646 = vmatpush1.msra.mxu0 0.0
    %647 = vmatprep.subr.mxu0 0.0
    %648 = vmatpush1.msra.mxu0 0.0
    %649 = vmatprep.subr.mxu0 0.0
    %650 = vmatpush1.msra.mxu0 0.0
    %651 = vmatprep.subr.mxu0 0.0
    %652 = vmatpush1.msra.mxu0 0.0
    %653 = vmatprep.subr.mxu0 0.0
    %654 = vmatpush1.msra.mxu0 0.0
    %655 = vmatprep.subr.mxu0 0.0
    %656 = vmatpush1.msra.mxu0 0.0
    %657 = vmatprep.mubr.f32.mxu0 0.0
    %658 = vmatmul.mubr.f32.gmra.mrb[0].mxu0 %v369
    %v659 = vpop.f32.mrb[0].mxu0
    %v660 = vadd.f32 0.0, %v659
    %v661 = vpop.f32.mrb[0].mxu0
    %662 = vmatprep.mubr.f32.mxu0 0.0
    %663 = vmatmul.mubr.f32.gmra.mrb[0].mxu0 %v370
    %v664 = vpop.f32.mrb[0].mxu0
    %v665 = vadd.f32 0.0, %v664
    %v666 = vpop.f32.mrb[0].mxu0
    %667 = vmatprep.mubr.f32.mxu0 0.0
    %668 = vmatmul.mubr.f32.gmra.mrb[0].mxu0 %v371
    %v669 = vpop.f32.mrb[0].mxu0
    %v670 = vadd.f32 0.0, %v669
    %v671 = vpop.f32.mrb[0].mxu0
    %672 = vmatprep.mubr.f32.mxu0 0.0
    %673 = vmatmul.mubr.f32.gmra.mrb[0].mxu0 %v372
    %v674 = vpop.f32.mrb[0].mxu0
    %v675 = vadd.f32 0.0, %v674
    %v676 = vpop.f32.mrb[0].mxu0
    %677 = vdwg.mxu0
    %v678 = vadd.f32 %v558, %v660
    %v679 = vadd.f32 %v563, %v665
    %v680 = vadd.f32 %v568, %v670
    %v681 = vadd.f32 %v573, %v675
    %v682 = vlaneseq
    %v683 = vshrl.u32 %v682, 7
    %v684 = vsub.s32 0, %v683
    %v685 = vrot.slane %v46, %v684
    %v686 = vadd.f32 %v678, %v685
    %v687 = vadd.f32 %v679, %v685
    %v688 = vadd.f32 %v680, %v685
    %v689 = vadd.f32 %v681, %v685
    %v690 = vmax.f32 %v686, 0.0
    %v691 = vmax.f32 %v687, 0.0
    %v692 = vmax.f32 %v688, 0.0
    %v693 = vmax.f32 %v689, 0.0
    %v694 = vld [vmem:[%s3] sm:$0xff]
    %v695 = vld [vmem:[%s3 + $0x8] sm:$0xff]
    %v696 = vld [vmem:[%s3 + $0x10] sm:$0xff]
    %v697 = vld [vmem:[%s3 + $0x18] sm:$0xff]
    %v698 = vld [vmem:[%s3 + $0x20] sm:$0xff]
    %v699 = vld [vmem:[%s3 + $0x28] sm:$0xff]
    %v700 = vld [vmem:[%s3 + $0x30] sm:$0xff]
    %v701 = vld [vmem:[%s3 + $0x38] sm:$0xff]
    %v702 = vld [vmem:[%s3 + $0x40] sm:$0xff]
    %v703 = vld [vmem:[%s3 + $0x48] sm:$0xff]
    %v704 = vld [vmem:[%s3 + $0x50] sm:$0xff]
    %v705 = vld [vmem:[%s3 + $0x58] sm:$0xff]
    %v706 = vld [vmem:[%s3 + $0x60] sm:$0xff]
    %v707 = vld [vmem:[%s3 + $0x68] sm:$0xff]
    %v708 = vld [vmem:[%s3 + $0x70] sm:$0xff]
    %v709 = vld [vmem:[%s3 + $0x78] sm:$0xff]
    %v710 = vlaneseq
    %v711 = vshrl.u32 %v710, 7
    %v712 = vsub.s32 0, %v711
    %v713 = vrot.slane %v47, %v712
    %714 = vmatprep.subr.mxu0 0.0
    %715 = vmatpush1.msra.mxu0 %v694
    %716 = vmatprep.subr.mxu0 0.0
    %717 = vmatpush1.msra.mxu0 %v695
    %718 = vmatprep.subr.mxu0 0.0
    %719 = vmatpush1.msra.mxu0 %v696
    %720 = vmatprep.subr.mxu0 0.0
    %721 = vmatpush1.msra.mxu0 %v697
    %722 = vmatprep.subr.mxu0 0.0
    %723 = vmatpush1.msra.mxu0 %v698
    %724 = vmatprep.subr.mxu0 0.0
    %725 = vmatpush1.msra.mxu0 %v699
    %726 = vmatprep.subr.mxu0 0.0
    %727 = vmatpush1.msra.mxu0 %v700
    %728 = vmatprep.subr.mxu0 0.0
    %729 = vmatpush1.msra.mxu0 %v701
    %730 = vmatprep.subr.mxu0 0.0
    %731 = vmatpush1.msra.mxu0 %v702
    %732 = vmatprep.subr.mxu0 0.0
    %733 = vmatpush1.msra.mxu0 %v703
    %734 = vmatprep.subr.mxu0 0.0
    %735 = vmatpush1.msra.mxu0 %v704
    %736 = vmatprep.subr.mxu0 0.0
    %737 = vmatpush1.msra.mxu0 %v705
    %738 = vmatprep.subr.mxu0 0.0
    %739 = vmatpush1.msra.mxu0 %v706
    %740 = vmatprep.subr.mxu0 0.0
    %741 = vmatpush1.msra.mxu0 %v707
    %742 = vmatprep.subr.mxu0 0.0
    %743 = vmatpush1.msra.mxu0 %v708
    %744 = vmatprep.subr.mxu0 0.0
    %745 = vmatpush1.msra.mxu0 %v709
    %746 = vmatprep.subr.mxu0 0.0
    %747 = vmatpush1.msra.mxu0 0.0
    %748 = vmatprep.subr.mxu0 0.0
    %749 = vmatpush1.msra.mxu0 0.0
    %750 = vmatprep.subr.mxu0 0.0
    %751 = vmatpush1.msra.mxu0 0.0
    %752 = vmatprep.subr.mxu0 0.0
    %753 = vmatpush1.msra.mxu0 0.0
    %754 = vmatprep.subr.mxu0 0.0
    %755 = vmatpush1.msra.mxu0 0.0
    %756 = vmatprep.subr.mxu0 0.0
    %757 = vmatpush1.msra.mxu0 0.0
    %758 = vmatprep.subr.mxu0 0.0
    %759 = vmatpush1.msra.mxu0 0.0
    %760 = vmatprep.subr.mxu0 0.0
    %761 = vmatpush1.msra.mxu0 0.0
    %762 = vmatprep.subr.mxu0 0.0
    %763 = vmatpush1.msra.mxu0 0.0
    %764 = vmatprep.subr.mxu0 0.0
    %765 = vmatpush1.msra.mxu0 0.0
    %766 = vmatprep.subr.mxu0 0.0
    %767 = vmatpush1.msra.mxu0 0.0
    %768 = vmatprep.subr.mxu0 0.0
    %769 = vmatpush1.msra.mxu0 0.0
    %770 = vmatprep.subr.mxu0 0.0
    %771 = vmatpush1.msra.mxu0 0.0
    %772 = vmatprep.subr.mxu0 0.0
    %773 = vmatpush1.msra.mxu0 0.0
    %774 = vmatprep.subr.mxu0 0.0
    %775 = vmatpush1.msra.mxu0 0.0
    %776 = vmatprep.subr.mxu0 0.0
    %777 = vmatpush1.msra.mxu0 0.0
    %778 = vmatprep.mubr.f32.mxu0 0.0
    %779 = vmatmul.mubr.f32.gmra.mrb[0].mxu0 %v690
    %v780 = vpop.f32.mrb[0].mxu0
    %v781 = vadd.f32 %v713, %v780
    %v782 = vpop.f32.mrb[0].mxu0
    %783 = vmatprep.mubr.f32.mxu0 0.0
    %784 = vmatmul.mubr.f32.gmra.mrb[0].mxu0 %v691
    %v785 = vpop.f32.mrb[0].mxu0
    %v786 = vadd.f32 %v713, %v785
    %v787 = vpop.f32.mrb[0].mxu0
    %788 = vmatprep.mubr.f32.mxu0 0.0
    %789 = vmatmul.mubr.f32.gmra.mrb[0].mxu0 %v692
    %v790 = vpop.f32.mrb[0].mxu0
    %v791 = vadd.f32 %v713, %v790
    %v792 = vpop.f32.mrb[0].mxu0
    %793 = vmatprep.mubr.f32.mxu0 0.0
    %794 = vmatmul.mubr.f32.gmra.mrb[0].mxu0 %v693
    %v795 = vpop.f32.mrb[0].mxu0
    %v796 = vadd.f32 %v713, %v795
    %v797 = vpop.f32.mrb[0].mxu0
    %798 = vdwg.mxu0
    %799 = vmatprep.subr.mxu0 0.0
    %800 = vmatpush1.xpose.msra.mxu0 %v65
    %801 = vmatprep.subr.mxu0 0.0
    %802 = vmatpush1.xpose.msra.mxu0 %v68
    %803 = vmatprep.subr.mxu0 0.0
    %804 = vmatpush1.xpose.msra.mxu0 0.0
    %805 = vmatprep.subr.mxu0 0.0
    %806 = vmatpush1.xpose.msra.mxu0 0.0
    %807 = vmatprep.subr.mxu0 0.0
    %808 = vmatpush1.xpose.msra.mxu0 0.0
    %809 = vmatprep.subr.mxu0 0.0
    %810 = vmatpush1.xpose.msra.mxu0 0.0
    %811 = vmatprep.subr.mxu0 0.0
    %812 = vmatpush1.xpose.msra.mxu0 0.0
    %813 = vmatprep.subr.mxu0 0.0
    %814 = vmatpush1.xpose.msra.mxu0 0.0
    %815 = vmatprep.subr.mxu0 0.0
    %816 = vmatpush1.xpose.msra.mxu0 0.0
    %817 = vmatprep.subr.mxu0 0.0
    %818 = vmatpush1.xpose.msra.mxu0 0.0
    %819 = vmatprep.subr.mxu0 0.0
    %820 = vmatpush1.xpose.msra.mxu0 0.0
    %821 = vmatprep.subr.mxu0 0.0
    %822 = vmatpush1.xpose.msra.mxu0 0.0
    %823 = vmatprep.subr.mxu0 0.0
    %824 = vmatpush1.xpose.msra.mxu0 0.0
    %825 = vmatprep.subr.mxu0 0.0
    %826 = vmatpush1.xpose.msra.mxu0 0.0
    %827 = vmatprep.subr.mxu0 0.0
    %828 = vmatpush1.xpose.msra.mxu0 0.0
    %829 = vmatprep.subr.mxu0 0.0
    %830 = vmatpush1.xpose.msra.mxu0 0.0
    %831 = vmatprep.subr.mxu0 0.0
    %832 = vmatpush1.xpose.msra.mxu0 0.0
    %833 = vmatprep.subr.mxu0 0.0
    %834 = vmatpush1.xpose.msra.mxu0 0.0
    %835 = vmatprep.subr.mxu0 0.0
    %836 = vmatpush1.xpose.msra.mxu0 0.0
    %837 = vmatprep.subr.mxu0 0.0
    %838 = vmatpush1.xpose.msra.mxu0 0.0
    %839 = vmatprep.subr.mxu0 0.0
    %840 = vmatpush1.xpose.msra.mxu0 0.0
    %841 = vmatprep.subr.mxu0 0.0
    %842 = vmatpush1.xpose.msra.mxu0 0.0
    %843 = vmatprep.subr.mxu0 0.0
    %844 = vmatpush1.xpose.msra.mxu0 0.0
    %845 = vmatprep.subr.mxu0 0.0
    %846 = vmatpush1.xpose.msra.mxu0 0.0
    %847 = vmatprep.subr.mxu0 0.0
    %848 = vmatpush1.xpose.msra.mxu0 0.0
    %849 = vmatprep.subr.mxu0 0.0
    %850 = vmatpush1.xpose.msra.mxu0 0.0
    %851 = vmatprep.subr.mxu0 0.0
    %852 = vmatpush1.xpose.msra.mxu0 0.0
    %853 = vmatprep.subr.mxu0 0.0
    %854 = vmatpush1.xpose.msra.mxu0 0.0
    %855 = vmatprep.subr.mxu0 0.0
    %856 = vmatpush1.xpose.msra.mxu0 0.0
    %857 = vmatprep.subr.mxu0 0.0
    %858 = vmatpush1.xpose.msra.mxu0 0.0
    %859 = vmatprep.subr.mxu0 0.0
    %860 = vmatpush1.xpose.msra.mxu0 0.0
    %861 = vmatprep.subr.mxu0 0.0
    %862 = vmatpush1.xpose.msra.mxu0 0.0
    %863 = vmatprep.mubr.f32.mxu0 0.0
    %864 = vmatmul.mubr.f32.gmra.mrb[0].mxu0 %v65
    %v865 = vpop.f32.mrb[0].mxu0
    %v866 = vadd.f32 0.0, %v865
    %v867 = vpop.f32.mrb[0].mxu0
    %868 = vmatprep.mubr.f32.mxu0 0.0
    %869 = vmatmul.mubr.f32.gmra.mrb[0].mxu0 %v68
    %v870 = vpop.f32.mrb[0].mxu0
    %v871 = vadd.f32 0.0, %v870
    %v872 = vpop.f32.mrb[0].mxu0
    %873 = vdwg.mxu0
    %874 = vmatprep.subr.mxu0 0.0
    %875 = vmatpush1.xpose.msra.mxu0 %v71
    %876 = vmatprep.subr.mxu0 0.0
    %877 = vmatpush1.xpose.msra.mxu0 %v74
    %878 = vmatprep.subr.mxu0 0.0
    %879 = vmatpush1.xpose.msra.mxu0 0.0
    %880 = vmatprep.subr.mxu0 0.0
    %881 = vmatpush1.xpose.msra.mxu0 0.0
    %882 = vmatprep.subr.mxu0 0.0
    %883 = vmatpush1.xpose.msra.mxu0 0.0
    %884 = vmatprep.subr.mxu0 0.0
    %885 = vmatpush1.xpose.msra.mxu0 0.0
    %886 = vmatprep.subr.mxu0 0.0
    %887 = vmatpush1.xpose.msra.mxu0 0.0
    %888 = vmatprep.subr.mxu0 0.0
    %889 = vmatpush1.xpose.msra.mxu0 0.0
    %890 = vmatprep.subr.mxu0 0.0
    %891 = vmatpush1.xpose.msra.mxu0 0.0
    %892 = vmatprep.subr.mxu0 0.0
    %893 = vmatpush1.xpose.msra.mxu0 0.0
    %894 = vmatprep.subr.mxu0 0.0
    %895 = vmatpush1.xpose.msra.mxu0 0.0
    %896 = vmatprep.subr.mxu0 0.0
    %897 = vmatpush1.xpose.msra.mxu0 0.0
    %898 = vmatprep.subr.mxu0 0.0
    %899 = vmatpush1.xpose.msra.mxu0 0.0
    %900 = vmatprep.subr.mxu0 0.0
    %901 = vmatpush1.xpose.msra.mxu0 0.0
    %902 = vmatprep.subr.mxu0 0.0
    %903 = vmatpush1.xpose.msra.mxu0 0.0
    %904 = vmatprep.subr.mxu0 0.0
    %905 = vmatpush1.xpose.msra.mxu0 0.0
    %906 = vmatprep.subr.mxu0 0.0
    %907 = vmatpush1.xpose.msra.mxu0 0.0
    %908 = vmatprep.subr.mxu0 0.0
    %909 = vmatpush1.xpose.msra.mxu0 0.0
    %910 = vmatprep.subr.mxu0 0.0
    %911 = vmatpush1.xpose.msra.mxu0 0.0
    %912 = vmatprep.subr.mxu0 0.0
    %913 = vmatpush1.xpose.msra.mxu0 0.0
    %914 = vmatprep.subr.mxu0 0.0
    %915 = vmatpush1.xpose.msra.mxu0 0.0
    %916 = vmatprep.subr.mxu0 0.0
    %917 = vmatpush1.xpose.msra.mxu0 0.0
    %918 = vmatprep.subr.mxu0 0.0
    %919 = vmatpush1.xpose.msra.mxu0 0.0
    %920 = vmatprep.subr.mxu0 0.0
    %921 = vmatpush1.xpose.msra.mxu0 0.0
    %922 = vmatprep.subr.mxu0 0.0
    %923 = vmatpush1.xpose.msra.mxu0 0.0
    %924 = vmatprep.subr.mxu0 0.0
    %925 = vmatpush1.xpose.msra.mxu0 0.0
    %926 = vmatprep.subr.mxu0 0.0
    %927 = vmatpush1.xpose.msra.mxu0 0.0
    %928 = vmatprep.subr.mxu0 0.0
    %929 = vmatpush1.xpose.msra.mxu0 0.0
    %930 = vmatprep.subr.mxu0 0.0
    %931 = vmatpush1.xpose.msra.mxu0 0.0
    %932 = vmatprep.subr.mxu0 0.0
    %933 = vmatpush1.xpose.msra.mxu0 0.0
    %934 = vmatprep.subr.mxu0 0.0
    %935 = vmatpush1.xpose.msra.mxu0 0.0
    %936 = vmatprep.subr.mxu0 0.0
    %937 = vmatpush1.xpose.msra.mxu0 0.0
    %938 = vmatprep.mubr.f32.mxu0 0.0
    %939 = vmatmul.mubr.f32.gmra.mrb[0].mxu0 %v71
    %v940 = vpop.f32.mrb[0].mxu0
    %v941 = vadd.f32 0.0, %v940
    %v942 = vpop.f32.mrb[0].mxu0
    %943 = vmatprep.mubr.f32.mxu0 0.0
    %944 = vmatmul.mubr.f32.gmra.mrb[0].mxu0 %v74
    %v945 = vpop.f32.mrb[0].mxu0
    %v946 = vadd.f32 0.0, %v945
    %v947 = vpop.f32.mrb[0].mxu0
    %948 = vdwg.mxu0
    %v949 = vlaneseq
    %v950 = vand.u32 %v949, 127
    %vm951 = vcmp.eq.s32.totalorder %v271, %v950
    %vm952 = vcmp.eq.s32.totalorder %v272, %v950
    %v953 = vsel %vm951, %v866, 0.0
    %v954 = vsel %vm952, %v871, 0.0
    %v955 = vsel %vm951, %v941, 0.0
    %v956 = vsel %vm952, %v946, 0.0
    %vm957 = vcmask 130048
    %v958 = vsel %vm957, %v953, 0.0
    %v959 = vsel %vm957, %v954, 0.0
    %v960 = vadd.f32 %v958, %v959
    %v961 = vrot.slane %v960, 4
    %v962 = vadd.f32 %v960, %v961
    %v963 = vrot.slane %v962, 2
    %v964 = vadd.f32 %v962, %v963
    %v965 = vrot.slane %v964, 1
    %v966 = vadd.f32 %v964, %v965
    %v967 = vsel %vm957, %v955, 0.0
    %v968 = vsel %vm957, %v956, 0.0
    %v969 = vadd.f32 %v967, %v968
    %v970 = vrot.slane %v969, 4
    %v971 = vadd.f32 %v969, %v970
    %v972 = vrot.slane %v971, 2
    %v973 = vadd.f32 %v971, %v972
    %v974 = vrot.slane %v973, 1
    %v975 = vadd.f32 %v973, %v974
    %v976 = vmul.f32 %v866, 2.0
    %v977 = vmul.f32 %v871, 2.0
    %v978 = vmul.f32 %v941, 2.0
    %v979 = vmul.f32 %v946, 2.0
    %v980 = vsub.f32 %v976, %v966
    %v981 = vsub.f32 %v977, %v966
    %v982 = vsub.f32 %v978, %v975
    %v983 = vsub.f32 %v979, %v975
    %v984 = vld [vmem:[%s4] sm:$0xff]
    %v985 = vld [vmem:[%s4 + $0x8] sm:$0xff]
    %v986 = vld [vmem:[%s4 + $0x10] sm:$0xff]
    %v987 = vld [vmem:[%s4 + $0x18] sm:$0xff]
    %v988 = vld [vmem:[%s4 + $0x20] sm:$0xff]
    %v989 = vld [vmem:[%s4 + $0x28] sm:$0xff]
    %v990 = vld [vmem:[%s4 + $0x30] sm:$0xff]
    %v991 = vld [vmem:[%s4 + $0x38] sm:$0xff]
    %v992 = vld [vmem:[%s4 + $0x40] sm:$0xff]
    %v993 = vld [vmem:[%s4 + $0x48] sm:$0xff]
    %v994 = vld [vmem:[%s4 + $0x50] sm:$0xff]
    %v995 = vld [vmem:[%s4 + $0x58] sm:$0xff]
    %v996 = vld [vmem:[%s4 + $0x60] sm:$0xff]
    %v997 = vld [vmem:[%s4 + $0x68] sm:$0xff]
    %v998 = vld [vmem:[%s4 + $0x70] sm:$0xff]
    %v999 = vld [vmem:[%s4 + $0x78] sm:$0xff]
    %v1000 = vld [vmem:[%s5] sm:$0xff]
    %v1001 = vld [vmem:[%s5 + $0x8] sm:$0xff]
    %v1002 = vld [vmem:[%s5 + $0x10] sm:$0xff]
    %v1003 = vld [vmem:[%s5 + $0x18] sm:$0xff]
    %v1004 = vld [vmem:[%s5 + $0x20] sm:$0xff]
    %v1005 = vld [vmem:[%s5 + $0x28] sm:$0xff]
    %v1006 = vld [vmem:[%s5 + $0x30] sm:$0xff]
    %v1007 = vld [vmem:[%s5 + $0x38] sm:$0xff]
    %v1008 = vld [vmem:[%s5 + $0x40] sm:$0xff]
    %v1009 = vld [vmem:[%s5 + $0x48] sm:$0xff]
    %v1010 = vld [vmem:[%s5 + $0x50] sm:$0xff]
    %v1011 = vld [vmem:[%s5 + $0x58] sm:$0xff]
    %v1012 = vld [vmem:[%s5 + $0x60] sm:$0xff]
    %v1013 = vld [vmem:[%s5 + $0x68] sm:$0xff]
    %v1014 = vld [vmem:[%s5 + $0x70] sm:$0xff]
    %v1015 = vld [vmem:[%s5 + $0x78] sm:$0xff]
    %v1016 = vlaneseq
    %v1017 = vshrl.u32 %v1016, 7
    %v1018 = vsub.s32 0, %v1017
    %v1019 = vrot.slane %v49, %v1018
    %v1020 = vsel %vm957, %v980, -inf
    %1021 = vmax.xlane.f32.xlu0 %v1020
    %v1022 = vpop.xlane.xlu0 %1021
    %v1023 = vsel %vm957, %v981, -inf
    %1024 = vmax.xlane.f32.xlu0 %v1023
    %v1025 = vpop.xlane.xlu0 %1024
    %v1026 = vsel %vm957, %v982, -inf
    %1027 = vmax.xlane.f32.xlu0 %v1026
    %v1028 = vpop.xlane.xlu0 %1027
    %v1029 = vsel %vm957, %v983, -inf
    %1030 = vmax.xlane.f32.xlu0 %v1029
    %v1031 = vpop.xlane.xlu0 %1030
    %vm1032 = vcmp.eq.f32.partialorder %v980, %v1022
    %vm1033 = vcmp.eq.f32.partialorder %v981, %v1025
    %vm1034 = vcmp.eq.f32.partialorder %v982, %v1028
    %vm1035 = vcmp.eq.f32.partialorder %v983, %v1031
    %v1036 = vsel %vm1032, %v950, 16
    %v1037 = vsel %vm1033, %v950, 16
    %v1038 = vsel %vm1034, %v950, 16
    %v1039 = vsel %vm1035, %v950, 16
    %v1040 = vsel %vm957, %v1036, 2147483647
    %v1041 = vand.u32 %v1040, 65535
    %v1042 = vshra.s32 %v1040, 16
    %v1043 = vcvt.s32.f32 %v1041
    %v1044 = vcvt.s32.f32 %v1042
    %1045 = vmin.xlane.f32.xlu0 %v1044
    %v1046 = vpop.xlane.xlu0 %1045
    %vm1047 = vcmp.eq.f32.partialorder %v1044, %v1046
    %v1048 = vsel %vm1047, %v1043, inf
    %1049 = vmin.xlane.f32.xlu0 %v1048
    %v1050 = vpop.xlane.xlu0 %1049
    %v1051 = vcvt.f32.s32 %v1050
    %v1052 = vcvt.f32.s32 %v1046
    %v1053 = vshll.u32 %v1052, 16
    %v1054 = vadd.s32 %v1053, %v1051
    %v1055 = vsel %vm957, %v1037, 2147483647
    %v1056 = vand.u32 %v1055, 65535
    %v1057 = vshra.s32 %v1055, 16
    %v1058 = vcvt.s32.f32 %v1056
    %v1059 = vcvt.s32.f32 %v1057
    %1060 = vmin.xlane.f32.xlu0 %v1059
    %v1061 = vpop.xlane.xlu0 %1060
    %vm1062 = vcmp.eq.f32.partialorder %v1059, %v1061
    %v1063 = vsel %vm1062, %v1058, inf
    %1064 = vmin.xlane.f32.xlu0 %v1063
    %v1065 = vpop.xlane.xlu0 %1064
    %v1066 = vcvt.f32.s32 %v1065
    %v1067 = vcvt.f32.s32 %v1061
    %v1068 = vshll.u32 %v1067, 16
    %v1069 = vadd.s32 %v1068, %v1066
    %v1070 = vsel %vm957, %v1038, 2147483647
    %v1071 = vand.u32 %v1070, 65535
    %v1072 = vshra.s32 %v1070, 16
    %v1073 = vcvt.s32.f32 %v1071
    %v1074 = vcvt.s32.f32 %v1072
    %1075 = vmin.xlane.f32.xlu0 %v1074
    %v1076 = vpop.xlane.xlu0 %1075
    %vm1077 = vcmp.eq.f32.partialorder %v1074, %v1076
    %v1078 = vsel %vm1077, %v1073, inf
    %1079 = vmin.xlane.f32.xlu0 %v1078
    %v1080 = vpop.xlane.xlu0 %1079
    %v1081 = vcvt.f32.s32 %v1080
    %v1082 = vcvt.f32.s32 %v1076
    %v1083 = vshll.u32 %v1082, 16
    %v1084 = vadd.s32 %v1083, %v1081
    %v1085 = vsel %vm957, %v1039, 2147483647
    %v1086 = vand.u32 %v1085, 65535
    %v1087 = vshra.s32 %v1085, 16
    %v1088 = vcvt.s32.f32 %v1086
    %v1089 = vcvt.s32.f32 %v1087
    %1090 = vmin.xlane.f32.xlu0 %v1089
    %v1091 = vpop.xlane.xlu0 %1090
    %vm1092 = vcmp.eq.f32.partialorder %v1089, %v1091
    %v1093 = vsel %vm1092, %v1088, inf
    %1094 = vmin.xlane.f32.xlu0 %v1093
    %v1095 = vpop.xlane.xlu0 %1094
    %v1096 = vcvt.f32.s32 %v1095
    %v1097 = vcvt.f32.s32 %v1091
    %v1098 = vshll.u32 %v1097, 16
    %v1099 = vadd.s32 %v1098, %v1096
    %vm1100 = vcmp.eq.s32.totalorder %v950, %v1054
    %vm1101 = vcmp.eq.s32.totalorder %v950, %v1069
    %vm1102 = vcmp.eq.s32.totalorder %v950, %v1084
    %vm1103 = vcmp.eq.s32.totalorder %v950, %v1099
    %v1104 = vsel %vm1100, -3.4028235e+38, %v980
    %v1105 = vsel %vm1101, -3.4028235e+38, %v981
    %v1106 = vsel %vm1102, -3.4028235e+38, %v982
    %v1107 = vsel %vm1103, -3.4028235e+38, %v983
    %v1108 = vsel %vm1100, 1, 0
    %v1109 = vsel %vm1101, 1, 0
    %v1110 = vsel %vm1102, 1, 0
    %v1111 = vsel %vm1103, 1, 0
    %v1112 = vcvt.s32.f32 %v1108
    %v1113 = vcvt.s32.f32 %v1109
    %v1114 = vcvt.s32.f32 %v1110
    %v1115 = vcvt.s32.f32 %v1111
    %v1117 = vsel %vm957, %v1112, 0
    %v1120 = vsel %vm957, %v1113, 0
    %1122 = vmatprep.subr.mxu0 0.0
    %1123 = vmatpush1.msra.mxu0 %v232
    %1124 = vmatprep.subr.mxu0 0.0
    %1125 = vmatpush1.msra.mxu0 %v237
    %1126 = vmatprep.subr.mxu0 0.0
    %1127 = vmatpush1.msra.mxu0 0.0
    %1128 = vmatprep.subr.mxu0 0.0
    %1129 = vmatpush1.msra.mxu0 0.0
    %1130 = vmatprep.subr.mxu0 0.0
    %1131 = vmatpush1.msra.mxu0 0.0
    %1132 = vmatprep.subr.mxu0 0.0
    %1133 = vmatpush1.msra.mxu0 0.0
    %1134 = vmatprep.subr.mxu0 0.0
    %1135 = vmatpush1.msra.mxu0 0.0
    %1136 = vmatprep.subr.mxu0 0.0
    %1137 = vmatpush1.msra.mxu0 0.0
    %1138 = vmatprep.subr.mxu0 0.0
    %1139 = vmatpush1.msra.mxu0 0.0
    %1140 = vmatprep.subr.mxu0 0.0
    %1141 = vmatpush1.msra.mxu0 0.0
    %1142 = vmatprep.subr.mxu0 0.0
    %1143 = vmatpush1.msra.mxu0 0.0
    %1144 = vmatprep.subr.mxu0 0.0
    %1145 = vmatpush1.msra.mxu0 0.0
    %1146 = vmatprep.subr.mxu0 0.0
    %1147 = vmatpush1.msra.mxu0 0.0
    %1148 = vmatprep.subr.mxu0 0.0
    %1149 = vmatpush1.msra.mxu0 0.0
    %1150 = vmatprep.subr.mxu0 0.0
    %1151 = vmatpush1.msra.mxu0 0.0
    %1152 = vmatprep.subr.mxu0 0.0
    %1153 = vmatpush1.msra.mxu0 0.0
    %1154 = vmatprep.subr.mxu0 0.0
    %1155 = vmatpush1.msra.mxu0 0.0
    %1156 = vmatprep.subr.mxu0 0.0
    %1157 = vmatpush1.msra.mxu0 0.0
    %1158 = vmatprep.subr.mxu0 0.0
    %1159 = vmatpush1.msra.mxu0 0.0
    %1160 = vmatprep.subr.mxu0 0.0
    %1161 = vmatpush1.msra.mxu0 0.0
    %1162 = vmatprep.subr.mxu0 0.0
    %1163 = vmatpush1.msra.mxu0 0.0
    %1164 = vmatprep.subr.mxu0 0.0
    %1165 = vmatpush1.msra.mxu0 0.0
    %1166 = vmatprep.subr.mxu0 0.0
    %1167 = vmatpush1.msra.mxu0 0.0
    %1168 = vmatprep.subr.mxu0 0.0
    %1169 = vmatpush1.msra.mxu0 0.0
    %1170 = vmatprep.subr.mxu0 0.0
    %1171 = vmatpush1.msra.mxu0 0.0
    %1172 = vmatprep.subr.mxu0 0.0
    %1173 = vmatpush1.msra.mxu0 0.0
    %1174 = vmatprep.subr.mxu0 0.0
    %1175 = vmatpush1.msra.mxu0 0.0
    %1176 = vmatprep.subr.mxu0 0.0
    %1177 = vmatpush1.msra.mxu0 0.0
    %1178 = vmatprep.subr.mxu0 0.0
    %1179 = vmatpush1.msra.mxu0 0.0
    %1180 = vmatprep.subr.mxu0 0.0
    %1181 = vmatpush1.msra.mxu0 0.0
    %1182 = vmatprep.subr.mxu0 0.0
    %1183 = vmatpush1.msra.mxu0 0.0
    %1184 = vmatprep.subr.mxu0 0.0
    %1185 = vmatpush1.msra.mxu0 0.0
    %1186 = vmatprep.mubr.f32.mxu0 0.0
    %1187 = vmatmul.mubr.f32.gmra.mrb[0].mxu0 %v1117
    %v1188 = vpop.f32.mrb[0].mxu0
    %v1189 = vadd.f32 0.0, %v1188
    %v1190 = vpop.f32.mrb[0].mxu0
    %1191 = vmatprep.mubr.f32.mxu0 0.0
    %1192 = vmatmul.mubr.f32.gmra.mrb[0].mxu0 %v1120
    %v1193 = vpop.f32.mrb[0].mxu0
    %v1194 = vadd.f32 0.0, %v1193
    %v1195 = vpop.f32.mrb[0].mxu0
    %1196 = vdwg.mxu0
    %v1198 = vsel %vm957, %v1114, 0
    %v1201 = vsel %vm957, %v1115, 0
    %1203 = vmatprep.subr.mxu0 0.0
    %1204 = vmatpush1.msra.mxu0 %v242
    %1205 = vmatprep.subr.mxu0 0.0
    %1206 = vmatpush1.msra.mxu0 %v247
    %1207 = vmatprep.subr.mxu0 0.0
    %1208 = vmatpush1.msra.mxu0 0.0
    %1209 = vmatprep.subr.mxu0 0.0
    %1210 = vmatpush1.msra.mxu0 0.0
    %1211 = vmatprep.subr.mxu0 0.0
    %1212 = vmatpush1.msra.mxu0 0.0
    %1213 = vmatprep.subr.mxu0 0.0
    %1214 = vmatpush1.msra.mxu0 0.0
    %1215 = vmatprep.subr.mxu0 0.0
    %1216 = vmatpush1.msra.mxu0 0.0
    %1217 = vmatprep.subr.mxu0 0.0
    %1218 = vmatpush1.msra.mxu0 0.0
    %1219 = vmatprep.subr.mxu0 0.0
    %1220 = vmatpush1.msra.mxu0 0.0
    %1221 = vmatprep.subr.mxu0 0.0
    %1222 = vmatpush1.msra.mxu0 0.0
    %1223 = vmatprep.subr.mxu0 0.0
    %1224 = vmatpush1.msra.mxu0 0.0
    %1225 = vmatprep.subr.mxu0 0.0
    %1226 = vmatpush1.msra.mxu0 0.0
    %1227 = vmatprep.subr.mxu0 0.0
    %1228 = vmatpush1.msra.mxu0 0.0
    %1229 = vmatprep.subr.mxu0 0.0
    %1230 = vmatpush1.msra.mxu0 0.0
    %1231 = vmatprep.subr.mxu0 0.0
    %1232 = vmatpush1.msra.mxu0 0.0
    %1233 = vmatprep.subr.mxu0 0.0
    %1234 = vmatpush1.msra.mxu0 0.0
    %1235 = vmatprep.subr.mxu0 0.0
    %1236 = vmatpush1.msra.mxu0 0.0
    %1237 = vmatprep.subr.mxu0 0.0
    %1238 = vmatpush1.msra.mxu0 0.0
    %1239 = vmatprep.subr.mxu0 0.0
    %1240 = vmatpush1.msra.mxu0 0.0
    %1241 = vmatprep.subr.mxu0 0.0
    %1242 = vmatpush1.msra.mxu0 0.0
    %1243 = vmatprep.subr.mxu0 0.0
    %1244 = vmatpush1.msra.mxu0 0.0
    %1245 = vmatprep.subr.mxu0 0.0
    %1246 = vmatpush1.msra.mxu0 0.0
    %1247 = vmatprep.subr.mxu0 0.0
    %1248 = vmatpush1.msra.mxu0 0.0
    %1249 = vmatprep.subr.mxu0 0.0
    %1250 = vmatpush1.msra.mxu0 0.0
    %1251 = vmatprep.subr.mxu0 0.0
    %1252 = vmatpush1.msra.mxu0 0.0
    %1253 = vmatprep.subr.mxu0 0.0
    %1254 = vmatpush1.msra.mxu0 0.0
    %1255 = vmatprep.subr.mxu0 0.0
    %1256 = vmatpush1.msra.mxu0 0.0
    %1257 = vmatprep.subr.mxu0 0.0
    %1258 = vmatpush1.msra.mxu0 0.0
    %1259 = vmatprep.subr.mxu0 0.0
    %1260 = vmatpush1.msra.mxu0 0.0
    %1261 = vmatprep.subr.mxu0 0.0
    %1262 = vmatpush1.msra.mxu0 0.0
    %1263 = vmatprep.subr.mxu0 0.0
    %1264 = vmatpush1.msra.mxu0 0.0
    %1265 = vmatprep.subr.mxu0 0.0
    %1266 = vmatpush1.msra.mxu0 0.0
    %1267 = vmatprep.mubr.f32.mxu0 0.0
    %1268 = vmatmul.mubr.f32.gmra.mrb[0].mxu0 %v1198
    %v1269 = vpop.f32.mrb[0].mxu0
    %v1270 = vadd.f32 0.0, %v1269
    %v1271 = vpop.f32.mrb[0].mxu0
    %1272 = vmatprep.mubr.f32.mxu0 0.0
    %1273 = vmatmul.mubr.f32.gmra.mrb[0].mxu0 %v1201
    %v1274 = vpop.f32.mrb[0].mxu0
    %v1275 = vadd.f32 0.0, %v1274
    %v1276 = vpop.f32.mrb[0].mxu0
    %1277 = vdwg.mxu0
    %v1278 = vadd.f32 %v1189, %v266
    %v1279 = vadd.f32 %v1194, %v267
    %v1280 = vadd.f32 %v1270, %v268
    %v1281 = vadd.f32 %v1275, %v269
    %v1282 = vmax.f32 %v1278, 0.0
    %v1283 = vmax.f32 %v1279, 0.0
    %v1284 = vmax.f32 %v1280, 0.0
    %v1285 = vmax.f32 %v1281, 0.0
    %1286 = vmatprep.subr.mxu0 0.0
    %1287 = vmatpush1.msra.mxu0 %v984
    %1288 = vmatprep.subr.mxu0 0.0
    %1289 = vmatpush1.msra.mxu0 %v985
    %1290 = vmatprep.subr.mxu0 0.0
    %1291 = vmatpush1.msra.mxu0 %v986
    %1292 = vmatprep.subr.mxu0 0.0
    %1293 = vmatpush1.msra.mxu0 %v987
    %1294 = vmatprep.subr.mxu0 0.0
    %1295 = vmatpush1.msra.mxu0 %v988
    %1296 = vmatprep.subr.mxu0 0.0
    %1297 = vmatpush1.msra.mxu0 %v989
    %1298 = vmatprep.subr.mxu0 0.0
    %1299 = vmatpush1.msra.mxu0 %v990
    %1300 = vmatprep.subr.mxu0 0.0
    %1301 = vmatpush1.msra.mxu0 %v991
    %1302 = vmatprep.subr.mxu0 0.0
    %1303 = vmatpush1.msra.mxu0 %v992
    %1304 = vmatprep.subr.mxu0 0.0
    %1305 = vmatpush1.msra.mxu0 %v993
    %1306 = vmatprep.subr.mxu0 0.0
    %1307 = vmatpush1.msra.mxu0 %v994
    %1308 = vmatprep.subr.mxu0 0.0
    %1309 = vmatpush1.msra.mxu0 %v995
    %1310 = vmatprep.subr.mxu0 0.0
    %1311 = vmatpush1.msra.mxu0 %v996
    %1312 = vmatprep.subr.mxu0 0.0
    %1313 = vmatpush1.msra.mxu0 %v997
    %1314 = vmatprep.subr.mxu0 0.0
    %1315 = vmatpush1.msra.mxu0 %v998
    %1316 = vmatprep.subr.mxu0 0.0
    %1317 = vmatpush1.msra.mxu0 %v999
    %1318 = vmatprep.subr.mxu0 0.0
    %1319 = vmatpush1.msra.mxu0 0.0
    %1320 = vmatprep.subr.mxu0 0.0
    %1321 = vmatpush1.msra.mxu0 0.0
    %1322 = vmatprep.subr.mxu0 0.0
    %1323 = vmatpush1.msra.mxu0 0.0
    %1324 = vmatprep.subr.mxu0 0.0
    %1325 = vmatpush1.msra.mxu0 0.0
    %1326 = vmatprep.subr.mxu0 0.0
    %1327 = vmatpush1.msra.mxu0 0.0
    %1328 = vmatprep.subr.mxu0 0.0
    %1329 = vmatpush1.msra.mxu0 0.0
    %1330 = vmatprep.subr.mxu0 0.0
    %1331 = vmatpush1.msra.mxu0 0.0
    %1332 = vmatprep.subr.mxu0 0.0
    %1333 = vmatpush1.msra.mxu0 0.0
    %1334 = vmatprep.subr.mxu0 0.0
    %1335 = vmatpush1.msra.mxu0 0.0
    %1336 = vmatprep.subr.mxu0 0.0
    %1337 = vmatpush1.msra.mxu0 0.0
    %1338 = vmatprep.subr.mxu0 0.0
    %1339 = vmatpush1.msra.mxu0 0.0
    %1340 = vmatprep.subr.mxu0 0.0
    %1341 = vmatpush1.msra.mxu0 0.0
    %1342 = vmatprep.subr.mxu0 0.0
    %1343 = vmatpush1.msra.mxu0 0.0
    %1344 = vmatprep.subr.mxu0 0.0
    %1345 = vmatpush1.msra.mxu0 0.0
    %1346 = vmatprep.subr.mxu0 0.0
    %1347 = vmatpush1.msra.mxu0 0.0
    %1348 = vmatprep.subr.mxu0 0.0
    %1349 = vmatpush1.msra.mxu0 0.0
    %1350 = vmatprep.mubr.f32.mxu0 0.0
    %1351 = vmatmul.mubr.f32.gmra.mrb[0].mxu0 %v1282
    %v1352 = vpop.f32.mrb[0].mxu0
    %v1353 = vadd.f32 %v1019, %v1352
    %v1354 = vpop.f32.mrb[0].mxu0
    %1355 = vmatprep.mubr.f32.mxu0 0.0
    %1356 = vmatmul.mubr.f32.gmra.mrb[0].mxu0 %v1283
    %v1357 = vpop.f32.mrb[0].mxu0
    %v1358 = vadd.f32 %v1019, %v1357
    %v1359 = vpop.f32.mrb[0].mxu0
    %1360 = vmatprep.mubr.f32.mxu0 0.0
    %1361 = vmatmul.mubr.f32.gmra.mrb[0].mxu0 %v1284
    %v1362 = vpop.f32.mrb[0].mxu0
    %v1363 = vadd.f32 %v1019, %v1362
    %v1364 = vpop.f32.mrb[0].mxu0
    %1365 = vmatprep.mubr.f32.mxu0 0.0
    %1366 = vmatmul.mubr.f32.gmra.mrb[0].mxu0 %v1285
    %v1367 = vpop.f32.mrb[0].mxu0
    %v1368 = vadd.f32 %v1019, %v1367
    %v1369 = vpop.f32.mrb[0].mxu0
    %1370 = vdwg.mxu0
    %v1371 = vmax.f32 %v1353, 0.0
    %v1372 = vmax.f32 %v1358, 0.0
    %v1373 = vmax.f32 %v1363, 0.0
    %v1374 = vmax.f32 %v1368, 0.0
    %1375 = vmatprep.subr.mxu0 0.0
    %1376 = vmatpush1.msra.mxu0 %v1000
    %1377 = vmatprep.subr.mxu0 0.0
    %1378 = vmatpush1.msra.mxu0 %v1001
    %1379 = vmatprep.subr.mxu0 0.0
    %1380 = vmatpush1.msra.mxu0 %v1002
    %1381 = vmatprep.subr.mxu0 0.0
    %1382 = vmatpush1.msra.mxu0 %v1003
    %1383 = vmatprep.subr.mxu0 0.0
    %1384 = vmatpush1.msra.mxu0 %v1004
    %1385 = vmatprep.subr.mxu0 0.0
    %1386 = vmatpush1.msra.mxu0 %v1005
    %1387 = vmatprep.subr.mxu0 0.0
    %1388 = vmatpush1.msra.mxu0 %v1006
    %1389 = vmatprep.subr.mxu0 0.0
    %1390 = vmatpush1.msra.mxu0 %v1007
    %1391 = vmatprep.subr.mxu0 0.0
    %1392 = vmatpush1.msra.mxu0 %v1008
    %1393 = vmatprep.subr.mxu0 0.0
    %1394 = vmatpush1.msra.mxu0 %v1009
    %1395 = vmatprep.subr.mxu0 0.0
    %1396 = vmatpush1.msra.mxu0 %v1010
    %1397 = vmatprep.subr.mxu0 0.0
    %1398 = vmatpush1.msra.mxu0 %v1011
    %1399 = vmatprep.subr.mxu0 0.0
    %1400 = vmatpush1.msra.mxu0 %v1012
    %1401 = vmatprep.subr.mxu0 0.0
    %1402 = vmatpush1.msra.mxu0 %v1013
    %1403 = vmatprep.subr.mxu0 0.0
    %1404 = vmatpush1.msra.mxu0 %v1014
    %1405 = vmatprep.subr.mxu0 0.0
    %1406 = vmatpush1.msra.mxu0 %v1015
    %1407 = vmatprep.subr.mxu0 0.0
    %1408 = vmatpush1.msra.mxu0 0.0
    %1409 = vmatprep.subr.mxu0 0.0
    %1410 = vmatpush1.msra.mxu0 0.0
    %1411 = vmatprep.subr.mxu0 0.0
    %1412 = vmatpush1.msra.mxu0 0.0
    %1413 = vmatprep.subr.mxu0 0.0
    %1414 = vmatpush1.msra.mxu0 0.0
    %1415 = vmatprep.subr.mxu0 0.0
    %1416 = vmatpush1.msra.mxu0 0.0
    %1417 = vmatprep.subr.mxu0 0.0
    %1418 = vmatpush1.msra.mxu0 0.0
    %1419 = vmatprep.subr.mxu0 0.0
    %1420 = vmatpush1.msra.mxu0 0.0
    %1421 = vmatprep.subr.mxu0 0.0
    %1422 = vmatpush1.msra.mxu0 0.0
    %1423 = vmatprep.subr.mxu0 0.0
    %1424 = vmatpush1.msra.mxu0 0.0
    %1425 = vmatprep.subr.mxu0 0.0
    %1426 = vmatpush1.msra.mxu0 0.0
    %1427 = vmatprep.subr.mxu0 0.0
    %1428 = vmatpush1.msra.mxu0 0.0
    %1429 = vmatprep.subr.mxu0 0.0
    %1430 = vmatpush1.msra.mxu0 0.0
    %1431 = vmatprep.subr.mxu0 0.0
    %1432 = vmatpush1.msra.mxu0 0.0
    %1433 = vmatprep.subr.mxu0 0.0
    %1434 = vmatpush1.msra.mxu0 0.0
    %1435 = vmatprep.subr.mxu0 0.0
    %1436 = vmatpush1.msra.mxu0 0.0
    %1437 = vmatprep.subr.mxu0 0.0
    %1438 = vmatpush1.msra.mxu0 0.0
    %1439 = vmatprep.mubr.f32.mxu0 0.0
    %1440 = vmatmul.mubr.f32.gmra.mrb[0].mxu0 %v1371
    %v1441 = vpop.f32.mrb[0].mxu0
    %v1442 = vadd.f32 0.0, %v1441
    %v1443 = vpop.f32.mrb[0].mxu0
    %1444 = vmatprep.mubr.f32.mxu0 0.0
    %1445 = vmatmul.mubr.f32.gmra.mrb[0].mxu0 %v1372
    %v1446 = vpop.f32.mrb[0].mxu0
    %v1447 = vadd.f32 0.0, %v1446
    %v1448 = vpop.f32.mrb[0].mxu0
    %1449 = vmatprep.mubr.f32.mxu0 0.0
    %1450 = vmatmul.mubr.f32.gmra.mrb[0].mxu0 %v1373
    %v1451 = vpop.f32.mrb[0].mxu0
    %v1452 = vadd.f32 0.0, %v1451
    %v1453 = vpop.f32.mrb[0].mxu0
    %1454 = vmatprep.mubr.f32.mxu0 0.0
    %1455 = vmatmul.mubr.f32.gmra.mrb[0].mxu0 %v1374
    %v1456 = vpop.f32.mrb[0].mxu0
    %v1457 = vadd.f32 0.0, %v1456
    %v1458 = vpop.f32.mrb[0].mxu0
    %1459 = vdwg.mxu0
    %v1460 = vsel %vm957, %v1104, -inf
    %1461 = vmax.xlane.f32.xlu0 %v1460
    %v1462 = vpop.xlane.xlu0 %1461
    %v1463 = vsel %vm957, %v1105, -inf
    %1464 = vmax.xlane.f32.xlu0 %v1463
    %v1465 = vpop.xlane.xlu0 %1464
    %v1466 = vsel %vm957, %v1106, -inf
    %1467 = vmax.xlane.f32.xlu0 %v1466
    %v1468 = vpop.xlane.xlu0 %1467
    %v1469 = vsel %vm957, %v1107, -inf
    %1470 = vmax.xlane.f32.xlu0 %v1469
    %v1471 = vpop.xlane.xlu0 %1470
    %vm1472 = vcmp.eq.f32.partialorder %v1104, %v1462
    %vm1473 = vcmp.eq.f32.partialorder %v1105, %v1465
    %vm1474 = vcmp.eq.f32.partialorder %v1106, %v1468
    %vm1475 = vcmp.eq.f32.partialorder %v1107, %v1471
    %v1476 = vsel %vm1472, %v950, 16
    %v1477 = vsel %vm1473, %v950, 16
    %v1478 = vsel %vm1474, %v950, 16
    %v1479 = vsel %vm1475, %v950, 16
    %v1480 = vsel %vm957, %v1476, 2147483647
    %v1481 = vand.u32 %v1480, 65535
    %v1482 = vshra.s32 %v1480, 16
    %v1483 = vcvt.s32.f32 %v1481
    %v1484 = vcvt.s32.f32 %v1482
    %1485 = vmin.xlane.f32.xlu0 %v1484
    %v1486 = vpop.xlane.xlu0 %1485
    %vm1487 = vcmp.eq.f32.partialorder %v1484, %v1486
    %v1488 = vsel %vm1487, %v1483, inf
    %1489 = vmin.xlane.f32.xlu0 %v1488
    %v1490 = vpop.xlane.xlu0 %1489
    %v1491 = vcvt.f32.s32 %v1490
    %v1492 = vcvt.f32.s32 %v1486
    %v1493 = vshll.u32 %v1492, 16
    %v1494 = vadd.s32 %v1493, %v1491
    %v1495 = vsel %vm957, %v1477, 2147483647
    %v1496 = vand.u32 %v1495, 65535
    %v1497 = vshra.s32 %v1495, 16
    %v1498 = vcvt.s32.f32 %v1496
    %v1499 = vcvt.s32.f32 %v1497
    %1500 = vmin.xlane.f32.xlu0 %v1499
    %v1501 = vpop.xlane.xlu0 %1500
    %vm1502 = vcmp.eq.f32.partialorder %v1499, %v1501
    %v1503 = vsel %vm1502, %v1498, inf
    %1504 = vmin.xlane.f32.xlu0 %v1503
    %v1505 = vpop.xlane.xlu0 %1504
    %v1506 = vcvt.f32.s32 %v1505
    %v1507 = vcvt.f32.s32 %v1501
    %v1508 = vshll.u32 %v1507, 16
    %v1509 = vadd.s32 %v1508, %v1506
    %v1510 = vsel %vm957, %v1478, 2147483647
    %v1511 = vand.u32 %v1510, 65535
    %v1512 = vshra.s32 %v1510, 16
    %v1513 = vcvt.s32.f32 %v1511
    %v1514 = vcvt.s32.f32 %v1512
    %1515 = vmin.xlane.f32.xlu0 %v1514
    %v1516 = vpop.xlane.xlu0 %1515
    %vm1517 = vcmp.eq.f32.partialorder %v1514, %v1516
    %v1518 = vsel %vm1517, %v1513, inf
    %1519 = vmin.xlane.f32.xlu0 %v1518
    %v1520 = vpop.xlane.xlu0 %1519
    %v1521 = vcvt.f32.s32 %v1520
    %v1522 = vcvt.f32.s32 %v1516
    %v1523 = vshll.u32 %v1522, 16
    %v1524 = vadd.s32 %v1523, %v1521
    %v1525 = vsel %vm957, %v1479, 2147483647
    %v1526 = vand.u32 %v1525, 65535
    %v1527 = vshra.s32 %v1525, 16
    %v1528 = vcvt.s32.f32 %v1526
    %v1529 = vcvt.s32.f32 %v1527
    %1530 = vmin.xlane.f32.xlu0 %v1529
    %v1531 = vpop.xlane.xlu0 %1530
    %vm1532 = vcmp.eq.f32.partialorder %v1529, %v1531
    %v1533 = vsel %vm1532, %v1528, inf
    %1534 = vmin.xlane.f32.xlu0 %v1533
    %v1535 = vpop.xlane.xlu0 %1534
    %v1536 = vcvt.f32.s32 %v1535
    %v1537 = vcvt.f32.s32 %v1531
    %v1538 = vshll.u32 %v1537, 16
    %v1539 = vadd.s32 %v1538, %v1536
    %vm1540 = vcmp.eq.s32.totalorder %v950, %v1494
    %vm1541 = vcmp.eq.s32.totalorder %v950, %v1509
    %vm1542 = vcmp.eq.s32.totalorder %v950, %v1524
    %vm1543 = vcmp.eq.s32.totalorder %v950, %v1539
    %v1544 = vsel %vm1540, -3.4028235e+38, %v1104
    %v1545 = vsel %vm1541, -3.4028235e+38, %v1105
    %v1546 = vsel %vm1542, -3.4028235e+38, %v1106
    %v1547 = vsel %vm1543, -3.4028235e+38, %v1107
    %v1548 = vsel %vm1540, 1, 0
    %v1549 = vsel %vm1541, 1, 0
    %v1550 = vsel %vm1542, 1, 0
    %v1551 = vsel %vm1543, 1, 0
    %v1552 = vcvt.s32.f32 %v1548
    %v1553 = vcvt.s32.f32 %v1549
    %v1554 = vcvt.s32.f32 %v1550
    %v1555 = vcvt.s32.f32 %v1551
    %v1557 = vsel %vm957, %v1552, 0
    %v1560 = vsel %vm957, %v1553, 0
    %1562 = vmatprep.subr.mxu0 0.0
    %1563 = vmatpush1.msra.mxu0 %v232
    %1564 = vmatprep.subr.mxu0 0.0
    %1565 = vmatpush1.msra.mxu0 %v237
    %1566 = vmatprep.subr.mxu0 0.0
    %1567 = vmatpush1.msra.mxu0 0.0
    %1568 = vmatprep.subr.mxu0 0.0
    %1569 = vmatpush1.msra.mxu0 0.0
    %1570 = vmatprep.subr.mxu0 0.0
    %1571 = vmatpush1.msra.mxu0 0.0
    %1572 = vmatprep.subr.mxu0 0.0
    %1573 = vmatpush1.msra.mxu0 0.0
    %1574 = vmatprep.subr.mxu0 0.0
    %1575 = vmatpush1.msra.mxu0 0.0
    %1576 = vmatprep.subr.mxu0 0.0
    %1577 = vmatpush1.msra.mxu0 0.0
    %1578 = vmatprep.subr.mxu0 0.0
    %1579 = vmatpush1.msra.mxu0 0.0
    %1580 = vmatprep.subr.mxu0 0.0
    %1581 = vmatpush1.msra.mxu0 0.0
    %1582 = vmatprep.subr.mxu0 0.0
    %1583 = vmatpush1.msra.mxu0 0.0
    %1584 = vmatprep.subr.mxu0 0.0
    %1585 = vmatpush1.msra.mxu0 0.0
    %1586 = vmatprep.subr.mxu0 0.0
    %1587 = vmatpush1.msra.mxu0 0.0
    %1588 = vmatprep.subr.mxu0 0.0
    %1589 = vmatpush1.msra.mxu0 0.0
    %1590 = vmatprep.subr.mxu0 0.0
    %1591 = vmatpush1.msra.mxu0 0.0
    %1592 = vmatprep.subr.mxu0 0.0
    %1593 = vmatpush1.msra.mxu0 0.0
    %1594 = vmatprep.subr.mxu0 0.0
    %1595 = vmatpush1.msra.mxu0 0.0
    %1596 = vmatprep.subr.mxu0 0.0
    %1597 = vmatpush1.msra.mxu0 0.0
    %1598 = vmatprep.subr.mxu0 0.0
    %1599 = vmatpush1.msra.mxu0 0.0
    %1600 = vmatprep.subr.mxu0 0.0
    %1601 = vmatpush1.msra.mxu0 0.0
    %1602 = vmatprep.subr.mxu0 0.0
    %1603 = vmatpush1.msra.mxu0 0.0
    %1604 = vmatprep.subr.mxu0 0.0
    %1605 = vmatpush1.msra.mxu0 0.0
    %1606 = vmatprep.subr.mxu0 0.0
    %1607 = vmatpush1.msra.mxu0 0.0
    %1608 = vmatprep.subr.mxu0 0.0
    %1609 = vmatpush1.msra.mxu0 0.0
    %1610 = vmatprep.subr.mxu0 0.0
    %1611 = vmatpush1.msra.mxu0 0.0
    %1612 = vmatprep.subr.mxu0 0.0
    %1613 = vmatpush1.msra.mxu0 0.0
    %1614 = vmatprep.subr.mxu0 0.0
    %1615 = vmatpush1.msra.mxu0 0.0
    %1616 = vmatprep.subr.mxu0 0.0
    %1617 = vmatpush1.msra.mxu0 0.0
    %1618 = vmatprep.subr.mxu0 0.0
    %1619 = vmatpush1.msra.mxu0 0.0
    %1620 = vmatprep.subr.mxu0 0.0
    %1621 = vmatpush1.msra.mxu0 0.0
    %1622 = vmatprep.subr.mxu0 0.0
    %1623 = vmatpush1.msra.mxu0 0.0
    %1624 = vmatprep.subr.mxu0 0.0
    %1625 = vmatpush1.msra.mxu0 0.0
    %1626 = vmatprep.mubr.f32.mxu0 0.0
    %1627 = vmatmul.mubr.f32.gmra.mrb[0].mxu0 %v1557
    %v1628 = vpop.f32.mrb[0].mxu0
    %v1629 = vadd.f32 0.0, %v1628
    %v1630 = vpop.f32.mrb[0].mxu0
    %1631 = vmatprep.mubr.f32.mxu0 0.0
    %1632 = vmatmul.mubr.f32.gmra.mrb[0].mxu0 %v1560
    %v1633 = vpop.f32.mrb[0].mxu0
    %v1634 = vadd.f32 0.0, %v1633
    %v1635 = vpop.f32.mrb[0].mxu0
    %1636 = vdwg.mxu0
    %v1638 = vsel %vm957, %v1554, 0
    %v1641 = vsel %vm957, %v1555, 0
    %1643 = vmatprep.subr.mxu0 0.0
    %1644 = vmatpush1.msra.mxu0 %v242
    %1645 = vmatprep.subr.mxu0 0.0
    %1646 = vmatpush1.msra.mxu0 %v247
    %1647 = vmatprep.subr.mxu0 0.0
    %1648 = vmatpush1.msra.mxu0 0.0
    %1649 = vmatprep.subr.mxu0 0.0
    %1650 = vmatpush1.msra.mxu0 0.0
    %1651 = vmatprep.subr.mxu0 0.0
    %1652 = vmatpush1.msra.mxu0 0.0
    %1653 = vmatprep.subr.mxu0 0.0
    %1654 = vmatpush1.msra.mxu0 0.0
    %1655 = vmatprep.subr.mxu0 0.0
    %1656 = vmatpush1.msra.mxu0 0.0
    %1657 = vmatprep.subr.mxu0 0.0
    %1658 = vmatpush1.msra.mxu0 0.0
    %1659 = vmatprep.subr.mxu0 0.0
    %1660 = vmatpush1.msra.mxu0 0.0
    %1661 = vmatprep.subr.mxu0 0.0
    %1662 = vmatpush1.msra.mxu0 0.0
    %1663 = vmatprep.subr.mxu0 0.0
    %1664 = vmatpush1.msra.mxu0 0.0
    %1665 = vmatprep.subr.mxu0 0.0
    %1666 = vmatpush1.msra.mxu0 0.0
    %1667 = vmatprep.subr.mxu0 0.0
    %1668 = vmatpush1.msra.mxu0 0.0
    %1669 = vmatprep.subr.mxu0 0.0
    %1670 = vmatpush1.msra.mxu0 0.0
    %1671 = vmatprep.subr.mxu0 0.0
    %1672 = vmatpush1.msra.mxu0 0.0
    %1673 = vmatprep.subr.mxu0 0.0
    %1674 = vmatpush1.msra.mxu0 0.0
    %1675 = vmatprep.subr.mxu0 0.0
    %1676 = vmatpush1.msra.mxu0 0.0
    %1677 = vmatprep.subr.mxu0 0.0
    %1678 = vmatpush1.msra.mxu0 0.0
    %1679 = vmatprep.subr.mxu0 0.0
    %1680 = vmatpush1.msra.mxu0 0.0
    %1681 = vmatprep.subr.mxu0 0.0
    %1682 = vmatpush1.msra.mxu0 0.0
    %1683 = vmatprep.subr.mxu0 0.0
    %1684 = vmatpush1.msra.mxu0 0.0
    %1685 = vmatprep.subr.mxu0 0.0
    %1686 = vmatpush1.msra.mxu0 0.0
    %1687 = vmatprep.subr.mxu0 0.0
    %1688 = vmatpush1.msra.mxu0 0.0
    %1689 = vmatprep.subr.mxu0 0.0
    %1690 = vmatpush1.msra.mxu0 0.0
    %1691 = vmatprep.subr.mxu0 0.0
    %1692 = vmatpush1.msra.mxu0 0.0
    %1693 = vmatprep.subr.mxu0 0.0
    %1694 = vmatpush1.msra.mxu0 0.0
    %1695 = vmatprep.subr.mxu0 0.0
    %1696 = vmatpush1.msra.mxu0 0.0
    %1697 = vmatprep.subr.mxu0 0.0
    %1698 = vmatpush1.msra.mxu0 0.0
    %1699 = vmatprep.subr.mxu0 0.0
    %1700 = vmatpush1.msra.mxu0 0.0
    %1701 = vmatprep.subr.mxu0 0.0
    %1702 = vmatpush1.msra.mxu0 0.0
    %1703 = vmatprep.subr.mxu0 0.0
    %1704 = vmatpush1.msra.mxu0 0.0
    %1705 = vmatprep.subr.mxu0 0.0
    %1706 = vmatpush1.msra.mxu0 0.0
    %1707 = vmatprep.mubr.f32.mxu0 0.0
    %1708 = vmatmul.mubr.f32.gmra.mrb[0].mxu0 %v1638
    %v1709 = vpop.f32.mrb[0].mxu0
    %v1710 = vadd.f32 0.0, %v1709
    %v1711 = vpop.f32.mrb[0].mxu0
    %1712 = vmatprep.mubr.f32.mxu0 0.0
    %1713 = vmatmul.mubr.f32.gmra.mrb[0].mxu0 %v1641
    %v1714 = vpop.f32.mrb[0].mxu0
    %v1715 = vadd.f32 0.0, %v1714
    %v1716 = vpop.f32.mrb[0].mxu0
    %1717 = vdwg.mxu0
    %v1718 = vadd.f32 %v1629, %v266
    %v1719 = vadd.f32 %v1634, %v267
    %v1720 = vadd.f32 %v1710, %v268
    %v1721 = vadd.f32 %v1715, %v269
    %v1722 = vmax.f32 %v1718, 0.0
    %v1723 = vmax.f32 %v1719, 0.0
    %v1724 = vmax.f32 %v1720, 0.0
    %v1725 = vmax.f32 %v1721, 0.0
    %1726 = vmatprep.subr.mxu0 0.0
    %1727 = vmatpush1.msra.mxu0 %v984
    %1728 = vmatprep.subr.mxu0 0.0
    %1729 = vmatpush1.msra.mxu0 %v985
    %1730 = vmatprep.subr.mxu0 0.0
    %1731 = vmatpush1.msra.mxu0 %v986
    %1732 = vmatprep.subr.mxu0 0.0
    %1733 = vmatpush1.msra.mxu0 %v987
    %1734 = vmatprep.subr.mxu0 0.0
    %1735 = vmatpush1.msra.mxu0 %v988
    %1736 = vmatprep.subr.mxu0 0.0
    %1737 = vmatpush1.msra.mxu0 %v989
    %1738 = vmatprep.subr.mxu0 0.0
    %1739 = vmatpush1.msra.mxu0 %v990
    %1740 = vmatprep.subr.mxu0 0.0
    %1741 = vmatpush1.msra.mxu0 %v991
    %1742 = vmatprep.subr.mxu0 0.0
    %1743 = vmatpush1.msra.mxu0 %v992
    %1744 = vmatprep.subr.mxu0 0.0
    %1745 = vmatpush1.msra.mxu0 %v993
    %1746 = vmatprep.subr.mxu0 0.0
    %1747 = vmatpush1.msra.mxu0 %v994
    %1748 = vmatprep.subr.mxu0 0.0
    %1749 = vmatpush1.msra.mxu0 %v995
    %1750 = vmatprep.subr.mxu0 0.0
    %1751 = vmatpush1.msra.mxu0 %v996
    %1752 = vmatprep.subr.mxu0 0.0
    %1753 = vmatpush1.msra.mxu0 %v997
    %1754 = vmatprep.subr.mxu0 0.0
    %1755 = vmatpush1.msra.mxu0 %v998
    %1756 = vmatprep.subr.mxu0 0.0
    %1757 = vmatpush1.msra.mxu0 %v999
    %1758 = vmatprep.subr.mxu0 0.0
    %1759 = vmatpush1.msra.mxu0 0.0
    %1760 = vmatprep.subr.mxu0 0.0
    %1761 = vmatpush1.msra.mxu0 0.0
    %1762 = vmatprep.subr.mxu0 0.0
    %1763 = vmatpush1.msra.mxu0 0.0
    %1764 = vmatprep.subr.mxu0 0.0
    %1765 = vmatpush1.msra.mxu0 0.0
    %1766 = vmatprep.subr.mxu0 0.0
    %1767 = vmatpush1.msra.mxu0 0.0
    %1768 = vmatprep.subr.mxu0 0.0
    %1769 = vmatpush1.msra.mxu0 0.0
    %1770 = vmatprep.subr.mxu0 0.0
    %1771 = vmatpush1.msra.mxu0 0.0
    %1772 = vmatprep.subr.mxu0 0.0
    %1773 = vmatpush1.msra.mxu0 0.0
    %1774 = vmatprep.subr.mxu0 0.0
    %1775 = vmatpush1.msra.mxu0 0.0
    %1776 = vmatprep.subr.mxu0 0.0
    %1777 = vmatpush1.msra.mxu0 0.0
    %1778 = vmatprep.subr.mxu0 0.0
    %1779 = vmatpush1.msra.mxu0 0.0
    %1780 = vmatprep.subr.mxu0 0.0
    %1781 = vmatpush1.msra.mxu0 0.0
    %1782 = vmatprep.subr.mxu0 0.0
    %1783 = vmatpush1.msra.mxu0 0.0
    %1784 = vmatprep.subr.mxu0 0.0
    %1785 = vmatpush1.msra.mxu0 0.0
    %1786 = vmatprep.subr.mxu0 0.0
    %1787 = vmatpush1.msra.mxu0 0.0
    %1788 = vmatprep.subr.mxu0 0.0
    %1789 = vmatpush1.msra.mxu0 0.0
    %1790 = vmatprep.mubr.f32.mxu0 0.0
    %1791 = vmatmul.mubr.f32.gmra.mrb[0].mxu0 %v1722
    %v1792 = vpop.f32.mrb[0].mxu0
    %v1793 = vadd.f32 %v1019, %v1792
    %v1794 = vpop.f32.mrb[0].mxu0
    %1795 = vmatprep.mubr.f32.mxu0 0.0
    %1796 = vmatmul.mubr.f32.gmra.mrb[0].mxu0 %v1723
    %v1797 = vpop.f32.mrb[0].mxu0
    %v1798 = vadd.f32 %v1019, %v1797
    %v1799 = vpop.f32.mrb[0].mxu0
    %1800 = vmatprep.mubr.f32.mxu0 0.0
    %1801 = vmatmul.mubr.f32.gmra.mrb[0].mxu0 %v1724
    %v1802 = vpop.f32.mrb[0].mxu0
    %v1803 = vadd.f32 %v1019, %v1802
    %v1804 = vpop.f32.mrb[0].mxu0
    %1805 = vmatprep.mubr.f32.mxu0 0.0
    %1806 = vmatmul.mubr.f32.gmra.mrb[0].mxu0 %v1725
    %v1807 = vpop.f32.mrb[0].mxu0
    %v1808 = vadd.f32 %v1019, %v1807
    %v1809 = vpop.f32.mrb[0].mxu0
    %1810 = vdwg.mxu0
    %v1811 = vmax.f32 %v1793, 0.0
    %v1812 = vmax.f32 %v1798, 0.0
    %v1813 = vmax.f32 %v1803, 0.0
    %v1814 = vmax.f32 %v1808, 0.0
    %1815 = vmatprep.subr.mxu0 0.0
    %1816 = vmatpush1.msra.mxu0 %v1000
    %1817 = vmatprep.subr.mxu0 0.0
    %1818 = vmatpush1.msra.mxu0 %v1001
    %1819 = vmatprep.subr.mxu0 0.0
    %1820 = vmatpush1.msra.mxu0 %v1002
    %1821 = vmatprep.subr.mxu0 0.0
    %1822 = vmatpush1.msra.mxu0 %v1003
    %1823 = vmatprep.subr.mxu0 0.0
    %1824 = vmatpush1.msra.mxu0 %v1004
    %1825 = vmatprep.subr.mxu0 0.0
    %1826 = vmatpush1.msra.mxu0 %v1005
    %1827 = vmatprep.subr.mxu0 0.0
    %1828 = vmatpush1.msra.mxu0 %v1006
    %1829 = vmatprep.subr.mxu0 0.0
    %1830 = vmatpush1.msra.mxu0 %v1007
    %1831 = vmatprep.subr.mxu0 0.0
    %1832 = vmatpush1.msra.mxu0 %v1008
    %1833 = vmatprep.subr.mxu0 0.0
    %1834 = vmatpush1.msra.mxu0 %v1009
    %1835 = vmatprep.subr.mxu0 0.0
    %1836 = vmatpush1.msra.mxu0 %v1010
    %1837 = vmatprep.subr.mxu0 0.0
    %1838 = vmatpush1.msra.mxu0 %v1011
    %1839 = vmatprep.subr.mxu0 0.0
    %1840 = vmatpush1.msra.mxu0 %v1012
    %1841 = vmatprep.subr.mxu0 0.0
    %1842 = vmatpush1.msra.mxu0 %v1013
    %1843 = vmatprep.subr.mxu0 0.0
    %1844 = vmatpush1.msra.mxu0 %v1014
    %1845 = vmatprep.subr.mxu0 0.0
    %1846 = vmatpush1.msra.mxu0 %v1015
    %1847 = vmatprep.subr.mxu0 0.0
    %1848 = vmatpush1.msra.mxu0 0.0
    %1849 = vmatprep.subr.mxu0 0.0
    %1850 = vmatpush1.msra.mxu0 0.0
    %1851 = vmatprep.subr.mxu0 0.0
    %1852 = vmatpush1.msra.mxu0 0.0
    %1853 = vmatprep.subr.mxu0 0.0
    %1854 = vmatpush1.msra.mxu0 0.0
    %1855 = vmatprep.subr.mxu0 0.0
    %1856 = vmatpush1.msra.mxu0 0.0
    %1857 = vmatprep.subr.mxu0 0.0
    %1858 = vmatpush1.msra.mxu0 0.0
    %1859 = vmatprep.subr.mxu0 0.0
    %1860 = vmatpush1.msra.mxu0 0.0
    %1861 = vmatprep.subr.mxu0 0.0
    %1862 = vmatpush1.msra.mxu0 0.0
    %1863 = vmatprep.subr.mxu0 0.0
    %1864 = vmatpush1.msra.mxu0 0.0
    %1865 = vmatprep.subr.mxu0 0.0
    %1866 = vmatpush1.msra.mxu0 0.0
    %1867 = vmatprep.subr.mxu0 0.0
    %1868 = vmatpush1.msra.mxu0 0.0
    %1869 = vmatprep.subr.mxu0 0.0
    %1870 = vmatpush1.msra.mxu0 0.0
    %1871 = vmatprep.subr.mxu0 0.0
    %1872 = vmatpush1.msra.mxu0 0.0
    %1873 = vmatprep.subr.mxu0 0.0
    %1874 = vmatpush1.msra.mxu0 0.0
    %1875 = vmatprep.subr.mxu0 0.0
    %1876 = vmatpush1.msra.mxu0 0.0
    %1877 = vmatprep.subr.mxu0 0.0
    %1878 = vmatpush1.msra.mxu0 0.0
    %1879 = vmatprep.mubr.f32.mxu0 0.0
    %1880 = vmatmul.mubr.f32.gmra.mrb[0].mxu0 %v1811
    %v1881 = vpop.f32.mrb[0].mxu0
    %v1882 = vadd.f32 0.0, %v1881
    %v1883 = vpop.f32.mrb[0].mxu0
    %1884 = vmatprep.mubr.f32.mxu0 0.0
    %1885 = vmatmul.mubr.f32.gmra.mrb[0].mxu0 %v1812
    %v1886 = vpop.f32.mrb[0].mxu0
    %v1887 = vadd.f32 0.0, %v1886
    %v1888 = vpop.f32.mrb[0].mxu0
    %1889 = vmatprep.mubr.f32.mxu0 0.0
    %1890 = vmatmul.mubr.f32.gmra.mrb[0].mxu0 %v1813
    %v1891 = vpop.f32.mrb[0].mxu0
    %v1892 = vadd.f32 0.0, %v1891
    %v1893 = vpop.f32.mrb[0].mxu0
    %1894 = vmatprep.mubr.f32.mxu0 0.0
    %1895 = vmatmul.mubr.f32.gmra.mrb[0].mxu0 %v1814
    %v1896 = vpop.f32.mrb[0].mxu0
    %v1897 = vadd.f32 0.0, %v1896
    %v1898 = vpop.f32.mrb[0].mxu0
    %1899 = vdwg.mxu0
    %v1900 = vmax.f32 %v1442, %v1882
    %v1901 = vmax.f32 %v1447, %v1887
    %v1902 = vmax.f32 %v1452, %v1892
    %v1903 = vmax.f32 %v1457, %v1897
    %v1904 = vsel %vm957, %v1544, -inf
    %1905 = vmax.xlane.f32.xlu0 %v1904
    %v1906 = vpop.xlane.xlu0 %1905
    %v1907 = vsel %vm957, %v1545, -inf
    %1908 = vmax.xlane.f32.xlu0 %v1907
    %v1909 = vpop.xlane.xlu0 %1908
    %v1910 = vsel %vm957, %v1546, -inf
    %1911 = vmax.xlane.f32.xlu0 %v1910
    %v1912 = vpop.xlane.xlu0 %1911
    %v1913 = vsel %vm957, %v1547, -inf
    %1914 = vmax.xlane.f32.xlu0 %v1913
    %v1915 = vpop.xlane.xlu0 %1914
    %vm1916 = vcmp.eq.f32.partialorder %v1544, %v1906
    %vm1917 = vcmp.eq.f32.partialorder %v1545, %v1909
    %vm1918 = vcmp.eq.f32.partialorder %v1546, %v1912
    %vm1919 = vcmp.eq.f32.partialorder %v1547, %v1915
    %v1920 = vsel %vm1916, %v950, 16
    %v1921 = vsel %vm1917, %v950, 16
    %v1922 = vsel %vm1918, %v950, 16
    %v1923 = vsel %vm1919, %v950, 16
    %v1924 = vsel %vm957, %v1920, 2147483647
    %v1925 = vand.u32 %v1924, 65535
    %v1926 = vshra.s32 %v1924, 16
    %v1927 = vcvt.s32.f32 %v1925
    %v1928 = vcvt.s32.f32 %v1926
    %1929 = vmin.xlane.f32.xlu0 %v1928
    %v1930 = vpop.xlane.xlu0 %1929
    %vm1931 = vcmp.eq.f32.partialorder %v1928, %v1930
    %v1932 = vsel %vm1931, %v1927, inf
    %1933 = vmin.xlane.f32.xlu0 %v1932
    %v1934 = vpop.xlane.xlu0 %1933
    %v1935 = vcvt.f32.s32 %v1934
    %v1936 = vcvt.f32.s32 %v1930
    %v1937 = vshll.u32 %v1936, 16
    %v1938 = vadd.s32 %v1937, %v1935
    %v1939 = vsel %vm957, %v1921, 2147483647
    %v1940 = vand.u32 %v1939, 65535
    %v1941 = vshra.s32 %v1939, 16
    %v1942 = vcvt.s32.f32 %v1940
    %v1943 = vcvt.s32.f32 %v1941
    %1944 = vmin.xlane.f32.xlu0 %v1943
    %v1945 = vpop.xlane.xlu0 %1944
    %vm1946 = vcmp.eq.f32.partialorder %v1943, %v1945
    %v1947 = vsel %vm1946, %v1942, inf
    %1948 = vmin.xlane.f32.xlu0 %v1947
    %v1949 = vpop.xlane.xlu0 %1948
    %v1950 = vcvt.f32.s32 %v1949
    %v1951 = vcvt.f32.s32 %v1945
    %v1952 = vshll.u32 %v1951, 16
    %v1953 = vadd.s32 %v1952, %v1950
    %v1954 = vsel %vm957, %v1922, 2147483647
    %v1955 = vand.u32 %v1954, 65535
    %v1956 = vshra.s32 %v1954, 16
    %v1957 = vcvt.s32.f32 %v1955
    %v1958 = vcvt.s32.f32 %v1956
    %1959 = vmin.xlane.f32.xlu0 %v1958
    %v1960 = vpop.xlane.xlu0 %1959
    %vm1961 = vcmp.eq.f32.partialorder %v1958, %v1960
    %v1962 = vsel %vm1961, %v1957, inf
    %1963 = vmin.xlane.f32.xlu0 %v1962
    %v1964 = vpop.xlane.xlu0 %1963
    %v1965 = vcvt.f32.s32 %v1964
    %v1966 = vcvt.f32.s32 %v1960
    %v1967 = vshll.u32 %v1966, 16
    %v1968 = vadd.s32 %v1967, %v1965
    %v1969 = vsel %vm957, %v1923, 2147483647
    %v1970 = vand.u32 %v1969, 65535
    %v1971 = vshra.s32 %v1969, 16
    %v1972 = vcvt.s32.f32 %v1970
    %v1973 = vcvt.s32.f32 %v1971
    %1974 = vmin.xlane.f32.xlu0 %v1973
    %v1975 = vpop.xlane.xlu0 %1974
    %vm1976 = vcmp.eq.f32.partialorder %v1973, %v1975
    %v1977 = vsel %vm1976, %v1972, inf
    %1978 = vmin.xlane.f32.xlu0 %v1977
    %v1979 = vpop.xlane.xlu0 %1978
    %v1980 = vcvt.f32.s32 %v1979
    %v1981 = vcvt.f32.s32 %v1975
    %v1982 = vshll.u32 %v1981, 16
    %v1983 = vadd.s32 %v1982, %v1980
    %vm1984 = vcmp.eq.s32.totalorder %v950, %v1938
    %vm1985 = vcmp.eq.s32.totalorder %v950, %v1953
    %vm1986 = vcmp.eq.s32.totalorder %v950, %v1968
    %vm1987 = vcmp.eq.s32.totalorder %v950, %v1983
    %v1988 = vsel %vm1984, 1, 0
    %v1989 = vsel %vm1985, 1, 0
    %v1990 = vsel %vm1986, 1, 0
    %v1991 = vsel %vm1987, 1, 0
    %v1992 = vcvt.s32.f32 %v1988
    %v1993 = vcvt.s32.f32 %v1989
    %v1994 = vcvt.s32.f32 %v1990
    %v1995 = vcvt.s32.f32 %v1991
    %v1997 = vsel %vm957, %v1992, 0
    %v2000 = vsel %vm957, %v1993, 0
    %2002 = vmatprep.subr.mxu0 0.0
    %2003 = vmatpush1.msra.mxu0 %v232
    %2004 = vmatprep.subr.mxu0 0.0
    %2005 = vmatpush1.msra.mxu0 %v237
    %2006 = vmatprep.subr.mxu0 0.0
    %2007 = vmatpush1.msra.mxu0 0.0
    %2008 = vmatprep.subr.mxu0 0.0
    %2009 = vmatpush1.msra.mxu0 0.0
    %2010 = vmatprep.subr.mxu0 0.0
    %2011 = vmatpush1.msra.mxu0 0.0
    %2012 = vmatprep.subr.mxu0 0.0
    %2013 = vmatpush1.msra.mxu0 0.0
    %2014 = vmatprep.subr.mxu0 0.0
    %2015 = vmatpush1.msra.mxu0 0.0
    %2016 = vmatprep.subr.mxu0 0.0
    %2017 = vmatpush1.msra.mxu0 0.0
    %2018 = vmatprep.subr.mxu0 0.0
    %2019 = vmatpush1.msra.mxu0 0.0
    %2020 = vmatprep.subr.mxu0 0.0
    %2021 = vmatpush1.msra.mxu0 0.0
    %2022 = vmatprep.subr.mxu0 0.0
    %2023 = vmatpush1.msra.mxu0 0.0
    %2024 = vmatprep.subr.mxu0 0.0
    %2025 = vmatpush1.msra.mxu0 0.0
    %2026 = vmatprep.subr.mxu0 0.0
    %2027 = vmatpush1.msra.mxu0 0.0
    %2028 = vmatprep.subr.mxu0 0.0
    %2029 = vmatpush1.msra.mxu0 0.0
    %2030 = vmatprep.subr.mxu0 0.0
    %2031 = vmatpush1.msra.mxu0 0.0
    %2032 = vmatprep.subr.mxu0 0.0
    %2033 = vmatpush1.msra.mxu0 0.0
    %2034 = vmatprep.subr.mxu0 0.0
    %2035 = vmatpush1.msra.mxu0 0.0
    %2036 = vmatprep.subr.mxu0 0.0
    %2037 = vmatpush1.msra.mxu0 0.0
    %2038 = vmatprep.subr.mxu0 0.0
    %2039 = vmatpush1.msra.mxu0 0.0
    %2040 = vmatprep.subr.mxu0 0.0
    %2041 = vmatpush1.msra.mxu0 0.0
    %2042 = vmatprep.subr.mxu0 0.0
    %2043 = vmatpush1.msra.mxu0 0.0
    %2044 = vmatprep.subr.mxu0 0.0
    %2045 = vmatpush1.msra.mxu0 0.0
    %2046 = vmatprep.subr.mxu0 0.0
    %2047 = vmatpush1.msra.mxu0 0.0
    %2048 = vmatprep.subr.mxu0 0.0
    %2049 = vmatpush1.msra.mxu0 0.0
    %2050 = vmatprep.subr.mxu0 0.0
    %2051 = vmatpush1.msra.mxu0 0.0
    %2052 = vmatprep.subr.mxu0 0.0
    %2053 = vmatpush1.msra.mxu0 0.0
    %2054 = vmatprep.subr.mxu0 0.0
    %2055 = vmatpush1.msra.mxu0 0.0
    %2056 = vmatprep.subr.mxu0 0.0
    %2057 = vmatpush1.msra.mxu0 0.0
    %2058 = vmatprep.subr.mxu0 0.0
    %2059 = vmatpush1.msra.mxu0 0.0
    %2060 = vmatprep.subr.mxu0 0.0
    %2061 = vmatpush1.msra.mxu0 0.0
    %2062 = vmatprep.subr.mxu0 0.0
    %2063 = vmatpush1.msra.mxu0 0.0
    %2064 = vmatprep.subr.mxu0 0.0
    %2065 = vmatpush1.msra.mxu0 0.0
    %2066 = vmatprep.mubr.f32.mxu0 0.0
    %2067 = vmatmul.mubr.f32.gmra.mrb[0].mxu0 %v1997
    %v2068 = vpop.f32.mrb[0].mxu0
    %v2069 = vadd.f32 0.0, %v2068
    %v2070 = vpop.f32.mrb[0].mxu0
    %2071 = vmatprep.mubr.f32.mxu0 0.0
    %2072 = vmatmul.mubr.f32.gmra.mrb[0].mxu0 %v2000
    %v2073 = vpop.f32.mrb[0].mxu0
    %v2074 = vadd.f32 0.0, %v2073
    %v2075 = vpop.f32.mrb[0].mxu0
    %2076 = vdwg.mxu0
    %v2078 = vsel %vm957, %v1994, 0
    %v2081 = vsel %vm957, %v1995, 0
    %2083 = vmatprep.subr.mxu0 0.0
    %2084 = vmatpush1.msra.mxu0 %v242
    %2085 = vmatprep.subr.mxu0 0.0
    %2086 = vmatpush1.msra.mxu0 %v247
    %2087 = vmatprep.subr.mxu0 0.0
    %2088 = vmatpush1.msra.mxu0 0.0
    %2089 = vmatprep.subr.mxu0 0.0
    %2090 = vmatpush1.msra.mxu0 0.0
    %2091 = vmatprep.subr.mxu0 0.0
    %2092 = vmatpush1.msra.mxu0 0.0
    %2093 = vmatprep.subr.mxu0 0.0
    %2094 = vmatpush1.msra.mxu0 0.0
    %2095 = vmatprep.subr.mxu0 0.0
    %2096 = vmatpush1.msra.mxu0 0.0
    %2097 = vmatprep.subr.mxu0 0.0
    %2098 = vmatpush1.msra.mxu0 0.0
    %2099 = vmatprep.subr.mxu0 0.0
    %2100 = vmatpush1.msra.mxu0 0.0
    %2101 = vmatprep.subr.mxu0 0.0
    %2102 = vmatpush1.msra.mxu0 0.0
    %2103 = vmatprep.subr.mxu0 0.0
    %2104 = vmatpush1.msra.mxu0 0.0
    %2105 = vmatprep.subr.mxu0 0.0
    %2106 = vmatpush1.msra.mxu0 0.0
    %2107 = vmatprep.subr.mxu0 0.0
    %2108 = vmatpush1.msra.mxu0 0.0
    %2109 = vmatprep.subr.mxu0 0.0
    %2110 = vmatpush1.msra.mxu0 0.0
    %2111 = vmatprep.subr.mxu0 0.0
    %2112 = vmatpush1.msra.mxu0 0.0
    %2113 = vmatprep.subr.mxu0 0.0
    %2114 = vmatpush1.msra.mxu0 0.0
    %2115 = vmatprep.subr.mxu0 0.0
    %2116 = vmatpush1.msra.mxu0 0.0
    %2117 = vmatprep.subr.mxu0 0.0
    %2118 = vmatpush1.msra.mxu0 0.0
    %2119 = vmatprep.subr.mxu0 0.0
    %2120 = vmatpush1.msra.mxu0 0.0
    %2121 = vmatprep.subr.mxu0 0.0
    %2122 = vmatpush1.msra.mxu0 0.0
    %2123 = vmatprep.subr.mxu0 0.0
    %2124 = vmatpush1.msra.mxu0 0.0
    %2125 = vmatprep.subr.mxu0 0.0
    %2126 = vmatpush1.msra.mxu0 0.0
    %2127 = vmatprep.subr.mxu0 0.0
    %2128 = vmatpush1.msra.mxu0 0.0
    %2129 = vmatprep.subr.mxu0 0.0
    %2130 = vmatpush1.msra.mxu0 0.0
    %2131 = vmatprep.subr.mxu0 0.0
    %2132 = vmatpush1.msra.mxu0 0.0
    %2133 = vmatprep.subr.mxu0 0.0
    %2134 = vmatpush1.msra.mxu0 0.0
    %2135 = vmatprep.subr.mxu0 0.0
    %2136 = vmatpush1.msra.mxu0 0.0
    %2137 = vmatprep.subr.mxu0 0.0
    %2138 = vmatpush1.msra.mxu0 0.0
    %2139 = vmatprep.subr.mxu0 0.0
    %2140 = vmatpush1.msra.mxu0 0.0
    %2141 = vmatprep.subr.mxu0 0.0
    %2142 = vmatpush1.msra.mxu0 0.0
    %2143 = vmatprep.subr.mxu0 0.0
    %2144 = vmatpush1.msra.mxu0 0.0
    %2145 = vmatprep.subr.mxu0 0.0
    %2146 = vmatpush1.msra.mxu0 0.0
    %2147 = vmatprep.mubr.f32.mxu0 0.0
    %2148 = vmatmul.mubr.f32.gmra.mrb[0].mxu0 %v2078
    %v2149 = vpop.f32.mrb[0].mxu0
    %v2150 = vadd.f32 0.0, %v2149
    %v2151 = vpop.f32.mrb[0].mxu0
    %2152 = vmatprep.mubr.f32.mxu0 0.0
    %2153 = vmatmul.mubr.f32.gmra.mrb[0].mxu0 %v2081
    %v2154 = vpop.f32.mrb[0].mxu0
    %v2155 = vadd.f32 0.0, %v2154
    %v2156 = vpop.f32.mrb[0].mxu0
    %2157 = vdwg.mxu0
    %v2158 = vadd.f32 %v2069, %v266
    %v2159 = vadd.f32 %v2074, %v267
    %v2160 = vadd.f32 %v2150, %v268
    %v2161 = vadd.f32 %v2155, %v269
    %v2162 = vmax.f32 %v2158, 0.0
    %v2163 = vmax.f32 %v2159, 0.0
    %v2164 = vmax.f32 %v2160, 0.0
    %v2165 = vmax.f32 %v2161, 0.0
    %2166 = vmatprep.subr.mxu0 0.0
    %2167 = vmatpush1.msra.mxu0 %v984
    %2168 = vmatprep.subr.mxu0 0.0
    %2169 = vmatpush1.msra.mxu0 %v985
    %2170 = vmatprep.subr.mxu0 0.0
    %2171 = vmatpush1.msra.mxu0 %v986
    %2172 = vmatprep.subr.mxu0 0.0
    %2173 = vmatpush1.msra.mxu0 %v987
    %2174 = vmatprep.subr.mxu0 0.0
    %2175 = vmatpush1.msra.mxu0 %v988
    %2176 = vmatprep.subr.mxu0 0.0
    %2177 = vmatpush1.msra.mxu0 %v989
    %2178 = vmatprep.subr.mxu0 0.0
    %2179 = vmatpush1.msra.mxu0 %v990
    %2180 = vmatprep.subr.mxu0 0.0
    %2181 = vmatpush1.msra.mxu0 %v991
    %2182 = vmatprep.subr.mxu0 0.0
    %2183 = vmatpush1.msra.mxu0 %v992
    %2184 = vmatprep.subr.mxu0 0.0
    %2185 = vmatpush1.msra.mxu0 %v993
    %2186 = vmatprep.subr.mxu0 0.0
    %2187 = vmatpush1.msra.mxu0 %v994
    %2188 = vmatprep.subr.mxu0 0.0
    %2189 = vmatpush1.msra.mxu0 %v995
    %2190 = vmatprep.subr.mxu0 0.0
    %2191 = vmatpush1.msra.mxu0 %v996
    %2192 = vmatprep.subr.mxu0 0.0
    %2193 = vmatpush1.msra.mxu0 %v997
    %2194 = vmatprep.subr.mxu0 0.0
    %2195 = vmatpush1.msra.mxu0 %v998
    %2196 = vmatprep.subr.mxu0 0.0
    %2197 = vmatpush1.msra.mxu0 %v999
    %2198 = vmatprep.subr.mxu0 0.0
    %2199 = vmatpush1.msra.mxu0 0.0
    %2200 = vmatprep.subr.mxu0 0.0
    %2201 = vmatpush1.msra.mxu0 0.0
    %2202 = vmatprep.subr.mxu0 0.0
    %2203 = vmatpush1.msra.mxu0 0.0
    %2204 = vmatprep.subr.mxu0 0.0
    %2205 = vmatpush1.msra.mxu0 0.0
    %2206 = vmatprep.subr.mxu0 0.0
    %2207 = vmatpush1.msra.mxu0 0.0
    %2208 = vmatprep.subr.mxu0 0.0
    %2209 = vmatpush1.msra.mxu0 0.0
    %2210 = vmatprep.subr.mxu0 0.0
    %2211 = vmatpush1.msra.mxu0 0.0
    %2212 = vmatprep.subr.mxu0 0.0
    %2213 = vmatpush1.msra.mxu0 0.0
    %2214 = vmatprep.subr.mxu0 0.0
    %2215 = vmatpush1.msra.mxu0 0.0
    %2216 = vmatprep.subr.mxu0 0.0
    %2217 = vmatpush1.msra.mxu0 0.0
    %2218 = vmatprep.subr.mxu0 0.0
    %2219 = vmatpush1.msra.mxu0 0.0
    %2220 = vmatprep.subr.mxu0 0.0
    %2221 = vmatpush1.msra.mxu0 0.0
    %2222 = vmatprep.subr.mxu0 0.0
    %2223 = vmatpush1.msra.mxu0 0.0
    %2224 = vmatprep.subr.mxu0 0.0
    %2225 = vmatpush1.msra.mxu0 0.0
    %2226 = vmatprep.subr.mxu0 0.0
    %2227 = vmatpush1.msra.mxu0 0.0
    %2228 = vmatprep.subr.mxu0 0.0
    %2229 = vmatpush1.msra.mxu0 0.0
    %2230 = vmatprep.mubr.f32.mxu0 0.0
    %2231 = vmatmul.mubr.f32.gmra.mrb[0].mxu0 %v2162
    %v2232 = vpop.f32.mrb[0].mxu0
    %v2233 = vadd.f32 %v1019, %v2232
    %v2234 = vpop.f32.mrb[0].mxu0
    %2235 = vmatprep.mubr.f32.mxu0 0.0
    %2236 = vmatmul.mubr.f32.gmra.mrb[0].mxu0 %v2163
    %v2237 = vpop.f32.mrb[0].mxu0
    %v2238 = vadd.f32 %v1019, %v2237
    %v2239 = vpop.f32.mrb[0].mxu0
    %2240 = vmatprep.mubr.f32.mxu0 0.0
    %2241 = vmatmul.mubr.f32.gmra.mrb[0].mxu0 %v2164
    %v2242 = vpop.f32.mrb[0].mxu0
    %v2243 = vadd.f32 %v1019, %v2242
    %v2244 = vpop.f32.mrb[0].mxu0
    %2245 = vmatprep.mubr.f32.mxu0 0.0
    %2246 = vmatmul.mubr.f32.gmra.mrb[0].mxu0 %v2165
    %v2247 = vpop.f32.mrb[0].mxu0
    %v2248 = vadd.f32 %v1019, %v2247
    %v2249 = vpop.f32.mrb[0].mxu0
    %2250 = vdwg.mxu0
    %v2251 = vmax.f32 %v2233, 0.0
    %v2252 = vmax.f32 %v2238, 0.0
    %v2253 = vmax.f32 %v2243, 0.0
    %v2254 = vmax.f32 %v2248, 0.0
    %2255 = vmatprep.subr.mxu0 0.0
    %2256 = vmatpush1.msra.mxu0 %v1000
    %2257 = vmatprep.subr.mxu0 0.0
    %2258 = vmatpush1.msra.mxu0 %v1001
    %2259 = vmatprep.subr.mxu0 0.0
    %2260 = vmatpush1.msra.mxu0 %v1002
    %2261 = vmatprep.subr.mxu0 0.0
    %2262 = vmatpush1.msra.mxu0 %v1003
    %2263 = vmatprep.subr.mxu0 0.0
    %2264 = vmatpush1.msra.mxu0 %v1004
    %2265 = vmatprep.subr.mxu0 0.0
    %2266 = vmatpush1.msra.mxu0 %v1005
    %2267 = vmatprep.subr.mxu0 0.0
    %2268 = vmatpush1.msra.mxu0 %v1006
    %2269 = vmatprep.subr.mxu0 0.0
    %2270 = vmatpush1.msra.mxu0 %v1007
    %2271 = vmatprep.subr.mxu0 0.0
    %2272 = vmatpush1.msra.mxu0 %v1008
    %2273 = vmatprep.subr.mxu0 0.0
    %2274 = vmatpush1.msra.mxu0 %v1009
    %2275 = vmatprep.subr.mxu0 0.0
    %2276 = vmatpush1.msra.mxu0 %v1010
    %2277 = vmatprep.subr.mxu0 0.0
    %2278 = vmatpush1.msra.mxu0 %v1011
    %2279 = vmatprep.subr.mxu0 0.0
    %2280 = vmatpush1.msra.mxu0 %v1012
    %2281 = vmatprep.subr.mxu0 0.0
    %2282 = vmatpush1.msra.mxu0 %v1013
    %2283 = vmatprep.subr.mxu0 0.0
    %2284 = vmatpush1.msra.mxu0 %v1014
    %2285 = vmatprep.subr.mxu0 0.0
    %2286 = vmatpush1.msra.mxu0 %v1015
    %2287 = vmatprep.subr.mxu0 0.0
    %2288 = vmatpush1.msra.mxu0 0.0
    %2289 = vmatprep.subr.mxu0 0.0
    %2290 = vmatpush1.msra.mxu0 0.0
    %2291 = vmatprep.subr.mxu0 0.0
    %2292 = vmatpush1.msra.mxu0 0.0
    %2293 = vmatprep.subr.mxu0 0.0
    %2294 = vmatpush1.msra.mxu0 0.0
    %2295 = vmatprep.subr.mxu0 0.0
    %2296 = vmatpush1.msra.mxu0 0.0
    %2297 = vmatprep.subr.mxu0 0.0
    %2298 = vmatpush1.msra.mxu0 0.0
    %2299 = vmatprep.subr.mxu0 0.0
    %2300 = vmatpush1.msra.mxu0 0.0
    %2301 = vmatprep.subr.mxu0 0.0
    %2302 = vmatpush1.msra.mxu0 0.0
    %2303 = vmatprep.subr.mxu0 0.0
    %2304 = vmatpush1.msra.mxu0 0.0
    %2305 = vmatprep.subr.mxu0 0.0
    %2306 = vmatpush1.msra.mxu0 0.0
    %2307 = vmatprep.subr.mxu0 0.0
    %2308 = vmatpush1.msra.mxu0 0.0
    %2309 = vmatprep.subr.mxu0 0.0
    %2310 = vmatpush1.msra.mxu0 0.0
    %2311 = vmatprep.subr.mxu0 0.0
    %2312 = vmatpush1.msra.mxu0 0.0
    %2313 = vmatprep.subr.mxu0 0.0
    %2314 = vmatpush1.msra.mxu0 0.0
    %2315 = vmatprep.subr.mxu0 0.0
    %2316 = vmatpush1.msra.mxu0 0.0
    %2317 = vmatprep.subr.mxu0 0.0
    %2318 = vmatpush1.msra.mxu0 0.0
    %2319 = vmatprep.mubr.f32.mxu0 0.0
    %2320 = vmatmul.mubr.f32.gmra.mrb[0].mxu0 %v2251
    %v2321 = vpop.f32.mrb[0].mxu0
    %v2322 = vadd.f32 0.0, %v2321
    %v2323 = vpop.f32.mrb[0].mxu0
    %2324 = vmatprep.mubr.f32.mxu0 0.0
    %2325 = vmatmul.mubr.f32.gmra.mrb[0].mxu0 %v2252
    %v2326 = vpop.f32.mrb[0].mxu0
    %v2327 = vadd.f32 0.0, %v2326
    %v2328 = vpop.f32.mrb[0].mxu0
    %2329 = vmatprep.mubr.f32.mxu0 0.0
    %2330 = vmatmul.mubr.f32.gmra.mrb[0].mxu0 %v2253
    %v2331 = vpop.f32.mrb[0].mxu0
    %v2332 = vadd.f32 0.0, %v2331
    %v2333 = vpop.f32.mrb[0].mxu0
    %2334 = vmatprep.mubr.f32.mxu0 0.0
    %2335 = vmatmul.mubr.f32.gmra.mrb[0].mxu0 %v2254
    %v2336 = vpop.f32.mrb[0].mxu0
    %v2337 = vadd.f32 0.0, %v2336
    %v2338 = vpop.f32.mrb[0].mxu0
    %2339 = vdwg.mxu0
    %v2340 = vmax.f32 %v1900, %v2322
    %v2341 = vmax.f32 %v1901, %v2327
    %v2342 = vmax.f32 %v1902, %v2332
    %v2343 = vmax.f32 %v1903, %v2337
    %v2344 = vlaneseq
    %v2345 = vshrl.u32 %v2344, 7
    %v2346 = vsub.s32 0, %v2345
    %v2347 = vrot.slane %v50, %v2346
    %v2348 = vadd.f32 %v2340, %v2347
    %v2349 = vadd.f32 %v2341, %v2347
    %v2350 = vadd.f32 %v2342, %v2347
    %v2351 = vadd.f32 %v2343, %v2347
    %v2352 = vadd.f32 %v781, %v41
    %v2353 = vadd.f32 %v786, %v42
    %v2354 = vadd.f32 %v791, %v43
    %v2355 = vadd.f32 %v796, %v44
    %v2356 = vadd.f32 %v2352, %v2348
    %v2357 = vadd.f32 %v2353, %v2349
    %v2358 = vadd.f32 %v2354, %v2350
    %v2359 = vadd.f32 %v2355, %v2351
    %v2360 = vmax.f32 %v2356, 0.0
    %v2361 = vmax.f32 %v2357, 0.0
    %v2362 = vmax.f32 %v2358, 0.0
    %v2363 = vmax.f32 %v2359, 0.0
    %2364 = vst.msk [vmem:[#allocation5] sm:$0xff] %vm63, %v2360
    %2365 = vst.msk [vmem:[#allocation5 + $0x8] sm:$0xff] %vm63, %v2361
    %2366 = vst.msk [vmem:[#allocation5 + $0x10] sm:$0xff] %vm63, %v2362
    %2367 = vst.msk [vmem:[#allocation5 + $0x18] sm:$0xff] %vm63, %v2363
    // Predicated region
    $region34: #{tpu_custom_call.1} parent=1 // pred_check
      _
    $region35: #{tpu_custom_call.1} parent=1 // pred_check_branch
      %2369 = sbr.rel (0) target = $region37
    $region36: #{tpu_custom_call.1} parent=1 // pred_region
      %s2371 = ssub.s32 512, 512
      %2372 = vsyncadd [#allocation4], %s2371
      %s2373 = sshll.u32 [#allocation5], 4
      %s2374 = int_to_ptr.vmem [resolvable:$true] %s2373
      %2379 = dma.vmem_to_hbm [thread:$0]  %s2374, 512, %s7, [#allocation4], 128, 128, 8
    $region37: #{tpu_custom_call.1} parent=1 // pred_fallthru
      _
    // Predicated region
    $region38: #{tpu_custom_call.1} parent=1 // pred_check
      _
    $region39: #{tpu_custom_call.1} parent=1 // pred_check_branch
      %2381 = sbr.rel (0) target = $region41
    $region40: #{tpu_custom_call.1} parent=1 // pred_region
      %2382 = dma.done [#allocation4], 512
    $region41: #{tpu_custom_call.1} parent=1 // pred_fallthru
      _
    %2383 = vsyncpa [#allocation3], 1
    %2384 = vsyncpa [#allocation4], 1

// kernel: tpu_custom_call.1
$region0: #{tpu_custom_call.1}
  #allocation0 [shape = 'u32[]', space=smem, size = 0x4, offset = 0x4, fixed_abs, tag = 'smem constant byte address 0x4 - core index']
  #allocation1 [shape = 'u32[144,128]{1,0:T(1,128)}', space=vmem, size = 0x12000, scoped, tag = 'internal scratch']
  %s0 = inlined_call_operand.vmem [shape: f32[2,16,32], index: 0, kind: input, shape index: {}]
  %s1 = inlined_call_operand.vmem [shape: f32[32,384], index: 1, kind: input, shape index: {}]
  %s2 = inlined_call_operand.hbm [shape: f32[3,128,128], index: 2, kind: input, shape index: {}]
  %s3 = inlined_call_operand.vmem [shape: f32[128,32], index: 3, kind: input, shape index: {}]
  %s4 = inlined_call_operand.vmem [shape: f32[128,128], index: 4, kind: input, shape index: {}]
  %s5 = inlined_call_operand.vmem [shape: f32[128,32], index: 5, kind: input, shape index: {}]
  %s6 = inlined_call_operand.vmem [shape: f32[8,128], index: 6, kind: input, shape index: {}]
  %s7 = inlined_call_operand.hbm [shape: f32[2,16,32], index: 7, kind: output, shape index: {}]
  %s8 = sld [smem:[#allocation0]]
  $region42: #{tpu_custom_call.1} parent=0
    _
  %s10 = ssub.s32 1, %s8
  %s11 = scalar_select 0, %s10, %s8
  $region1: #{tpu_custom_call.1} parent=0
    #allocation2 [shape = 'u8[196608]{0}', space=vmem, size = 0x30000, scoped, tag = 'input window, operand 2, single buffered']
    #allocation3 [shape = 's32[1]{0}', space=sflag, size = 0x4, scoped, tag = 'scoped memory for tpu_custom_call.1']
    #allocation4 [shape = 's32[1]{0}', space=sflag, size = 0x4, scoped, tag = 'scoped memory for tpu_custom_call.1']
    #allocation5 [shape = 'u8[16384]{0}', space=vmem, size = 0x4000, scoped, tag = 'output window, operand 0, single buffered']
    %12 = vsyncpa [#allocation3], 0
    %13 = vsyncpa [#allocation4], 0
    // Predicated region
    $region2: #{tpu_custom_call.1} parent=1 // pred_check
      _
    $region3: #{tpu_custom_call.1} parent=1 // pred_check_branch
      %15 = sbr.rel (0) target = $region5
    $region4: #{tpu_custom_call.1} parent=1 // pred_region
      _
    $region5: #{tpu_custom_call.1} parent=1 // pred_fallthru
      _
    // Predicated region
    $region6: #{tpu_custom_call.1} parent=1 // pred_check
      _
    $region7: #{tpu_custom_call.1} parent=1 // pred_check_branch
      %17 = sbr.rel (0) target = $region9
    $region8: #{tpu_custom_call.1} parent=1 // pred_region
      _
    $region9: #{tpu_custom_call.1} parent=1 // pred_fallthru
      _
    // Predicated region
    $region10: #{tpu_custom_call.1} parent=1 // pred_check
      _
    $region11: #{tpu_custom_call.1} parent=1 // pred_check_branch
      %19 = sbr.rel (0) target = $region13
    $region12: #{tpu_custom_call.1} parent=1 // pred_region
      %s21 = ssub.s32 6144, 6144
      %22 = vsyncadd [#allocation3], %s21
      %s23 = sshll.u32 [#allocation2], 4
      %s24 = int_to_ptr.vmem [resolvable:$true] %s23
      %29 = dma.hbm_to_vmem [thread:$0]  %s2, 6144, %s24, [#allocation3], 128, 128, 8
    $region13: #{tpu_custom_call.1} parent=1 // pred_fallthru
      _
    // Predicated region
    $region14: #{tpu_custom_call.1} parent=1 // pred_check
      _
    $region15: #{tpu_custom_call.1} parent=1 // pred_check_branch
      %31 = sbr.rel (0) target = $region17
    $region16: #{tpu_custom_call.1} parent=1 // pred_region
      _
    $region17: #{tpu_custom_call.1} parent=1 // pred_fallthru
      _
    // Predicated region
    $region18: #{tpu_custom_call.1} parent=1 // pred_check
      _
    $region19: #{tpu_custom_call.1} parent=1 // pred_check_branch
      %33 = sbr.rel (0) target = $region21
    $region20: #{tpu_custom_call.1} parent=1 // pred_region
      _
    $region21: #{tpu_custom_call.1} parent=1 // pred_fallthru
      _
    // Predicated region
    $region22: #{tpu_custom_call.1} parent=1 // pred_check
      _
    $region23: #{tpu_custom_call.1} parent=1 // pred_check_branch
      %35 = sbr.rel (0) target = $region25
    $region24: #{tpu_custom_call.1} parent=1 // pred_region
      _
    $region25: #{tpu_custom_call.1} parent=1 // pred_fallthru
      _
    // Predicated region
    $region26: #{tpu_custom_call.1} parent=1 // pred_check
      _
    $region27: #{tpu_custom_call.1} parent=1 // pred_check_branch
      %37 = sbr.rel (0) target = $region29
    $region28: #{tpu_custom_call.1} parent=1 // pred_region
      _
    $region29: #{tpu_custom_call.1} parent=1 // pred_fallthru
      _
    // Predicated region
    $region30: #{tpu_custom_call.1} parent=1 // pred_check
      _
    $region31: #{tpu_custom_call.1} parent=1 // pred_check_branch
      %39 = sbr.rel (0) target = $region33
    $region32: #{tpu_custom_call.1} parent=1 // pred_region
      %40 = dma.done [#allocation3], 6144
    $region33: #{tpu_custom_call.1} parent=1 // pred_fallthru
      _
    %v41 = vld [vmem:[%s0] sm:$0xff]
    %v42 = vld [vmem:[%s0 + $0x8] sm:$0xff]
    %v43 = vld [vmem:[%s0 + $0x10] sm:$0xff]
    %v44 = vld [vmem:[%s0 + $0x18] sm:$0xff]
    %v45 = vld [vmem:[%s6] sm:$0x1]
    %v46 = vld [vmem:[%s6 + $0x1] sm:$0x1]
    %v47 = vld [vmem:[%s6 + $0x2] sm:$0x1]
    %v48 = vld [vmem:[%s6 + $0x3] sm:$0x1]
    %v49 = vld [vmem:[%s6 + $0x4] sm:$0x1]
    %v50 = vld [vmem:[%s6 + $0x5] sm:$0x1]
    %v51 = vld [vmem:[%s1] sm:$0xff]
    %v52 = vld [vmem:[%s1 + $0x8] sm:$0xff]
    %v53 = vld [vmem:[%s1 + $0x10] sm:$0xff]
    %v54 = vld [vmem:[%s1 + $0x18] sm:$0xff]
    %v55 = vld [vmem:[%s1 + $0x20] sm:$0xff]
    %v56 = vld [vmem:[%s1 + $0x28] sm:$0xff]
    %v57 = vld [vmem:[%s1 + $0x30] sm:$0xff]
    %v58 = vld [vmem:[%s1 + $0x38] sm:$0xff]
    %v59 = vld [vmem:[%s1 + $0x40] sm:$0xff]
    %v60 = vld [vmem:[%s1 + $0x48] sm:$0xff]
    %v61 = vld [vmem:[%s1 + $0x50] sm:$0xff]
    %v62 = vld [vmem:[%s1 + $0x58] sm:$0xff]
    %vm63 = vcmask 261120
    %v65 = vsel %vm63, %v41, 0
    %v68 = vsel %vm63, %v42, 0
    %v71 = vsel %vm63, %v43, 0
    %v74 = vsel %vm63, %v44, 0
    %76 = vmatprep.subr.mxu0 %v52
    %77 = vmatpush1.msra.mxu0 %v51
    %78 = vmatprep.subr.mxu0 %v55
    %79 = vmatpush1.msra.mxu0 %v54
    %80 = vmatprep.subr.mxu0 %v58
    %81 = vmatpush1.msra.mxu0 %v57
    %82 = vmatprep.subr.mxu0 %v61
    %83 = vmatpush1.msra.mxu0 %v60
    %84 = vmatprep.subr.mxu0 0.0
    %85 = vmatpush1.msra.mxu0 0.0
    %86 = vmatprep.subr.mxu0 0.0
    %87 = vmatpush1.msra.mxu0 0.0
    %88 = vmatprep.subr.mxu0 0.0
    %89 = vmatpush1.msra.mxu0 0.0
    %90 = vmatprep.subr.mxu0 0.0
    %91 = vmatpush1.msra.mxu0 0.0
    %92 = vmatprep.subr.mxu0 0.0
    %93 = vmatpush1.msra.mxu0 0.0
    %94 = vmatprep.subr.mxu0 0.0
    %95 = vmatpush1.msra.mxu0 0.0
    %96 = vmatprep.subr.mxu0 0.0
    %97 = vmatpush1.msra.mxu0 0.0
    %98 = vmatprep.subr.mxu0 0.0
    %99 = vmatpush1.msra.mxu0 0.0
    %100 = vmatprep.subr.mxu0 0.0
    %101 = vmatpush1.msra.mxu0 0.0
    %102 = vmatprep.subr.mxu0 0.0
    %103 = vmatpush1.msra.mxu0 0.0
    %104 = vmatprep.subr.mxu0 0.0
    %105 = vmatpush1.msra.mxu0 0.0
    %106 = vmatprep.subr.mxu0 0.0
    %107 = vmatpush1.msra.mxu0 0.0
    %108 = vmatprep.subr.mxu0 0.0
    %109 = vmatpush1.msra.mxu0 0.0
    %110 = vmatprep.subr.mxu0 0.0
    %111 = vmatpush1.msra.mxu0 0.0
    %112 = vmatprep.subr.mxu0 0.0
    %113 = vmatpush1.msra.mxu0 0.0
    %114 = vmatprep.subr.mxu0 0.0
    %115 = vmatpush1.msra.mxu0 0.0
    %116 = vmatprep.subr.mxu0 0.0
    %117 = vmatpush1.msra.mxu0 0.0
    %118 = vmatprep.subr.mxu0 0.0
    %119 = vmatpush1.msra.mxu0 0.0
    %120 = vmatprep.subr.mxu0 0.0
    %121 = vmatpush1.msra.mxu0 0.0
    %122 = vmatprep.subr.mxu0 0.0
    %123 = vmatpush1.msra.mxu0 0.0
    %124 = vmatprep.subr.mxu0 0.0
    %125 = vmatpush1.msra.mxu0 0.0
    %126 = vmatprep.subr.mxu0 0.0
    %127 = vmatpush1.msra.mxu0 0.0
    %128 = vmatprep.subr.mxu0 0.0
    %129 = vmatpush1.msra.mxu0 0.0
    %130 = vmatprep.subr.mxu0 0.0
    %131 = vmatpush1.msra.mxu0 0.0
    %132 = vmatprep.subr.mxu0 0.0
    %133 = vmatpush1.msra.mxu0 0.0
    %134 = vmatprep.subr.mxu0 0.0
    %135 = vmatpush1.msra.mxu0 0.0
    %136 = vmatprep.subr.mxu0 0.0
    %137 = vmatpush1.msra.mxu0 0.0
    %138 = vmatprep.subr.mxu0 0.0
    %139 = vmatpush1.msra.mxu0 0.0
    %140 = vmatprep.mubr.f32.mxu0 0.0
    %141 = vmatmul.mubr.f32.gmra.mrb[0].mxu0 %v65
    %v142 = vpop.f32.mrb[0].mxu0
    %v143 = vadd.f32 0.0, %v142
    %v144 = vpop.f32.mrb[0].mxu0
    %v145 = vadd.f32 0.0, %v144
    %146 = vmatprep.mubr.f32.mxu0 0.0
    %147 = vmatmul.mubr.f32.gmra.mrb[0].mxu0 %v68
    %v148 = vpop.f32.mrb[0].mxu0
    %v149 = vadd.f32 0.0, %v148
    %v150 = vpop.f32.mrb[0].mxu0
    %v151 = vadd.f32 0.0, %v150
    %152 = vmatprep.mubr.f32.mxu0 0.0
    %153 = vmatmul.mubr.f32.gmra.mrb[0].mxu0 %v71
    %v154 = vpop.f32.mrb[0].mxu0
    %v155 = vadd.f32 0.0, %v154
    %v156 = vpop.f32.mrb[0].mxu0
    %v157 = vadd.f32 0.0, %v156
    %158 = vmatprep.mubr.f32.mxu0 0.0
    %159 = vmatmul.mubr.f32.gmra.mrb[0].mxu0 %v74
    %v160 = vpop.f32.mrb[0].mxu0
    %v161 = vadd.f32 0.0, %v160
    %v162 = vpop.f32.mrb[0].mxu0
    %v163 = vadd.f32 0.0, %v162
    %164 = vdwg.mxu0
    %165 = vmatprep.subr.mxu0 0.0
    %166 = vmatpush1.msra.mxu0 %v53
    %167 = vmatprep.subr.mxu0 0.0
    %168 = vmatpush1.msra.mxu0 %v56
    %169 = vmatprep.subr.mxu0 0.0
    %170 = vmatpush1.msra.mxu0 %v59
    %171 = vmatprep.subr.mxu0 0.0
    %172 = vmatpush1.msra.mxu0 %v62
    %173 = vmatprep.subr.mxu0 0.0
    %174 = vmatpush1.msra.mxu0 0.0
    %175 = vmatprep.subr.mxu0 0.0
    %176 = vmatpush1.msra.mxu0 0.0
    %177 = vmatprep.subr.mxu0 0.0
    %178 = vmatpush1.msra.mxu0 0.0
    %179 = vmatprep.subr.mxu0 0.0
    %180 = vmatpush1.msra.mxu0 0.0
    %181 = vmatprep.subr.mxu0 0.0
    %182 = vmatpush1.msra.mxu0 0.0
    %183 = vmatprep.subr.mxu0 0.0
    %184 = vmatpush1.msra.mxu0 0.0
    %185 = vmatprep.subr.mxu0 0.0
    %186 = vmatpush1.msra.mxu0 0.0
    %187 = vmatprep.subr.mxu0 0.0
    %188 = vmatpush1.msra.mxu0 0.0
    %189 = vmatprep.subr.mxu0 0.0
    %190 = vmatpush1.msra.mxu0 0.0
    %191 = vmatprep.subr.mxu0 0.0
    %192 = vmatpush1.msra.mxu0 0.0
    %193 = vmatprep.subr.mxu0 0.0
    %194 = vmatpush1.msra.mxu0 0.0
    %195 = vmatprep.subr.mxu0 0.0
    %196 = vmatpush1.msra.mxu0 0.0
    %197 = vmatprep.subr.mxu0 0.0
    %198 = vmatpush1.msra.mxu0 0.0
    %199 = vmatprep.subr.mxu0 0.0
    %200 = vmatpush1.msra.mxu0 0.0
    %201 = vmatprep.subr.mxu0 0.0
    %202 = vmatpush1.msra.mxu0 0.0
    %203 = vmatprep.subr.mxu0 0.0
    %204 = vmatpush1.msra.mxu0 0.0
    %205 = vmatprep.subr.mxu0 0.0
    %206 = vmatpush1.msra.mxu0 0.0
    %207 = vmatprep.subr.mxu0 0.0
    %208 = vmatpush1.msra.mxu0 0.0
    %209 = vmatprep.subr.mxu0 0.0
    %210 = vmatpush1.msra.mxu0 0.0
    %211 = vmatprep.subr.mxu0 0.0
    %212 = vmatpush1.msra.mxu0 0.0
    %213 = vmatprep.subr.mxu0 0.0
    %214 = vmatpush1.msra.mxu0 0.0
    %215 = vmatprep.subr.mxu0 0.0
    %216 = vmatpush1.msra.mxu0 0.0
    %217 = vmatprep.subr.mxu0 0.0
    %218 = vmatpush1.msra.mxu0 0.0
    %219 = vmatprep.subr.mxu0 0.0
    %220 = vmatpush1.msra.mxu0 0.0
    %221 = vmatprep.subr.mxu0 0.0
    %222 = vmatpush1.msra.mxu0 0.0
    %223 = vmatprep.subr.mxu0 0.0
    %224 = vmatpush1.msra.mxu0 0.0
    %225 = vmatprep.subr.mxu0 0.0
    %226 = vmatpush1.msra.mxu0 0.0
    %227 = vmatprep.subr.mxu0 0.0
    %228 = vmatpush1.msra.mxu0 0.0
    %229 = vmatprep.mubr.f32.mxu0 0.0
    %230 = vmatmul.mubr.f32.gmra.mrb[0].mxu0 %v65
    %v231 = vpop.f32.mrb[0].mxu0
    %v232 = vadd.f32 0.0, %v231
    %v233 = vpop.f32.mrb[0].mxu0
    %234 = vmatprep.mubr.f32.mxu0 0.0
    %235 = vmatmul.mubr.f32.gmra.mrb[0].mxu0 %v68
    %v236 = vpop.f32.mrb[0].mxu0
    %v237 = vadd.f32 0.0, %v236
    %v238 = vpop.f32.mrb[0].mxu0
    %239 = vmatprep.mubr.f32.mxu0 0.0
    %240 = vmatmul.mubr.f32.gmra.mrb[0].mxu0 %v71
    %v241 = vpop.f32.mrb[0].mxu0
    %v242 = vadd.f32 0.0, %v241
    %v243 = vpop.f32.mrb[0].mxu0
    %244 = vmatprep.mubr.f32.mxu0 0.0
    %245 = vmatmul.mubr.f32.gmra.mrb[0].mxu0 %v74
    %v246 = vpop.f32.mrb[0].mxu0
    %v247 = vadd.f32 0.0, %v246
    %v248 = vpop.f32.mrb[0].mxu0
    %249 = vdwg.mxu0
    %v250 = vlaneseq
    %v251 = vshrl.u32 %v250, 7
    %v252 = vsub.s32 0, %v251
    %v253 = vrot.slane %v45, %v252
    %v254 = vadd.f32 %v143, %v253
    %v255 = vadd.f32 %v149, %v253
    %v256 = vadd.f32 %v155, %v253
    %v257 = vadd.f32 %v161, %v253
    %v258 = vmax.f32 %v254, 0.0
    %v259 = vmax.f32 %v255, 0.0
    %v260 = vmax.f32 %v256, 0.0
    %v261 = vmax.f32 %v257, 0.0
    %v262 = vlaneseq
    %v263 = vshrl.u32 %v262, 7
    %v264 = vsub.s32 0, %v263
    %v265 = vrot.slane %v48, %v264
    %v266 = vadd.f32 %v145, %v265
    %v267 = vadd.f32 %v151, %v265
    %v268 = vadd.f32 %v157, %v265
    %v269 = vadd.f32 %v163, %v265
    %v270 = vlaneseq
    %v271 = vshrl.u32 %v270, 7
    %v272 = vadd.s32 %v271, 8
    %v273 = vadd.s32 %v271, 16
    %v274 = vadd.s32 %v271, 24
    %vm275 = vcmp.lt.s32.totalorder %v271, 0
    %v276 = vsub.s32 0, %v271
    %v277 = vsel %vm275, %v276, %v271
    %v278 = vshrl.u32 %v277, 4
    %v279 = vand.u32 %v277, 15
    %v280 = vsub.s32 0, %v279
    %v281 = vsel %vm275, %v280, %v279
    %vm282 = vcmp.lt.s32.totalorder %v272, 0
    %v283 = vsub.s32 0, %v272
    %v284 = vsel %vm282, %v283, %v272
    %v285 = vshrl.u32 %v284, 4
    %v286 = vand.u32 %v284, 15
    %v287 = vsub.s32 0, %v286
    %v288 = vsel %vm282, %v287, %v286
    %vm289 = vcmp.lt.s32.totalorder %v273, 0
    %v290 = vsub.s32 0, %v273
    %v291 = vsel %vm289, %v290, %v273
    %v292 = vshrl.u32 %v291, 4
    %v293 = vand.u32 %v291, 15
    %v294 = vsub.s32 0, %v293
    %v295 = vsel %vm289, %v294, %v293
    %vm296 = vcmp.lt.s32.totalorder %v274, 0
    %v297 = vsub.s32 0, %v274
    %v298 = vsel %vm296, %v297, %v274
    %v299 = vshrl.u32 %v298, 4
    %v300 = vand.u32 %v298, 15
    %v301 = vsub.s32 0, %v300
    %v302 = vsel %vm296, %v301, %v300
    %vm303 = vcmp.ne.s32.totalorder %v281, 0
    %vm304 = vcmp.ne.s32.totalorder %v288, 0
    %vm305 = vcmp.ne.s32.totalorder %v295, 0
    %vm306 = vcmp.ne.s32.totalorder %v302, 0
    %vm307 = vcmp.lt.s32.totalorder %v281, 0
    %vm308 = vcmp.lt.s32.totalorder %v288, 0
    %vm309 = vcmp.lt.s32.totalorder %v295, 0
    %vm310 = vcmp.lt.s32.totalorder %v302, 0
    %vm311 = vmand %vm307, %vm303
    %vm312 = vmand %vm308, %vm304
    %vm313 = vmand %vm309, %vm305
    %vm314 = vmand %vm310, %vm306
    %v315 = vadd.s32 %v281, 16
    %v316 = vadd.s32 %v288, 16
    %v317 = vadd.s32 %v295, 16
    %v318 = vadd.s32 %v302, 16
    %v319 = vsel %vm311, %v315, %v281
    %v320 = vsel %vm312, %v316, %v288
    %v321 = vsel %vm313, %v317, %v295
    %v322 = vsel %vm314, %v318, %v302
    %vm323 = vcmp.eq.s32.totalorder %v319, 0
    %vm324 = vcmp.eq.s32.totalorder %v320, 0
    %vm325 = vcmp.eq.s32.totalorder %v321, 0
    %vm326 = vcmp.eq.s32.totalorder %v322, 0
    %v327 = vrot.slane %v258, 7
    %v328 = vrot.slane %v259, 7
    %v329 = vrot.slane %v260, 7
    %v330 = vrot.slane %v261, 7
    %vm331 = vcmp.lt.s32.totalorder %v271, 1
    %v332 = vsel %vm331, %v329, %v330
    %v333 = vsel %vm331, %v328, %v329
    %v334 = vsel %vm331, %v327, %v328
    %v335 = vsel %vm331, %v330, %v327
    %v336 = vsel %vm323, 1, 0
    %v337 = vsel %vm324, 1, 0
    %v338 = vsel %vm325, 1, 0
    %v339 = vsel %vm326, 1, 0
    %vm340 = vcmp.eq.s32.totalorder %v336, 1
    %vm341 = vcmp.eq.s32.totalorder %v337, 1
    %vm342 = vcmp.eq.s32.totalorder %v338, 1
    %vm343 = vcmp.eq.s32.totalorder %v339, 1
    %v344 = vsel %vm340, 0.0, %v335
    %v345 = vsel %vm341, 0.0, %v334
    %v346 = vsel %vm342, 0.0, %v333
    %v347 = vsel %vm343, 0.0, %v332
    %vm348 = vcmp.eq.s32.totalorder %v319, 15
    %vm349 = vcmp.eq.s32.totalorder %v320, 15
    %vm350 = vcmp.eq.s32.totalorder %v321, 15
    %vm351 = vcmp.eq.s32.totalorder %v322, 15
    %v352 = vrot.slane %v258, 1
    %v353 = vrot.slane %v259, 1
    %v354 = vrot.slane %v260, 1
    %v355 = vrot.slane %v261, 1
    %vm356 = vcmp.lt.s32.totalorder %v271, 7
    %v357 = vsel %vm356, %v354, %v355
    %v358 = vsel %vm356, %v353, %v354
    %v359 = vsel %vm356, %v352, %v353
    %v360 = vsel %vm356, %v355, %v352
    %v361 = vsel %vm348, 1, 0
    %v362 = vsel %vm349, 1, 0
    %v363 = vsel %vm350, 1, 0
    %v364 = vsel %vm351, 1, 0
    %vm365 = vcmp.eq.s32.totalorder %v361, 1
    %vm366 = vcmp.eq.s32.totalorder %v362, 1
    %vm367 = vcmp.eq.s32.totalorder %v363, 1
    %vm368 = vcmp.eq.s32.totalorder %v364, 1
    %v369 = vsel %vm365, 0.0, %v359
    %v370 = vsel %vm366, 0.0, %v358
    %v371 = vsel %vm367, 0.0, %v357
    %v372 = vsel %vm368, 0.0, %v360
    %v373 = vld [vmem:[#allocation2] sm:$0xff]
    %v374 = vld [vmem:[#allocation2 + $0x8] sm:$0xff]
    %v375 = vld [vmem:[#allocation2 + $0x10] sm:$0xff]
    %v376 = vld [vmem:[#allocation2 + $0x18] sm:$0xff]
    %v377 = vld [vmem:[#allocation2 + $0x20] sm:$0xff]
    %v378 = vld [vmem:[#allocation2 + $0x28] sm:$0xff]
    %v379 = vld [vmem:[#allocation2 + $0x30] sm:$0xff]
    %v380 = vld [vmem:[#allocation2 + $0x38] sm:$0xff]
    %v381 = vld [vmem:[#allocation2 + $0x40] sm:$0xff]
    %v382 = vld [vmem:[#allocation2 + $0x48] sm:$0xff]
    %v383 = vld [vmem:[#allocation2 + $0x50] sm:$0xff]
    %v384 = vld [vmem:[#allocation2 + $0x58] sm:$0xff]
    %v385 = vld [vmem:[#allocation2 + $0x60] sm:$0xff]
    %v386 = vld [vmem:[#allocation2 + $0x68] sm:$0xff]
    %v387 = vld [vmem:[#allocation2 + $0x70] sm:$0xff]
    %v388 = vld [vmem:[#allocation2 + $0x78] sm:$0xff]
    %s389 = scalar_lea.vmem [#allocation2], 128
    %v390 = vld [vmem:[%s389] sm:$0xff]
    %v391 = vld [vmem:[%s389 + $0x8] sm:$0xff]
    %v392 = vld [vmem:[%s389 + $0x10] sm:$0xff]
    %v393 = vld [vmem:[%s389 + $0x18] sm:$0xff]
    %v394 = vld [vmem:[%s389 + $0x20] sm:$0xff]
    %v395 = vld [vmem:[%s389 + $0x28] sm:$0xff]
    %v396 = vld [vmem:[%s389 + $0x30] sm:$0xff]
    %v397 = vld [vmem:[%s389 + $0x38] sm:$0xff]
    %v398 = vld [vmem:[%s389 + $0x40] sm:$0xff]
    %v399 = vld [vmem:[%s389 + $0x48] sm:$0xff]
    %v400 = vld [vmem:[%s389 + $0x50] sm:$0xff]
    %v401 = vld [vmem:[%s389 + $0x58] sm:$0xff]
    %v402 = vld [vmem:[%s389 + $0x60] sm:$0xff]
    %v403 = vld [vmem:[%s389 + $0x68] sm:$0xff]
    %v404 = vld [vmem:[%s389 + $0x70] sm:$0xff]
    %v405 = vld [vmem:[%s389 + $0x78] sm:$0xff]
    %406 = vmatprep.subr.mxu0 0.0
    %407 = vmatpush1.msra.mxu0 %v390
    %408 = vmatprep.subr.mxu0 0.0
    %409 = vmatpush1.msra.mxu0 %v391
    %410 = vmatprep.subr.mxu0 0.0
    %411 = vmatpush1.msra.mxu0 %v392
    %412 = vmatprep.subr.mxu0 0.0
    %413 = vmatpush1.msra.mxu0 %v393
    %414 = vmatprep.subr.mxu0 0.0
    %415 = vmatpush1.msra.mxu0 %v394
    %416 = vmatprep.subr.mxu0 0.0
    %417 = vmatpush1.msra.mxu0 %v395
    %418 = vmatprep.subr.mxu0 0.0
    %419 = vmatpush1.msra.mxu0 %v396
    %420 = vmatprep.subr.mxu0 0.0
    %421 = vmatpush1.msra.mxu0 %v397
    %422 = vmatprep.subr.mxu0 0.0
    %423 = vmatpush1.msra.mxu0 %v398
    %424 = vmatprep.subr.mxu0 0.0
    %425 = vmatpush1.msra.mxu0 %v399
    %426 = vmatprep.subr.mxu0 0.0
    %427 = vmatpush1.msra.mxu0 %v400
    %428 = vmatprep.subr.mxu0 0.0
    %429 = vmatpush1.msra.mxu0 %v401
    %430 = vmatprep.subr.mxu0 0.0
    %431 = vmatpush1.msra.mxu0 %v402
    %432 = vmatprep.subr.mxu0 0.0
    %433 = vmatpush1.msra.mxu0 %v403
    %434 = vmatprep.subr.mxu0 0.0
    %435 = vmatpush1.msra.mxu0 %v404
    %436 = vmatprep.subr.mxu0 0.0
    %437 = vmatpush1.msra.mxu0 %v405
    %438 = vmatprep.subr.mxu0 0.0
    %439 = vmatpush1.msra.mxu0 0.0
    %440 = vmatprep.subr.mxu0 0.0
    %441 = vmatpush1.msra.mxu0 0.0
    %442 = vmatprep.subr.mxu0 0.0
    %443 = vmatpush1.msra.mxu0 0.0
    %444 = vmatprep.subr.mxu0 0.0
    %445 = vmatpush1.msra.mxu0 0.0
    %446 = vmatprep.subr.mxu0 0.0
    %447 = vmatpush1.msra.mxu0 0.0
    %448 = vmatprep.subr.mxu0 0.0
    %449 = vmatpush1.msra.mxu0 0.0
    %450 = vmatprep.subr.mxu0 0.0
    %451 = vmatpush1.msra.mxu0 0.0
    %452 = vmatprep.subr.mxu0 0.0
    %453 = vmatpush1.msra.mxu0 0.0
    %454 = vmatprep.subr.mxu0 0.0
    %455 = vmatpush1.msra.mxu0 0.0
    %456 = vmatprep.subr.mxu0 0.0
    %457 = vmatpush1.msra.mxu0 0.0
    %458 = vmatprep.subr.mxu0 0.0
    %459 = vmatpush1.msra.mxu0 0.0
    %460 = vmatprep.subr.mxu0 0.0
    %461 = vmatpush1.msra.mxu0 0.0
    %462 = vmatprep.subr.mxu0 0.0
    %463 = vmatpush1.msra.mxu0 0.0
    %464 = vmatprep.subr.mxu0 0.0
    %465 = vmatpush1.msra.mxu0 0.0
    %466 = vmatprep.subr.mxu0 0.0
    %467 = vmatpush1.msra.mxu0 0.0
    %468 = vmatprep.subr.mxu0 0.0
    %469 = vmatpush1.msra.mxu0 0.0
    %470 = vmatprep.mubr.f32.mxu0 0.0
    %471 = vmatmul.mubr.f32.gmra.mrb[0].mxu0 %v258
    %v472 = vpop.f32.mrb[0].mxu0
    %v473 = vadd.f32 0.0, %v472
    %v474 = vpop.f32.mrb[0].mxu0
    %475 = vmatprep.mubr.f32.mxu0 0.0
    %476 = vmatmul.mubr.f32.gmra.mrb[0].mxu0 %v259
    %v477 = vpop.f32.mrb[0].mxu0
    %v478 = vadd.f32 0.0, %v477
    %v479 = vpop.f32.mrb[0].mxu0
    %480 = vmatprep.mubr.f32.mxu0 0.0
    %481 = vmatmul.mubr.f32.gmra.mrb[0].mxu0 %v260
    %v482 = vpop.f32.mrb[0].mxu0
    %v483 = vadd.f32 0.0, %v482
    %v484 = vpop.f32.mrb[0].mxu0
    %485 = vmatprep.mubr.f32.mxu0 0.0
    %486 = vmatmul.mubr.f32.gmra.mrb[0].mxu0 %v261
    %v487 = vpop.f32.mrb[0].mxu0
    %v488 = vadd.f32 0.0, %v487
    %v489 = vpop.f32.mrb[0].mxu0
    %490 = vdwg.mxu0
    %491 = vmatprep.subr.mxu0 0.0
    %492 = vmatpush1.msra.mxu0 %v373
    %493 = vmatprep.subr.mxu0 0.0
    %494 = vmatpush1.msra.mxu0 %v374
    %495 = vmatprep.subr.mxu0 0.0
    %496 = vmatpush1.msra.mxu0 %v375
    %497 = vmatprep.subr.mxu0 0.0
    %498 = vmatpush1.msra.mxu0 %v376
    %499 = vmatprep.subr.mxu0 0.0
    %500 = vmatpush1.msra.mxu0 %v377
    %501 = vmatprep.subr.mxu0 0.0
    %502 = vmatpush1.msra.mxu0 %v378
    %503 = vmatprep.subr.mxu0 0.0
    %504 = vmatpush1.msra.mxu0 %v379
    %505 = vmatprep.subr.mxu0 0.0
    %506 = vmatpush1.msra.mxu0 %v380
    %507 = vmatprep.subr.mxu0 0.0
    %508 = vmatpush1.msra.mxu0 %v381
    %509 = vmatprep.subr.mxu0 0.0
    %510 = vmatpush1.msra.mxu0 %v382
    %511 = vmatprep.subr.mxu0 0.0
    %512 = vmatpush1.msra.mxu0 %v383
    %513 = vmatprep.subr.mxu0 0.0
    %514 = vmatpush1.msra.mxu0 %v384
    %515 = vmatprep.subr.mxu0 0.0
    %516 = vmatpush1.msra.mxu0 %v385
    %517 = vmatprep.subr.mxu0 0.0
    %518 = vmatpush1.msra.mxu0 %v386
    %519 = vmatprep.subr.mxu0 0.0
    %520 = vmatpush1.msra.mxu0 %v387
    %521 = vmatprep.subr.mxu0 0.0
    %522 = vmatpush1.msra.mxu0 %v388
    %523 = vmatprep.subr.mxu0 0.0
    %524 = vmatpush1.msra.mxu0 0.0
    %525 = vmatprep.subr.mxu0 0.0
    %526 = vmatpush1.msra.mxu0 0.0
    %527 = vmatprep.subr.mxu0 0.0
    %528 = vmatpush1.msra.mxu0 0.0
    %529 = vmatprep.subr.mxu0 0.0
    %530 = vmatpush1.msra.mxu0 0.0
    %531 = vmatprep.subr.mxu0 0.0
    %532 = vmatpush1.msra.mxu0 0.0
    %533 = vmatprep.subr.mxu0 0.0
    %534 = vmatpush1.msra.mxu0 0.0
    %535 = vmatprep.subr.mxu0 0.0
    %536 = vmatpush1.msra.mxu0 0.0
    %537 = vmatprep.subr.mxu0 0.0
    %538 = vmatpush1.msra.mxu0 0.0
    %539 = vmatprep.subr.mxu0 0.0
    %540 = vmatpush1.msra.mxu0 0.0
    %541 = vmatprep.subr.mxu0 0.0
    %542 = vmatpush1.msra.mxu0 0.0
    %543 = vmatprep.subr.mxu0 0.0
    %544 = vmatpush1.msra.mxu0 0.0
    %545 = vmatprep.subr.mxu0 0.0
    %546 = vmatpush1.msra.mxu0 0.0
    %547 = vmatprep.subr.mxu0 0.0
    %548 = vmatpush1.msra.mxu0 0.0
    %549 = vmatprep.subr.mxu0 0.0
    %550 = vmatpush1.msra.mxu0 0.0
    %551 = vmatprep.subr.mxu0 0.0
    %552 = vmatpush1.msra.mxu0 0.0
    %553 = vmatprep.subr.mxu0 0.0
    %554 = vmatpush1.msra.mxu0 0.0
    %555 = vmatprep.mubr.f32.mxu0 0.0
    %556 = vmatmul.mubr.f32.gmra.mrb[0].mxu0 %v344
    %v557 = vpop.f32.mrb[0].mxu0
    %v558 = vadd.f32 %v473, %v557
    %v559 = vpop.f32.mrb[0].mxu0
    %560 = vmatprep.mubr.f32.mxu0 0.0
    %561 = vmatmul.mubr.f32.gmra.mrb[0].mxu0 %v345
    %v562 = vpop.f32.mrb[0].mxu0
    %v563 = vadd.f32 %v478, %v562
    %v564 = vpop.f32.mrb[0].mxu0
    %565 = vmatprep.mubr.f32.mxu0 0.0
    %566 = vmatmul.mubr.f32.gmra.mrb[0].mxu0 %v346
    %v567 = vpop.f32.mrb[0].mxu0
    %v568 = vadd.f32 %v483, %v567
    %v569 = vpop.f32.mrb[0].mxu0
    %570 = vmatprep.mubr.f32.mxu0 0.0
    %571 = vmatmul.mubr.f32.gmra.mrb[0].mxu0 %v347
    %v572 = vpop.f32.mrb[0].mxu0
    %v573 = vadd.f32 %v488, %v572
    %v574 = vpop.f32.mrb[0].mxu0
    %575 = vdwg.mxu0
    %s576 = scalar_lea.vmem [#allocation2], 256
    %v577 = vld [vmem:[%s576] sm:$0xff]
    %v578 = vld [vmem:[%s576 + $0x8] sm:$0xff]
    %v579 = vld [vmem:[%s576 + $0x10] sm:$0xff]
    %v580 = vld [vmem:[%s576 + $0x18] sm:$0xff]
    %v581 = vld [vmem:[%s576 + $0x20] sm:$0xff]
    %v582 = vld [vmem:[%s576 + $0x28] sm:$0xff]
    %v583 = vld [vmem:[%s576 + $0x30] sm:$0xff]
    %v584 = vld [vmem:[%s576 + $0x38] sm:$0xff]
    %v585 = vld [vmem:[%s576 + $0x40] sm:$0xff]
    %v586 = vld [vmem:[%s576 + $0x48] sm:$0xff]
    %v587 = vld [vmem:[%s576 + $0x50] sm:$0xff]
    %v588 = vld [vmem:[%s576 + $0x58] sm:$0xff]
    %v589 = vld [vmem:[%s576 + $0x60] sm:$0xff]
    %v590 = vld [vmem:[%s576 + $0x68] sm:$0xff]
    %v591 = vld [vmem:[%s576 + $0x70] sm:$0xff]
    %v592 = vld [vmem:[%s576 + $0x78] sm:$0xff]
    %593 = vmatprep.subr.mxu0 0.0
    %594 = vmatpush1.msra.mxu0 %v577
    %595 = vmatprep.subr.mxu0 0.0
    %596 = vmatpush1.msra.mxu0 %v578
    %597 = vmatprep.subr.mxu0 0.0
    %598 = vmatpush1.msra.mxu0 %v579
    %599 = vmatprep.subr.mxu0 0.0
    %600 = vmatpush1.msra.mxu0 %v580
    %601 = vmatprep.subr.mxu0 0.0
    %602 = vmatpush1.msra.mxu0 %v581
    %603 = vmatprep.subr.mxu0 0.0
    %604 = vmatpush1.msra.mxu0 %v582
    %605 = vmatprep.subr.mxu0 0.0
    %606 = vmatpush1.msra.mxu0 %v583
    %607 = vmatprep.subr.mxu0 0.0
    %608 = vmatpush1.msra.mxu0 %v584
    %609 = vmatprep.subr.mxu0 0.0
    %610 = vmatpush1.msra.mxu0 %v585
    %611 = vmatprep.subr.mxu0 0.0
    %612 = vmatpush1.msra.mxu0 %v586
    %613 = vmatprep.subr.mxu0 0.0
    %614 = vmatpush1.msra.mxu0 %v587
    %615 = vmatprep.subr.mxu0 0.0
    %616 = vmatpush1.msra.mxu0 %v588
    %617 = vmatprep.subr.mxu0 0.0
    %618 = vmatpush1.msra.mxu0 %v589
    %619 = vmatprep.subr.mxu0 0.0
    %620 = vmatpush1.msra.mxu0 %v590
    %621 = vmatprep.subr.mxu0 0.0
    %622 = vmatpush1.msra.mxu0 %v591
    %623 = vmatprep.subr.mxu0 0.0
    %624 = vmatpush1.msra.mxu0 %v592
    %625 = vmatprep.subr.mxu0 0.0
    %626 = vmatpush1.msra.mxu0 0.0
    %627 = vmatprep.subr.mxu0 0.0
    %628 = vmatpush1.msra.mxu0 0.0
    %629 = vmatprep.subr.mxu0 0.0
    %630 = vmatpush1.msra.mxu0 0.0
    %631 = vmatprep.subr.mxu0 0.0
    %632 = vmatpush1.msra.mxu0 0.0
    %633 = vmatprep.subr.mxu0 0.0
    %634 = vmatpush1.msra.mxu0 0.0
    %635 = vmatprep.subr.mxu0 0.0
    %636 = vmatpush1.msra.mxu0 0.0
    %637 = vmatprep.subr.mxu0 0.0
    %638 = vmatpush1.msra.mxu0 0.0
    %639 = vmatprep.subr.mxu0 0.0
    %640 = vmatpush1.msra.mxu0 0.0
    %641 = vmatprep.subr.mxu0 0.0
    %642 = vmatpush1.msra.mxu0 0.0
    %643 = vmatprep.subr.mxu0 0.0
    %644 = vmatpush1.msra.mxu0 0.0
    %645 = vmatprep.subr.mxu0 0.0
    %646 = vmatpush1.msra.mxu0 0.0
    %647 = vmatprep.subr.mxu0 0.0
    %648 = vmatpush1.msra.mxu0 0.0
    %649 = vmatprep.subr.mxu0 0.0
    %650 = vmatpush1.msra.mxu0 0.0
    %651 = vmatprep.subr.mxu0 0.0
    %652 = vmatpush1.msra.mxu0 0.0
    %653 = vmatprep.subr.mxu0 0.0
    %654 = vmatpush1.msra.mxu0 0.0
    %655 = vmatprep.subr.mxu0 0.0
    %656 = vmatpush1.msra.mxu0 0.0
    %657 = vmatprep.mubr.f32.mxu0 0.0
    %658 = vmatmul.mubr.f32.gmra.mrb[0].mxu0 %v369
    %v659 = vpop.f32.mrb[0].mxu0
    %v660 = vadd.f32 0.0, %v659
    %v661 = vpop.f32.mrb[0].mxu0
    %662 = vmatprep.mubr.f32.mxu0 0.0
    %663 = vmatmul.mubr.f32.gmra.mrb[0].mxu0 %v370
    %v664 = vpop.f32.mrb[0].mxu0
    %v665 = vadd.f32 0.0, %v664
    %v666 = vpop.f32.mrb[0].mxu0
    %667 = vmatprep.mubr.f32.mxu0 0.0
    %668 = vmatmul.mubr.f32.gmra.mrb[0].mxu0 %v371
    %v669 = vpop.f32.mrb[0].mxu0
    %v670 = vadd.f32 0.0, %v669
    %v671 = vpop.f32.mrb[0].mxu0
    %672 = vmatprep.mubr.f32.mxu0 0.0
    %673 = vmatmul.mubr.f32.gmra.mrb[0].mxu0 %v372
    %v674 = vpop.f32.mrb[0].mxu0
    %v675 = vadd.f32 0.0, %v674
    %v676 = vpop.f32.mrb[0].mxu0
    %677 = vdwg.mxu0
    %v678 = vadd.f32 %v558, %v660
    %v679 = vadd.f32 %v563, %v665
    %v680 = vadd.f32 %v568, %v670
    %v681 = vadd.f32 %v573, %v675
    %v682 = vlaneseq
    %v683 = vshrl.u32 %v682, 7
    %v684 = vsub.s32 0, %v683
    %v685 = vrot.slane %v46, %v684
    %v686 = vadd.f32 %v678, %v685
    %v687 = vadd.f32 %v679, %v685
    %v688 = vadd.f32 %v680, %v685
    %v689 = vadd.f32 %v681, %v685
    %v690 = vmax.f32 %v686, 0.0
    %v691 = vmax.f32 %v687, 0.0
    %v692 = vmax.f32 %v688, 0.0
    %v693 = vmax.f32 %v689, 0.0
    %v694 = vld [vmem:[%s3] sm:$0xff]
    %v695 = vld [vmem:[%s3 + $0x8] sm:$0xff]
    %v696 = vld [vmem:[%s3 + $0x10] sm:$0xff]
    %v697 = vld [vmem:[%s3 + $0x18] sm:$0xff]
    %v698 = vld [vmem:[%s3 + $0x20] sm:$0xff]
    %v699 = vld [vmem:[%s3 + $0x28] sm:$0xff]
    %v700 = vld [vmem:[%s3 + $0x30] sm:$0xff]
    %v701 = vld [vmem:[%s3 + $0x38] sm:$0xff]
    %v702 = vld [vmem:[%s3 + $0x40] sm:$0xff]
    %v703 = vld [vmem:[%s3 + $0x48] sm:$0xff]
    %v704 = vld [vmem:[%s3 + $0x50] sm:$0xff]
    %v705 = vld [vmem:[%s3 + $0x58] sm:$0xff]
    %v706 = vld [vmem:[%s3 + $0x60] sm:$0xff]
    %v707 = vld [vmem:[%s3 + $0x68] sm:$0xff]
    %v708 = vld [vmem:[%s3 + $0x70] sm:$0xff]
    %v709 = vld [vmem:[%s3 + $0x78] sm:$0xff]
    %v710 = vlaneseq
    %v711 = vshrl.u32 %v710, 7
    %v712 = vsub.s32 0, %v711
    %v713 = vrot.slane %v47, %v712
    %714 = vmatprep.subr.mxu0 0.0
    %715 = vmatpush1.msra.mxu0 %v694
    %716 = vmatprep.subr.mxu0 0.0
    %717 = vmatpush1.msra.mxu0 %v695
    %718 = vmatprep.subr.mxu0 0.0
    %719 = vmatpush1.msra.mxu0 %v696
    %720 = vmatprep.subr.mxu0 0.0
    %721 = vmatpush1.msra.mxu0 %v697
    %722 = vmatprep.subr.mxu0 0.0
    %723 = vmatpush1.msra.mxu0 %v698
    %724 = vmatprep.subr.mxu0 0.0
    %725 = vmatpush1.msra.mxu0 %v699
    %726 = vmatprep.subr.mxu0 0.0
    %727 = vmatpush1.msra.mxu0 %v700
    %728 = vmatprep.subr.mxu0 0.0
    %729 = vmatpush1.msra.mxu0 %v701
    %730 = vmatprep.subr.mxu0 0.0
    %731 = vmatpush1.msra.mxu0 %v702
    %732 = vmatprep.subr.mxu0 0.0
    %733 = vmatpush1.msra.mxu0 %v703
    %734 = vmatprep.subr.mxu0 0.0
    %735 = vmatpush1.msra.mxu0 %v704
    %736 = vmatprep.subr.mxu0 0.0
    %737 = vmatpush1.msra.mxu0 %v705
    %738 = vmatprep.subr.mxu0 0.0
    %739 = vmatpush1.msra.mxu0 %v706
    %740 = vmatprep.subr.mxu0 0.0
    %741 = vmatpush1.msra.mxu0 %v707
    %742 = vmatprep.subr.mxu0 0.0
    %743 = vmatpush1.msra.mxu0 %v708
    %744 = vmatprep.subr.mxu0 0.0
    %745 = vmatpush1.msra.mxu0 %v709
    %746 = vmatprep.subr.mxu0 0.0
    %747 = vmatpush1.msra.mxu0 0.0
    %748 = vmatprep.subr.mxu0 0.0
    %749 = vmatpush1.msra.mxu0 0.0
    %750 = vmatprep.subr.mxu0 0.0
    %751 = vmatpush1.msra.mxu0 0.0
    %752 = vmatprep.subr.mxu0 0.0
    %753 = vmatpush1.msra.mxu0 0.0
    %754 = vmatprep.subr.mxu0 0.0
    %755 = vmatpush1.msra.mxu0 0.0
    %756 = vmatprep.subr.mxu0 0.0
    %757 = vmatpush1.msra.mxu0 0.0
    %758 = vmatprep.subr.mxu0 0.0
    %759 = vmatpush1.msra.mxu0 0.0
    %760 = vmatprep.subr.mxu0 0.0
    %761 = vmatpush1.msra.mxu0 0.0
    %762 = vmatprep.subr.mxu0 0.0
    %763 = vmatpush1.msra.mxu0 0.0
    %764 = vmatprep.subr.mxu0 0.0
    %765 = vmatpush1.msra.mxu0 0.0
    %766 = vmatprep.subr.mxu0 0.0
    %767 = vmatpush1.msra.mxu0 0.0
    %768 = vmatprep.subr.mxu0 0.0
    %769 = vmatpush1.msra.mxu0 0.0
    %770 = vmatprep.subr.mxu0 0.0
    %771 = vmatpush1.msra.mxu0 0.0
    %772 = vmatprep.subr.mxu0 0.0
    %773 = vmatpush1.msra.mxu0 0.0
    %774 = vmatprep.subr.mxu0 0.0
    %775 = vmatpush1.msra.mxu0 0.0
    %776 = vmatprep.subr.mxu0 0.0
    %777 = vmatpush1.msra.mxu0 0.0
    %778 = vmatprep.mubr.f32.mxu0 0.0
    %779 = vmatmul.mubr.f32.gmra.mrb[0].mxu0 %v690
    %v780 = vpop.f32.mrb[0].mxu0
    %v781 = vadd.f32 %v713, %v780
    %v782 = vpop.f32.mrb[0].mxu0
    %783 = vmatprep.mubr.f32.mxu0 0.0
    %784 = vmatmul.mubr.f32.gmra.mrb[0].mxu0 %v691
    %v785 = vpop.f32.mrb[0].mxu0
    %v786 = vadd.f32 %v713, %v785
    %v787 = vpop.f32.mrb[0].mxu0
    %788 = vmatprep.mubr.f32.mxu0 0.0
    %789 = vmatmul.mubr.f32.gmra.mrb[0].mxu0 %v692
    %v790 = vpop.f32.mrb[0].mxu0
    %v791 = vadd.f32 %v713, %v790
    %v792 = vpop.f32.mrb[0].mxu0
    %793 = vmatprep.mubr.f32.mxu0 0.0
    %794 = vmatmul.mubr.f32.gmra.mrb[0].mxu0 %v693
    %v795 = vpop.f32.mrb[0].mxu0
    %v796 = vadd.f32 %v713, %v795
    %v797 = vpop.f32.mrb[0].mxu0
    %798 = vdwg.mxu0
    %799 = vmatprep.subr.mxu0 0.0
    %800 = vmatpush1.xpose.msra.mxu0 %v65
    %801 = vmatprep.subr.mxu0 0.0
    %802 = vmatpush1.xpose.msra.mxu0 %v68
    %803 = vmatprep.subr.mxu0 0.0
    %804 = vmatpush1.xpose.msra.mxu0 0.0
    %805 = vmatprep.subr.mxu0 0.0
    %806 = vmatpush1.xpose.msra.mxu0 0.0
    %807 = vmatprep.subr.mxu0 0.0
    %808 = vmatpush1.xpose.msra.mxu0 0.0
    %809 = vmatprep.subr.mxu0 0.0
    %810 = vmatpush1.xpose.msra.mxu0 0.0
    %811 = vmatprep.subr.mxu0 0.0
    %812 = vmatpush1.xpose.msra.mxu0 0.0
    %813 = vmatprep.subr.mxu0 0.0
    %814 = vmatpush1.xpose.msra.mxu0 0.0
    %815 = vmatprep.subr.mxu0 0.0
    %816 = vmatpush1.xpose.msra.mxu0 0.0
    %817 = vmatprep.subr.mxu0 0.0
    %818 = vmatpush1.xpose.msra.mxu0 0.0
    %819 = vmatprep.subr.mxu0 0.0
    %820 = vmatpush1.xpose.msra.mxu0 0.0
    %821 = vmatprep.subr.mxu0 0.0
    %822 = vmatpush1.xpose.msra.mxu0 0.0
    %823 = vmatprep.subr.mxu0 0.0
    %824 = vmatpush1.xpose.msra.mxu0 0.0
    %825 = vmatprep.subr.mxu0 0.0
    %826 = vmatpush1.xpose.msra.mxu0 0.0
    %827 = vmatprep.subr.mxu0 0.0
    %828 = vmatpush1.xpose.msra.mxu0 0.0
    %829 = vmatprep.subr.mxu0 0.0
    %830 = vmatpush1.xpose.msra.mxu0 0.0
    %831 = vmatprep.subr.mxu0 0.0
    %832 = vmatpush1.xpose.msra.mxu0 0.0
    %833 = vmatprep.subr.mxu0 0.0
    %834 = vmatpush1.xpose.msra.mxu0 0.0
    %835 = vmatprep.subr.mxu0 0.0
    %836 = vmatpush1.xpose.msra.mxu0 0.0
    %837 = vmatprep.subr.mxu0 0.0
    %838 = vmatpush1.xpose.msra.mxu0 0.0
    %839 = vmatprep.subr.mxu0 0.0
    %840 = vmatpush1.xpose.msra.mxu0 0.0
    %841 = vmatprep.subr.mxu0 0.0
    %842 = vmatpush1.xpose.msra.mxu0 0.0
    %843 = vmatprep.subr.mxu0 0.0
    %844 = vmatpush1.xpose.msra.mxu0 0.0
    %845 = vmatprep.subr.mxu0 0.0
    %846 = vmatpush1.xpose.msra.mxu0 0.0
    %847 = vmatprep.subr.mxu0 0.0
    %848 = vmatpush1.xpose.msra.mxu0 0.0
    %849 = vmatprep.subr.mxu0 0.0
    %850 = vmatpush1.xpose.msra.mxu0 0.0
    %851 = vmatprep.subr.mxu0 0.0
    %852 = vmatpush1.xpose.msra.mxu0 0.0
    %853 = vmatprep.subr.mxu0 0.0
    %854 = vmatpush1.xpose.msra.mxu0 0.0
    %855 = vmatprep.subr.mxu0 0.0
    %856 = vmatpush1.xpose.msra.mxu0 0.0
    %857 = vmatprep.subr.mxu0 0.0
    %858 = vmatpush1.xpose.msra.mxu0 0.0
    %859 = vmatprep.subr.mxu0 0.0
    %860 = vmatpush1.xpose.msra.mxu0 0.0
    %861 = vmatprep.subr.mxu0 0.0
    %862 = vmatpush1.xpose.msra.mxu0 0.0
    %863 = vmatprep.mubr.f32.mxu0 0.0
    %864 = vmatmul.mubr.f32.gmra.mrb[0].mxu0 %v65
    %v865 = vpop.f32.mrb[0].mxu0
    %v866 = vadd.f32 0.0, %v865
    %v867 = vpop.f32.mrb[0].mxu0
    %868 = vmatprep.mubr.f32.mxu0 0.0
    %869 = vmatmul.mubr.f32.gmra.mrb[0].mxu0 %v68
    %v870 = vpop.f32.mrb[0].mxu0
    %v871 = vadd.f32 0.0, %v870
    %v872 = vpop.f32.mrb[0].mxu0
    %873 = vdwg.mxu0
    %874 = vmatprep.subr.mxu0 0.0
    %875 = vmatpush1.xpose.msra.mxu0 %v71
    %876 = vmatprep.subr.mxu0 0.0
    %877 = vmatpush1.xpose.msra.mxu0 %v74
    %878 = vmatprep.subr.mxu0 0.0
    %879 = vmatpush1.xpose.msra.mxu0 0.0
    %880 = vmatprep.subr.mxu0 0.0
    %881 = vmatpush1.xpose.msra.mxu0 0.0
    %882 = vmatprep.subr.mxu0 0.0
    %883 = vmatpush1.xpose.msra.mxu0 0.0
    %884 = vmatprep.subr.mxu0 0.0
    %885 = vmatpush1.xpose.msra.mxu0 0.0
    %886 = vmatprep.subr.mxu0 0.0
    %887 = vmatpush1.xpose.msra.mxu0 0.0
    %888 = vmatprep.subr.mxu0 0.0
    %889 = vmatpush1.xpose.msra.mxu0 0.0
    %890 = vmatprep.subr.mxu0 0.0
    %891 = vmatpush1.xpose.msra.mxu0 0.0
    %892 = vmatprep.subr.mxu0 0.0
    %893 = vmatpush1.xpose.msra.mxu0 0.0
    %894 = vmatprep.subr.mxu0 0.0
    %895 = vmatpush1.xpose.msra.mxu0 0.0
    %896 = vmatprep.subr.mxu0 0.0
    %897 = vmatpush1.xpose.msra.mxu0 0.0
    %898 = vmatprep.subr.mxu0 0.0
    %899 = vmatpush1.xpose.msra.mxu0 0.0
    %900 = vmatprep.subr.mxu0 0.0
    %901 = vmatpush1.xpose.msra.mxu0 0.0
    %902 = vmatprep.subr.mxu0 0.0
    %903 = vmatpush1.xpose.msra.mxu0 0.0
    %904 = vmatprep.subr.mxu0 0.0
    %905 = vmatpush1.xpose.msra.mxu0 0.0
    %906 = vmatprep.subr.mxu0 0.0
    %907 = vmatpush1.xpose.msra.mxu0 0.0
    %908 = vmatprep.subr.mxu0 0.0
    %909 = vmatpush1.xpose.msra.mxu0 0.0
    %910 = vmatprep.subr.mxu0 0.0
    %911 = vmatpush1.xpose.msra.mxu0 0.0
    %912 = vmatprep.subr.mxu0 0.0
    %913 = vmatpush1.xpose.msra.mxu0 0.0
    %914 = vmatprep.subr.mxu0 0.0
    %915 = vmatpush1.xpose.msra.mxu0 0.0
    %916 = vmatprep.subr.mxu0 0.0
    %917 = vmatpush1.xpose.msra.mxu0 0.0
    %918 = vmatprep.subr.mxu0 0.0
    %919 = vmatpush1.xpose.msra.mxu0 0.0
    %920 = vmatprep.subr.mxu0 0.0
    %921 = vmatpush1.xpose.msra.mxu0 0.0
    %922 = vmatprep.subr.mxu0 0.0
    %923 = vmatpush1.xpose.msra.mxu0 0.0
    %924 = vmatprep.subr.mxu0 0.0
    %925 = vmatpush1.xpose.msra.mxu0 0.0
    %926 = vmatprep.subr.mxu0 0.0
    %927 = vmatpush1.xpose.msra.mxu0 0.0
    %928 = vmatprep.subr.mxu0 0.0
    %929 = vmatpush1.xpose.msra.mxu0 0.0
    %930 = vmatprep.subr.mxu0 0.0
    %931 = vmatpush1.xpose.msra.mxu0 0.0
    %932 = vmatprep.subr.mxu0 0.0
    %933 = vmatpush1.xpose.msra.mxu0 0.0
    %934 = vmatprep.subr.mxu0 0.0
    %935 = vmatpush1.xpose.msra.mxu0 0.0
    %936 = vmatprep.subr.mxu0 0.0
    %937 = vmatpush1.xpose.msra.mxu0 0.0
    %938 = vmatprep.mubr.f32.mxu0 0.0
    %939 = vmatmul.mubr.f32.gmra.mrb[0].mxu0 %v71
    %v940 = vpop.f32.mrb[0].mxu0
    %v941 = vadd.f32 0.0, %v940
    %v942 = vpop.f32.mrb[0].mxu0
    %943 = vmatprep.mubr.f32.mxu0 0.0
    %944 = vmatmul.mubr.f32.gmra.mrb[0].mxu0 %v74
    %v945 = vpop.f32.mrb[0].mxu0
    %v946 = vadd.f32 0.0, %v945
    %v947 = vpop.f32.mrb[0].mxu0
    %948 = vdwg.mxu0
    %v949 = vlaneseq
    %v950 = vand.u32 %v949, 127
    %vm951 = vcmp.eq.s32.totalorder %v271, %v950
    %vm952 = vcmp.eq.s32.totalorder %v272, %v950
    %v953 = vsel %vm951, %v866, 0.0
    %v954 = vsel %vm952, %v871, 0.0
    %v955 = vsel %vm951, %v941, 0.0
    %v956 = vsel %vm952, %v946, 0.0
    %vm957 = vcmask 130048
    %v958 = vsel %vm957, %v953, 0.0
    %v959 = vsel %vm957, %v954, 0.0
    %v960 = vadd.f32 %v958, %v959
    %v961 = vrot.slane %v960, 4
    %v962 = vadd.f32 %v960, %v961
    %v963 = vrot.slane %v962, 2
    %v964 = vadd.f32 %v962, %v963
    %v965 = vrot.slane %v964, 1
    %v966 = vadd.f32 %v964, %v965
    %v967 = vsel %vm957, %v955, 0.0
    %v968 = vsel %vm957, %v956, 0.0
    %v969 = vadd.f32 %v967, %v968
    %v970 = vrot.slane %v969, 4
    %v971 = vadd.f32 %v969, %v970
    %v972 = vrot.slane %v971, 2
    %v973 = vadd.f32 %v971, %v972
    %v974 = vrot.slane %v973, 1
    %v975 = vadd.f32 %v973, %v974
    %v976 = vmul.f32 %v866, 2.0
    %v977 = vmul.f32 %v871, 2.0
    %v978 = vmul.f32 %v941, 2.0
    %v979 = vmul.f32 %v946, 2.0
    %v980 = vsub.f32 %v976, %v966
    %v981 = vsub.f32 %v977, %v966
    %v982 = vsub.f32 %v978, %v975
    %v983 = vsub.f32 %v979, %v975
    %v984 = vld [vmem:[%s4] sm:$0xff]
    %v985 = vld [vmem:[%s4 + $0x8] sm:$0xff]
    %v986 = vld [vmem:[%s4 + $0x10] sm:$0xff]
    %v987 = vld [vmem:[%s4 + $0x18] sm:$0xff]
    %v988 = vld [vmem:[%s4 + $0x20] sm:$0xff]
    %v989 = vld [vmem:[%s4 + $0x28] sm:$0xff]
    %v990 = vld [vmem:[%s4 + $0x30] sm:$0xff]
    %v991 = vld [vmem:[%s4 + $0x38] sm:$0xff]
    %v992 = vld [vmem:[%s4 + $0x40] sm:$0xff]
    %v993 = vld [vmem:[%s4 + $0x48] sm:$0xff]
    %v994 = vld [vmem:[%s4 + $0x50] sm:$0xff]
    %v995 = vld [vmem:[%s4 + $0x58] sm:$0xff]
    %v996 = vld [vmem:[%s4 + $0x60] sm:$0xff]
    %v997 = vld [vmem:[%s4 + $0x68] sm:$0xff]
    %v998 = vld [vmem:[%s4 + $0x70] sm:$0xff]
    %v999 = vld [vmem:[%s4 + $0x78] sm:$0xff]
    %v1000 = vld [vmem:[%s5] sm:$0xff]
    %v1001 = vld [vmem:[%s5 + $0x8] sm:$0xff]
    %v1002 = vld [vmem:[%s5 + $0x10] sm:$0xff]
    %v1003 = vld [vmem:[%s5 + $0x18] sm:$0xff]
    %v1004 = vld [vmem:[%s5 + $0x20] sm:$0xff]
    %v1005 = vld [vmem:[%s5 + $0x28] sm:$0xff]
    %v1006 = vld [vmem:[%s5 + $0x30] sm:$0xff]
    %v1007 = vld [vmem:[%s5 + $0x38] sm:$0xff]
    %v1008 = vld [vmem:[%s5 + $0x40] sm:$0xff]
    %v1009 = vld [vmem:[%s5 + $0x48] sm:$0xff]
    %v1010 = vld [vmem:[%s5 + $0x50] sm:$0xff]
    %v1011 = vld [vmem:[%s5 + $0x58] sm:$0xff]
    %v1012 = vld [vmem:[%s5 + $0x60] sm:$0xff]
    %v1013 = vld [vmem:[%s5 + $0x68] sm:$0xff]
    %v1014 = vld [vmem:[%s5 + $0x70] sm:$0xff]
    %v1015 = vld [vmem:[%s5 + $0x78] sm:$0xff]
    %v1016 = vlaneseq
    %v1017 = vshrl.u32 %v1016, 7
    %v1018 = vsub.s32 0, %v1017
    %v1019 = vrot.slane %v49, %v1018
    %v1020 = vsel %vm957, %v980, -inf
    %1021 = vmax.xlane.f32.xlu0 %v1020
    %v1022 = vpop.xlane.xlu0 %1021
    %v1023 = vsel %vm957, %v981, -inf
    %1024 = vmax.xlane.f32.xlu0 %v1023
    %v1025 = vpop.xlane.xlu0 %1024
    %v1026 = vsel %vm957, %v982, -inf
    %1027 = vmax.xlane.f32.xlu0 %v1026
    %v1028 = vpop.xlane.xlu0 %1027
    %v1029 = vsel %vm957, %v983, -inf
    %1030 = vmax.xlane.f32.xlu0 %v1029
    %v1031 = vpop.xlane.xlu0 %1030
    %vm1032 = vcmp.eq.f32.partialorder %v980, %v1022
    %vm1033 = vcmp.eq.f32.partialorder %v981, %v1025
    %vm1034 = vcmp.eq.f32.partialorder %v982, %v1028
    %vm1035 = vcmp.eq.f32.partialorder %v983, %v1031
    %v1036 = vsel %vm1032, %v950, 16
    %v1037 = vsel %vm1033, %v950, 16
    %v1038 = vsel %vm1034, %v950, 16
    %v1039 = vsel %vm1035, %v950, 16
    %v1040 = vsel %vm957, %v1036, 2147483647
    %v1041 = vand.u32 %v1040, 65535
    %v1042 = vshra.s32 %v1040, 16
    %v1043 = vcvt.s32.f32 %v1041
    %v1044 = vcvt.s32.f32 %v1042
    %1045 = vmin.xlane.f32.xlu0 %v1044
    %v1046 = vpop.xlane.xlu0 %1045
    %vm1047 = vcmp.eq.f32.partialorder %v1044, %v1046
    %v1048 = vsel %vm1047, %v1043, inf
    %1049 = vmin.xlane.f32.xlu0 %v1048
    %v1050 = vpop.xlane.xlu0 %1049
    %v1051 = vcvt.f32.s32 %v1050
    %v1052 = vcvt.f32.s32 %v1046
    %v1053 = vshll.u32 %v1052, 16
    %v1054 = vadd.s32 %v1053, %v1051
    %v1055 = vsel %vm957, %v1037, 2147483647
    %v1056 = vand.u32 %v1055, 65535
    %v1057 = vshra.s32 %v1055, 16
    %v1058 = vcvt.s32.f32 %v1056
    %v1059 = vcvt.s32.f32 %v1057
    %1060 = vmin.xlane.f32.xlu0 %v1059
    %v1061 = vpop.xlane.xlu0 %1060
    %vm1062 = vcmp.eq.f32.partialorder %v1059, %v1061
    %v1063 = vsel %vm1062, %v1058, inf
    %1064 = vmin.xlane.f32.xlu0 %v1063
    %v1065 = vpop.xlane.xlu0 %1064
    %v1066 = vcvt.f32.s32 %v1065
    %v1067 = vcvt.f32.s32 %v1061
    %v1068 = vshll.u32 %v1067, 16
    %v1069 = vadd.s32 %v1068, %v1066
    %v1070 = vsel %vm957, %v1038, 2147483647
    %v1071 = vand.u32 %v1070, 65535
    %v1072 = vshra.s32 %v1070, 16
    %v1073 = vcvt.s32.f32 %v1071
    %v1074 = vcvt.s32.f32 %v1072
    %1075 = vmin.xlane.f32.xlu0 %v1074
    %v1076 = vpop.xlane.xlu0 %1075
    %vm1077 = vcmp.eq.f32.partialorder %v1074, %v1076
    %v1078 = vsel %vm1077, %v1073, inf
    %1079 = vmin.xlane.f32.xlu0 %v1078
    %v1080 = vpop.xlane.xlu0 %1079
    %v1081 = vcvt.f32.s32 %v1080
    %v1082 = vcvt.f32.s32 %v1076
    %v1083 = vshll.u32 %v1082, 16
    %v1084 = vadd.s32 %v1083, %v1081
    %v1085 = vsel %vm957, %v1039, 2147483647
    %v1086 = vand.u32 %v1085, 65535
    %v1087 = vshra.s32 %v1085, 16
    %v1088 = vcvt.s32.f32 %v1086
    %v1089 = vcvt.s32.f32 %v1087
    %1090 = vmin.xlane.f32.xlu0 %v1089
    %v1091 = vpop.xlane.xlu0 %1090
    %vm1092 = vcmp.eq.f32.partialorder %v1089, %v1091
    %v1093 = vsel %vm1092, %v1088, inf
    %1094 = vmin.xlane.f32.xlu0 %v1093
    %v1095 = vpop.xlane.xlu0 %1094
    %v1096 = vcvt.f32.s32 %v1095
    %v1097 = vcvt.f32.s32 %v1091
    %v1098 = vshll.u32 %v1097, 16
    %v1099 = vadd.s32 %v1098, %v1096
    %vm1100 = vcmp.eq.s32.totalorder %v950, %v1054
    %vm1101 = vcmp.eq.s32.totalorder %v950, %v1069
    %vm1102 = vcmp.eq.s32.totalorder %v950, %v1084
    %vm1103 = vcmp.eq.s32.totalorder %v950, %v1099
    %v1104 = vsel %vm1100, -3.4028235e+38, %v980
    %v1105 = vsel %vm1101, -3.4028235e+38, %v981
    %v1106 = vsel %vm1102, -3.4028235e+38, %v982
    %v1107 = vsel %vm1103, -3.4028235e+38, %v983
    %v1108 = vsel %vm1100, 1, 0
    %v1109 = vsel %vm1101, 1, 0
    %v1110 = vsel %vm1102, 1, 0
    %v1111 = vsel %vm1103, 1, 0
    %v1112 = vcvt.s32.f32 %v1108
    %v1113 = vcvt.s32.f32 %v1109
    %v1114 = vcvt.s32.f32 %v1110
    %v1115 = vcvt.s32.f32 %v1111
    %v1117 = vsel %vm957, %v1112, 0
    %v1120 = vsel %vm957, %v1113, 0
    %1122 = vmatprep.subr.mxu0 0.0
    %1123 = vmatpush1.msra.mxu0 %v232
    %1124 = vmatprep.subr.mxu0 0.0
    %1125 = vmatpush1.msra.mxu0 %v237
    %1126 = vmatprep.subr.mxu0 0.0
    %1127 = vmatpush1.msra.mxu0 0.0
    %1128 = vmatprep.subr.mxu0 0.0
    %1129 = vmatpush1.msra.mxu0 0.0
    %1130 = vmatprep.subr.mxu0 0.0
    %1131 = vmatpush1.msra.mxu0 0.0
    %1132 = vmatprep.subr.mxu0 0.0
    %1133 = vmatpush1.msra.mxu0 0.0
    %1134 = vmatprep.subr.mxu0 0.0
    %1135 = vmatpush1.msra.mxu0 0.0
    %1136 = vmatprep.subr.mxu0 0.0
    %1137 = vmatpush1.msra.mxu0 0.0
    %1138 = vmatprep.subr.mxu0 0.0
    %1139 = vmatpush1.msra.mxu0 0.0
    %1140 = vmatprep.subr.mxu0 0.0
    %1141 = vmatpush1.msra.mxu0 0.0
    %1142 = vmatprep.subr.mxu0 0.0
    %1143 = vmatpush1.msra.mxu0 0.0
    %1144 = vmatprep.subr.mxu0 0.0
    %1145 = vmatpush1.msra.mxu0 0.0
    %1146 = vmatprep.subr.mxu0 0.0
    %1147 = vmatpush1.msra.mxu0 0.0
    %1148 = vmatprep.subr.mxu0 0.0
    %1149 = vmatpush1.msra.mxu0 0.0
    %1150 = vmatprep.subr.mxu0 0.0
    %1151 = vmatpush1.msra.mxu0 0.0
    %1152 = vmatprep.subr.mxu0 0.0
    %1153 = vmatpush1.msra.mxu0 0.0
    %1154 = vmatprep.subr.mxu0 0.0
    %1155 = vmatpush1.msra.mxu0 0.0
    %1156 = vmatprep.subr.mxu0 0.0
    %1157 = vmatpush1.msra.mxu0 0.0
    %1158 = vmatprep.subr.mxu0 0.0
    %1159 = vmatpush1.msra.mxu0 0.0
    %1160 = vmatprep.subr.mxu0 0.0
    %1161 = vmatpush1.msra.mxu0 0.0
    %1162 = vmatprep.subr.mxu0 0.0
    %1163 = vmatpush1.msra.mxu0 0.0
    %1164 = vmatprep.subr.mxu0 0.0
    %1165 = vmatpush1.msra.mxu0 0.0
    %1166 = vmatprep.subr.mxu0 0.0
    %1167 = vmatpush1.msra.mxu0 0.0
    %1168 = vmatprep.subr.mxu0 0.0
    %1169 = vmatpush1.msra.mxu0 0.0
    %1170 = vmatprep.subr.mxu0 0.0
    %1171 = vmatpush1.msra.mxu0 0.0
    %1172 = vmatprep.subr.mxu0 0.0
    %1173 = vmatpush1.msra.mxu0 0.0
    %1174 = vmatprep.subr.mxu0 0.0
    %1175 = vmatpush1.msra.mxu0 0.0
    %1176 = vmatprep.subr.mxu0 0.0
    %1177 = vmatpush1.msra.mxu0 0.0
    %1178 = vmatprep.subr.mxu0 0.0
    %1179 = vmatpush1.msra.mxu0 0.0
    %1180 = vmatprep.subr.mxu0 0.0
    %1181 = vmatpush1.msra.mxu0 0.0
    %1182 = vmatprep.subr.mxu0 0.0
    %1183 = vmatpush1.msra.mxu0 0.0
    %1184 = vmatprep.subr.mxu0 0.0
    %1185 = vmatpush1.msra.mxu0 0.0
    %1186 = vmatprep.mubr.f32.mxu0 0.0
    %1187 = vmatmul.mubr.f32.gmra.mrb[0].mxu0 %v1117
    %v1188 = vpop.f32.mrb[0].mxu0
    %v1189 = vadd.f32 0.0, %v1188
    %v1190 = vpop.f32.mrb[0].mxu0
    %1191 = vmatprep.mubr.f32.mxu0 0.0
    %1192 = vmatmul.mubr.f32.gmra.mrb[0].mxu0 %v1120
    %v1193 = vpop.f32.mrb[0].mxu0
    %v1194 = vadd.f32 0.0, %v1193
    %v1195 = vpop.f32.mrb[0].mxu0
    %1196 = vdwg.mxu0
    %v1198 = vsel %vm957, %v1114, 0
    %v1201 = vsel %vm957, %v1115, 0
    %1203 = vmatprep.subr.mxu0 0.0
    %1204 = vmatpush1.msra.mxu0 %v242
    %1205 = vmatprep.subr.mxu0 0.0
    %1206 = vmatpush1.msra.mxu0 %v247
    %1207 = vmatprep.subr.mxu0 0.0
    %1208 = vmatpush1.msra.mxu0 0.0
    %1209 = vmatprep.subr.mxu0 0.0
    %1210 = vmatpush1.msra.mxu0 0.0
    %1211 = vmatprep.subr.mxu0 0.0
    %1212 = vmatpush1.msra.mxu0 0.0
    %1213 = vmatprep.subr.mxu0 0.0
    %1214 = vmatpush1.msra.mxu0 0.0
    %1215 = vmatprep.subr.mxu0 0.0
    %1216 = vmatpush1.msra.mxu0 0.0
    %1217 = vmatprep.subr.mxu0 0.0
    %1218 = vmatpush1.msra.mxu0 0.0
    %1219 = vmatprep.subr.mxu0 0.0
    %1220 = vmatpush1.msra.mxu0 0.0
    %1221 = vmatprep.subr.mxu0 0.0
    %1222 = vmatpush1.msra.mxu0 0.0
    %1223 = vmatprep.subr.mxu0 0.0
    %1224 = vmatpush1.msra.mxu0 0.0
    %1225 = vmatprep.subr.mxu0 0.0
    %1226 = vmatpush1.msra.mxu0 0.0
    %1227 = vmatprep.subr.mxu0 0.0
    %1228 = vmatpush1.msra.mxu0 0.0
    %1229 = vmatprep.subr.mxu0 0.0
    %1230 = vmatpush1.msra.mxu0 0.0
    %1231 = vmatprep.subr.mxu0 0.0
    %1232 = vmatpush1.msra.mxu0 0.0
    %1233 = vmatprep.subr.mxu0 0.0
    %1234 = vmatpush1.msra.mxu0 0.0
    %1235 = vmatprep.subr.mxu0 0.0
    %1236 = vmatpush1.msra.mxu0 0.0
    %1237 = vmatprep.subr.mxu0 0.0
    %1238 = vmatpush1.msra.mxu0 0.0
    %1239 = vmatprep.subr.mxu0 0.0
    %1240 = vmatpush1.msra.mxu0 0.0
    %1241 = vmatprep.subr.mxu0 0.0
    %1242 = vmatpush1.msra.mxu0 0.0
    %1243 = vmatprep.subr.mxu0 0.0
    %1244 = vmatpush1.msra.mxu0 0.0
    %1245 = vmatprep.subr.mxu0 0.0
    %1246 = vmatpush1.msra.mxu0 0.0
    %1247 = vmatprep.subr.mxu0 0.0
    %1248 = vmatpush1.msra.mxu0 0.0
    %1249 = vmatprep.subr.mxu0 0.0
    %1250 = vmatpush1.msra.mxu0 0.0
    %1251 = vmatprep.subr.mxu0 0.0
    %1252 = vmatpush1.msra.mxu0 0.0
    %1253 = vmatprep.subr.mxu0 0.0
    %1254 = vmatpush1.msra.mxu0 0.0
    %1255 = vmatprep.subr.mxu0 0.0
    %1256 = vmatpush1.msra.mxu0 0.0
    %1257 = vmatprep.subr.mxu0 0.0
    %1258 = vmatpush1.msra.mxu0 0.0
    %1259 = vmatprep.subr.mxu0 0.0
    %1260 = vmatpush1.msra.mxu0 0.0
    %1261 = vmatprep.subr.mxu0 0.0
    %1262 = vmatpush1.msra.mxu0 0.0
    %1263 = vmatprep.subr.mxu0 0.0
    %1264 = vmatpush1.msra.mxu0 0.0
    %1265 = vmatprep.subr.mxu0 0.0
    %1266 = vmatpush1.msra.mxu0 0.0
    %1267 = vmatprep.mubr.f32.mxu0 0.0
    %1268 = vmatmul.mubr.f32.gmra.mrb[0].mxu0 %v1198
    %v1269 = vpop.f32.mrb[0].mxu0
    %v1270 = vadd.f32 0.0, %v1269
    %v1271 = vpop.f32.mrb[0].mxu0
    %1272 = vmatprep.mubr.f32.mxu0 0.0
    %1273 = vmatmul.mubr.f32.gmra.mrb[0].mxu0 %v1201
    %v1274 = vpop.f32.mrb[0].mxu0
    %v1275 = vadd.f32 0.0, %v1274
    %v1276 = vpop.f32.mrb[0].mxu0
    %1277 = vdwg.mxu0
    %v1278 = vadd.f32 %v1189, %v266
    %v1279 = vadd.f32 %v1194, %v267
    %v1280 = vadd.f32 %v1270, %v268
    %v1281 = vadd.f32 %v1275, %v269
    %v1282 = vmax.f32 %v1278, 0.0
    %v1283 = vmax.f32 %v1279, 0.0
    %v1284 = vmax.f32 %v1280, 0.0
    %v1285 = vmax.f32 %v1281, 0.0
    %1286 = vmatprep.subr.mxu0 0.0
    %1287 = vmatpush1.msra.mxu0 %v984
    %1288 = vmatprep.subr.mxu0 0.0
    %1289 = vmatpush1.msra.mxu0 %v985
    %1290 = vmatprep.subr.mxu0 0.0
    %1291 = vmatpush1.msra.mxu0 %v986
    %1292 = vmatprep.subr.mxu0 0.0
    %1293 = vmatpush1.msra.mxu0 %v987
    %1294 = vmatprep.subr.mxu0 0.0
    %1295 = vmatpush1.msra.mxu0 %v988
    %1296 = vmatprep.subr.mxu0 0.0
    %1297 = vmatpush1.msra.mxu0 %v989
    %1298 = vmatprep.subr.mxu0 0.0
    %1299 = vmatpush1.msra.mxu0 %v990
    %1300 = vmatprep.subr.mxu0 0.0
    %1301 = vmatpush1.msra.mxu0 %v991
    %1302 = vmatprep.subr.mxu0 0.0
    %1303 = vmatpush1.msra.mxu0 %v992
    %1304 = vmatprep.subr.mxu0 0.0
    %1305 = vmatpush1.msra.mxu0 %v993
    %1306 = vmatprep.subr.mxu0 0.0
    %1307 = vmatpush1.msra.mxu0 %v994
    %1308 = vmatprep.subr.mxu0 0.0
    %1309 = vmatpush1.msra.mxu0 %v995
    %1310 = vmatprep.subr.mxu0 0.0
    %1311 = vmatpush1.msra.mxu0 %v996
    %1312 = vmatprep.subr.mxu0 0.0
    %1313 = vmatpush1.msra.mxu0 %v997
    %1314 = vmatprep.subr.mxu0 0.0
    %1315 = vmatpush1.msra.mxu0 %v998
    %1316 = vmatprep.subr.mxu0 0.0
    %1317 = vmatpush1.msra.mxu0 %v999
    %1318 = vmatprep.subr.mxu0 0.0
    %1319 = vmatpush1.msra.mxu0 0.0
    %1320 = vmatprep.subr.mxu0 0.0
    %1321 = vmatpush1.msra.mxu0 0.0
    %1322 = vmatprep.subr.mxu0 0.0
    %1323 = vmatpush1.msra.mxu0 0.0
    %1324 = vmatprep.subr.mxu0 0.0
    %1325 = vmatpush1.msra.mxu0 0.0
    %1326 = vmatprep.subr.mxu0 0.0
    %1327 = vmatpush1.msra.mxu0 0.0
    %1328 = vmatprep.subr.mxu0 0.0
    %1329 = vmatpush1.msra.mxu0 0.0
    %1330 = vmatprep.subr.mxu0 0.0
    %1331 = vmatpush1.msra.mxu0 0.0
    %1332 = vmatprep.subr.mxu0 0.0
    %1333 = vmatpush1.msra.mxu0 0.0
    %1334 = vmatprep.subr.mxu0 0.0
    %1335 = vmatpush1.msra.mxu0 0.0
    %1336 = vmatprep.subr.mxu0 0.0
    %1337 = vmatpush1.msra.mxu0 0.0
    %1338 = vmatprep.subr.mxu0 0.0
    %1339 = vmatpush1.msra.mxu0 0.0
    %1340 = vmatprep.subr.mxu0 0.0
    %1341 = vmatpush1.msra.mxu0 0.0
    %1342 = vmatprep.subr.mxu0 0.0
    %1343 = vmatpush1.msra.mxu0 0.0
    %1344 = vmatprep.subr.mxu0 0.0
    %1345 = vmatpush1.msra.mxu0 0.0
    %1346 = vmatprep.subr.mxu0 0.0
    %1347 = vmatpush1.msra.mxu0 0.0
    %1348 = vmatprep.subr.mxu0 0.0
    %1349 = vmatpush1.msra.mxu0 0.0
    %1350 = vmatprep.mubr.f32.mxu0 0.0
    %1351 = vmatmul.mubr.f32.gmra.mrb[0].mxu0 %v1282
    %v1352 = vpop.f32.mrb[0].mxu0
    %v1353 = vadd.f32 %v1019, %v1352
    %v1354 = vpop.f32.mrb[0].mxu0
    %1355 = vmatprep.mubr.f32.mxu0 0.0
    %1356 = vmatmul.mubr.f32.gmra.mrb[0].mxu0 %v1283
    %v1357 = vpop.f32.mrb[0].mxu0
    %v1358 = vadd.f32 %v1019, %v1357
    %v1359 = vpop.f32.mrb[0].mxu0
    %1360 = vmatprep.mubr.f32.mxu0 0.0
    %1361 = vmatmul.mubr.f32.gmra.mrb[0].mxu0 %v1284
    %v1362 = vpop.f32.mrb[0].mxu0
    %v1363 = vadd.f32 %v1019, %v1362
    %v1364 = vpop.f32.mrb[0].mxu0
    %1365 = vmatprep.mubr.f32.mxu0 0.0
    %1366 = vmatmul.mubr.f32.gmra.mrb[0].mxu0 %v1285
    %v1367 = vpop.f32.mrb[0].mxu0
    %v1368 = vadd.f32 %v1019, %v1367
    %v1369 = vpop.f32.mrb[0].mxu0
    %1370 = vdwg.mxu0
    %v1371 = vmax.f32 %v1353, 0.0
    %v1372 = vmax.f32 %v1358, 0.0
    %v1373 = vmax.f32 %v1363, 0.0
    %v1374 = vmax.f32 %v1368, 0.0
    %1375 = vmatprep.subr.mxu0 0.0
    %1376 = vmatpush1.msra.mxu0 %v1000
    %1377 = vmatprep.subr.mxu0 0.0
    %1378 = vmatpush1.msra.mxu0 %v1001
    %1379 = vmatprep.subr.mxu0 0.0
    %1380 = vmatpush1.msra.mxu0 %v1002
    %1381 = vmatprep.subr.mxu0 0.0
    %1382 = vmatpush1.msra.mxu0 %v1003
    %1383 = vmatprep.subr.mxu0 0.0
    %1384 = vmatpush1.msra.mxu0 %v1004
    %1385 = vmatprep.subr.mxu0 0.0
    %1386 = vmatpush1.msra.mxu0 %v1005
    %1387 = vmatprep.subr.mxu0 0.0
    %1388 = vmatpush1.msra.mxu0 %v1006
    %1389 = vmatprep.subr.mxu0 0.0
    %1390 = vmatpush1.msra.mxu0 %v1007
    %1391 = vmatprep.subr.mxu0 0.0
    %1392 = vmatpush1.msra.mxu0 %v1008
    %1393 = vmatprep.subr.mxu0 0.0
    %1394 = vmatpush1.msra.mxu0 %v1009
    %1395 = vmatprep.subr.mxu0 0.0
    %1396 = vmatpush1.msra.mxu0 %v1010
    %1397 = vmatprep.subr.mxu0 0.0
    %1398 = vmatpush1.msra.mxu0 %v1011
    %1399 = vmatprep.subr.mxu0 0.0
    %1400 = vmatpush1.msra.mxu0 %v1012
    %1401 = vmatprep.subr.mxu0 0.0
    %1402 = vmatpush1.msra.mxu0 %v1013
    %1403 = vmatprep.subr.mxu0 0.0
    %1404 = vmatpush1.msra.mxu0 %v1014
    %1405 = vmatprep.subr.mxu0 0.0
    %1406 = vmatpush1.msra.mxu0 %v1015
    %1407 = vmatprep.subr.mxu0 0.0
    %1408 = vmatpush1.msra.mxu0 0.0
    %1409 = vmatprep.subr.mxu0 0.0
    %1410 = vmatpush1.msra.mxu0 0.0
    %1411 = vmatprep.subr.mxu0 0.0
    %1412 = vmatpush1.msra.mxu0 0.0
    %1413 = vmatprep.subr.mxu0 0.0
    %1414 = vmatpush1.msra.mxu0 0.0
    %1415 = vmatprep.subr.mxu0 0.0
    %1416 = vmatpush1.msra.mxu0 0.0
    %1417 = vmatprep.subr.mxu0 0.0
    %1418 = vmatpush1.msra.mxu0 0.0
    %1419 = vmatprep.subr.mxu0 0.0
    %1420 = vmatpush1.msra.mxu0 0.0
    %1421 = vmatprep.subr.mxu0 0.0
    %1422 = vmatpush1.msra.mxu0 0.0
    %1423 = vmatprep.subr.mxu0 0.0
    %1424 = vmatpush1.msra.mxu0 0.0
    %1425 = vmatprep.subr.mxu0 0.0
    %1426 = vmatpush1.msra.mxu0 0.0
    %1427 = vmatprep.subr.mxu0 0.0
    %1428 = vmatpush1.msra.mxu0 0.0
    %1429 = vmatprep.subr.mxu0 0.0
    %1430 = vmatpush1.msra.mxu0 0.0
    %1431 = vmatprep.subr.mxu0 0.0
    %1432 = vmatpush1.msra.mxu0 0.0
    %1433 = vmatprep.subr.mxu0 0.0
    %1434 = vmatpush1.msra.mxu0 0.0
    %1435 = vmatprep.subr.mxu0 0.0
    %1436 = vmatpush1.msra.mxu0 0.0
    %1437 = vmatprep.subr.mxu0 0.0
    %1438 = vmatpush1.msra.mxu0 0.0
    %1439 = vmatprep.mubr.f32.mxu0 0.0
    %1440 = vmatmul.mubr.f32.gmra.mrb[0].mxu0 %v1371
    %v1441 = vpop.f32.mrb[0].mxu0
    %v1442 = vadd.f32 0.0, %v1441
    %v1443 = vpop.f32.mrb[0].mxu0
    %1444 = vmatprep.mubr.f32.mxu0 0.0
    %1445 = vmatmul.mubr.f32.gmra.mrb[0].mxu0 %v1372
    %v1446 = vpop.f32.mrb[0].mxu0
    %v1447 = vadd.f32 0.0, %v1446
    %v1448 = vpop.f32.mrb[0].mxu0
    %1449 = vmatprep.mubr.f32.mxu0 0.0
    %1450 = vmatmul.mubr.f32.gmra.mrb[0].mxu0 %v1373
    %v1451 = vpop.f32.mrb[0].mxu0
    %v1452 = vadd.f32 0.0, %v1451
    %v1453 = vpop.f32.mrb[0].mxu0
    %1454 = vmatprep.mubr.f32.mxu0 0.0
    %1455 = vmatmul.mubr.f32.gmra.mrb[0].mxu0 %v1374
    %v1456 = vpop.f32.mrb[0].mxu0
    %v1457 = vadd.f32 0.0, %v1456
    %v1458 = vpop.f32.mrb[0].mxu0
    %1459 = vdwg.mxu0
    %v1460 = vsel %vm957, %v1104, -inf
    %1461 = vmax.xlane.f32.xlu0 %v1460
    %v1462 = vpop.xlane.xlu0 %1461
    %v1463 = vsel %vm957, %v1105, -inf
    %1464 = vmax.xlane.f32.xlu0 %v1463
    %v1465 = vpop.xlane.xlu0 %1464
    %v1466 = vsel %vm957, %v1106, -inf
    %1467 = vmax.xlane.f32.xlu0 %v1466
    %v1468 = vpop.xlane.xlu0 %1467
    %v1469 = vsel %vm957, %v1107, -inf
    %1470 = vmax.xlane.f32.xlu0 %v1469
    %v1471 = vpop.xlane.xlu0 %1470
    %vm1472 = vcmp.eq.f32.partialorder %v1104, %v1462
    %vm1473 = vcmp.eq.f32.partialorder %v1105, %v1465
    %vm1474 = vcmp.eq.f32.partialorder %v1106, %v1468
    %vm1475 = vcmp.eq.f32.partialorder %v1107, %v1471
    %v1476 = vsel %vm1472, %v950, 16
    %v1477 = vsel %vm1473, %v950, 16
    %v1478 = vsel %vm1474, %v950, 16
    %v1479 = vsel %vm1475, %v950, 16
    %v1480 = vsel %vm957, %v1476, 2147483647
    %v1481 = vand.u32 %v1480, 65535
    %v1482 = vshra.s32 %v1480, 16
    %v1483 = vcvt.s32.f32 %v1481
    %v1484 = vcvt.s32.f32 %v1482
    %1485 = vmin.xlane.f32.xlu0 %v1484
    %v1486 = vpop.xlane.xlu0 %1485
    %vm1487 = vcmp.eq.f32.partialorder %v1484, %v1486
    %v1488 = vsel %vm1487, %v1483, inf
    %1489 = vmin.xlane.f32.xlu0 %v1488
    %v1490 = vpop.xlane.xlu0 %1489
    %v1491 = vcvt.f32.s32 %v1490
    %v1492 = vcvt.f32.s32 %v1486
    %v1493 = vshll.u32 %v1492, 16
    %v1494 = vadd.s32 %v1493, %v1491
    %v1495 = vsel %vm957, %v1477, 2147483647
    %v1496 = vand.u32 %v1495, 65535
    %v1497 = vshra.s32 %v1495, 16
    %v1498 = vcvt.s32.f32 %v1496
    %v1499 = vcvt.s32.f32 %v1497
    %1500 = vmin.xlane.f32.xlu0 %v1499
    %v1501 = vpop.xlane.xlu0 %1500
    %vm1502 = vcmp.eq.f32.partialorder %v1499, %v1501
    %v1503 = vsel %vm1502, %v1498, inf
    %1504 = vmin.xlane.f32.xlu0 %v1503
    %v1505 = vpop.xlane.xlu0 %1504
    %v1506 = vcvt.f32.s32 %v1505
    %v1507 = vcvt.f32.s32 %v1501
    %v1508 = vshll.u32 %v1507, 16
    %v1509 = vadd.s32 %v1508, %v1506
    %v1510 = vsel %vm957, %v1478, 2147483647
    %v1511 = vand.u32 %v1510, 65535
    %v1512 = vshra.s32 %v1510, 16
    %v1513 = vcvt.s32.f32 %v1511
    %v1514 = vcvt.s32.f32 %v1512
    %1515 = vmin.xlane.f32.xlu0 %v1514
    %v1516 = vpop.xlane.xlu0 %1515
    %vm1517 = vcmp.eq.f32.partialorder %v1514, %v1516
    %v1518 = vsel %vm1517, %v1513, inf
    %1519 = vmin.xlane.f32.xlu0 %v1518
    %v1520 = vpop.xlane.xlu0 %1519
    %v1521 = vcvt.f32.s32 %v1520
    %v1522 = vcvt.f32.s32 %v1516
    %v1523 = vshll.u32 %v1522, 16
    %v1524 = vadd.s32 %v1523, %v1521
    %v1525 = vsel %vm957, %v1479, 2147483647
    %v1526 = vand.u32 %v1525, 65535
    %v1527 = vshra.s32 %v1525, 16
    %v1528 = vcvt.s32.f32 %v1526
    %v1529 = vcvt.s32.f32 %v1527
    %1530 = vmin.xlane.f32.xlu0 %v1529
    %v1531 = vpop.xlane.xlu0 %1530
    %vm1532 = vcmp.eq.f32.partialorder %v1529, %v1531
    %v1533 = vsel %vm1532, %v1528, inf
    %1534 = vmin.xlane.f32.xlu0 %v1533
    %v1535 = vpop.xlane.xlu0 %1534
    %v1536 = vcvt.f32.s32 %v1535
    %v1537 = vcvt.f32.s32 %v1531
    %v1538 = vshll.u32 %v1537, 16
    %v1539 = vadd.s32 %v1538, %v1536
    %vm1540 = vcmp.eq.s32.totalorder %v950, %v1494
    %vm1541 = vcmp.eq.s32.totalorder %v950, %v1509
    %vm1542 = vcmp.eq.s32.totalorder %v950, %v1524
    %vm1543 = vcmp.eq.s32.totalorder %v950, %v1539
    %v1544 = vsel %vm1540, -3.4028235e+38, %v1104
    %v1545 = vsel %vm1541, -3.4028235e+38, %v1105
    %v1546 = vsel %vm1542, -3.4028235e+38, %v1106
    %v1547 = vsel %vm1543, -3.4028235e+38, %v1107
    %v1548 = vsel %vm1540, 1, 0
    %v1549 = vsel %vm1541, 1, 0
    %v1550 = vsel %vm1542, 1, 0
    %v1551 = vsel %vm1543, 1, 0
    %v1552 = vcvt.s32.f32 %v1548
    %v1553 = vcvt.s32.f32 %v1549
    %v1554 = vcvt.s32.f32 %v1550
    %v1555 = vcvt.s32.f32 %v1551
    %v1557 = vsel %vm957, %v1552, 0
    %v1560 = vsel %vm957, %v1553, 0
    %1562 = vmatprep.subr.mxu0 0.0
    %1563 = vmatpush1.msra.mxu0 %v232
    %1564 = vmatprep.subr.mxu0 0.0
    %1565 = vmatpush1.msra.mxu0 %v237
    %1566 = vmatprep.subr.mxu0 0.0
    %1567 = vmatpush1.msra.mxu0 0.0
    %1568 = vmatprep.subr.mxu0 0.0
    %1569 = vmatpush1.msra.mxu0 0.0
    %1570 = vmatprep.subr.mxu0 0.0
    %1571 = vmatpush1.msra.mxu0 0.0
    %1572 = vmatprep.subr.mxu0 0.0
    %1573 = vmatpush1.msra.mxu0 0.0
    %1574 = vmatprep.subr.mxu0 0.0
    %1575 = vmatpush1.msra.mxu0 0.0
    %1576 = vmatprep.subr.mxu0 0.0
    %1577 = vmatpush1.msra.mxu0 0.0
    %1578 = vmatprep.subr.mxu0 0.0
    %1579 = vmatpush1.msra.mxu0 0.0
    %1580 = vmatprep.subr.mxu0 0.0
    %1581 = vmatpush1.msra.mxu0 0.0
    %1582 = vmatprep.subr.mxu0 0.0
    %1583 = vmatpush1.msra.mxu0 0.0
    %1584 = vmatprep.subr.mxu0 0.0
    %1585 = vmatpush1.msra.mxu0 0.0
    %1586 = vmatprep.subr.mxu0 0.0
    %1587 = vmatpush1.msra.mxu0 0.0
    %1588 = vmatprep.subr.mxu0 0.0
    %1589 = vmatpush1.msra.mxu0 0.0
    %1590 = vmatprep.subr.mxu0 0.0
    %1591 = vmatpush1.msra.mxu0 0.0
    %1592 = vmatprep.subr.mxu0 0.0
    %1593 = vmatpush1.msra.mxu0 0.0
    %1594 = vmatprep.subr.mxu0 0.0
    %1595 = vmatpush1.msra.mxu0 0.0
    %1596 = vmatprep.subr.mxu0 0.0
    %1597 = vmatpush1.msra.mxu0 0.0
    %1598 = vmatprep.subr.mxu0 0.0
    %1599 = vmatpush1.msra.mxu0 0.0
    %1600 = vmatprep.subr.mxu0 0.0
    %1601 = vmatpush1.msra.mxu0 0.0
    %1602 = vmatprep.subr.mxu0 0.0
    %1603 = vmatpush1.msra.mxu0 0.0
    %1604 = vmatprep.subr.mxu0 0.0
    %1605 = vmatpush1.msra.mxu0 0.0
    %1606 = vmatprep.subr.mxu0 0.0
    %1607 = vmatpush1.msra.mxu0 0.0
    %1608 = vmatprep.subr.mxu0 0.0
    %1609 = vmatpush1.msra.mxu0 0.0
    %1610 = vmatprep.subr.mxu0 0.0
    %1611 = vmatpush1.msra.mxu0 0.0
    %1612 = vmatprep.subr.mxu0 0.0
    %1613 = vmatpush1.msra.mxu0 0.0
    %1614 = vmatprep.subr.mxu0 0.0
    %1615 = vmatpush1.msra.mxu0 0.0
    %1616 = vmatprep.subr.mxu0 0.0
    %1617 = vmatpush1.msra.mxu0 0.0
    %1618 = vmatprep.subr.mxu0 0.0
    %1619 = vmatpush1.msra.mxu0 0.0
    %1620 = vmatprep.subr.mxu0 0.0
    %1621 = vmatpush1.msra.mxu0 0.0
    %1622 = vmatprep.subr.mxu0 0.0
    %1623 = vmatpush1.msra.mxu0 0.0
    %1624 = vmatprep.subr.mxu0 0.0
    %1625 = vmatpush1.msra.mxu0 0.0
    %1626 = vmatprep.mubr.f32.mxu0 0.0
    %1627 = vmatmul.mubr.f32.gmra.mrb[0].mxu0 %v1557
    %v1628 = vpop.f32.mrb[0].mxu0
    %v1629 = vadd.f32 0.0, %v1628
    %v1630 = vpop.f32.mrb[0].mxu0
    %1631 = vmatprep.mubr.f32.mxu0 0.0
    %1632 = vmatmul.mubr.f32.gmra.mrb[0].mxu0 %v1560
    %v1633 = vpop.f32.mrb[0].mxu0
    %v1634 = vadd.f32 0.0, %v1633
    %v1635 = vpop.f32.mrb[0].mxu0
    %1636 = vdwg.mxu0
    %v1638 = vsel %vm957, %v1554, 0
    %v1641 = vsel %vm957, %v1555, 0
    %1643 = vmatprep.subr.mxu0 0.0
    %1644 = vmatpush1.msra.mxu0 %v242
    %1645 = vmatprep.subr.mxu0 0.0
    %1646 = vmatpush1.msra.mxu0 %v247
    %1647 = vmatprep.subr.mxu0 0.0
    %1648 = vmatpush1.msra.mxu0 0.0
    %1649 = vmatprep.subr.mxu0 0.0
    %1650 = vmatpush1.msra.mxu0 0.0
    %1651 = vmatprep.subr.mxu0 0.0
    %1652 = vmatpush1.msra.mxu0 0.0
    %1653 = vmatprep.subr.mxu0 0.0
    %1654 = vmatpush1.msra.mxu0 0.0
    %1655 = vmatprep.subr.mxu0 0.0
    %1656 = vmatpush1.msra.mxu0 0.0
    %1657 = vmatprep.subr.mxu0 0.0
    %1658 = vmatpush1.msra.mxu0 0.0
    %1659 = vmatprep.subr.mxu0 0.0
    %1660 = vmatpush1.msra.mxu0 0.0
    %1661 = vmatprep.subr.mxu0 0.0
    %1662 = vmatpush1.msra.mxu0 0.0
    %1663 = vmatprep.subr.mxu0 0.0
    %1664 = vmatpush1.msra.mxu0 0.0
    %1665 = vmatprep.subr.mxu0 0.0
    %1666 = vmatpush1.msra.mxu0 0.0
    %1667 = vmatprep.subr.mxu0 0.0
    %1668 = vmatpush1.msra.mxu0 0.0
    %1669 = vmatprep.subr.mxu0 0.0
    %1670 = vmatpush1.msra.mxu0 0.0
    %1671 = vmatprep.subr.mxu0 0.0
    %1672 = vmatpush1.msra.mxu0 0.0
    %1673 = vmatprep.subr.mxu0 0.0
    %1674 = vmatpush1.msra.mxu0 0.0
    %1675 = vmatprep.subr.mxu0 0.0
    %1676 = vmatpush1.msra.mxu0 0.0
    %1677 = vmatprep.subr.mxu0 0.0
    %1678 = vmatpush1.msra.mxu0 0.0
    %1679 = vmatprep.subr.mxu0 0.0
    %1680 = vmatpush1.msra.mxu0 0.0
    %1681 = vmatprep.subr.mxu0 0.0
    %1682 = vmatpush1.msra.mxu0 0.0
    %1683 = vmatprep.subr.mxu0 0.0
    %1684 = vmatpush1.msra.mxu0 0.0
    %1685 = vmatprep.subr.mxu0 0.0
    %1686 = vmatpush1.msra.mxu0 0.0
    %1687 = vmatprep.subr.mxu0 0.0
    %1688 = vmatpush1.msra.mxu0 0.0
    %1689 = vmatprep.subr.mxu0 0.0
    %1690 = vmatpush1.msra.mxu0 0.0
    %1691 = vmatprep.subr.mxu0 0.0
    %1692 = vmatpush1.msra.mxu0 0.0
    %1693 = vmatprep.subr.mxu0 0.0
    %1694 = vmatpush1.msra.mxu0 0.0
    %1695 = vmatprep.subr.mxu0 0.0
    %1696 = vmatpush1.msra.mxu0 0.0
    %1697 = vmatprep.subr.mxu0 0.0
    %1698 = vmatpush1.msra.mxu0 0.0
    %1699 = vmatprep.subr.mxu0 0.0
    %1700 = vmatpush1.msra.mxu0 0.0
    %1701 = vmatprep.subr.mxu0 0.0
    %1702 = vmatpush1.msra.mxu0 0.0
    %1703 = vmatprep.subr.mxu0 0.0
    %1704 = vmatpush1.msra.mxu0 0.0
    %1705 = vmatprep.subr.mxu0 0.0
    %1706 = vmatpush1.msra.mxu0 0.0
    %1707 = vmatprep.mubr.f32.mxu0 0.0
    %1708 = vmatmul.mubr.f32.gmra.mrb[0].mxu0 %v1638
    %v1709 = vpop.f32.mrb[0].mxu0
    %v1710 = vadd.f32 0.0, %v1709
    %v1711 = vpop.f32.mrb[0].mxu0
    %1712 = vmatprep.mubr.f32.mxu0 0.0
    %1713 = vmatmul.mubr.f32.gmra.mrb[0].mxu0 %v1641
    %v1714 = vpop.f32.mrb[0].mxu0
    %v1715 = vadd.f32 0.0, %v1714
    %v1716 = vpop.f32.mrb[0].mxu0
    %1717 = vdwg.mxu0
    %v1718 = vadd.f32 %v1629, %v266
    %v1719 = vadd.f32 %v1634, %v267
    %v1720 = vadd.f32 %v1710, %v268
    %v1721 = vadd.f32 %v1715, %v269
    %v1722 = vmax.f32 %v1718, 0.0
    %v1723 = vmax.f32 %v1719, 0.0
    %v1724 = vmax.f32 %v1720, 0.0
    %v1725 = vmax.f32 %v1721, 0.0
    %1726 = vmatprep.subr.mxu0 0.0
    %1727 = vmatpush1.msra.mxu0 %v984
    %1728 = vmatprep.subr.mxu0 0.0
    %1729 = vmatpush1.msra.mxu0 %v985
    %1730 = vmatprep.subr.mxu0 0.0
    %1731 = vmatpush1.msra.mxu0 %v986
    %1732 = vmatprep.subr.mxu0 0.0
    %1733 = vmatpush1.msra.mxu0 %v987
    %1734 = vmatprep.subr.mxu0 0.0
    %1735 = vmatpush1.msra.mxu0 %v988
    %1736 = vmatprep.subr.mxu0 0.0
    %1737 = vmatpush1.msra.mxu0 %v989
    %1738 = vmatprep.subr.mxu0 0.0
    %1739 = vmatpush1.msra.mxu0 %v990
    %1740 = vmatprep.subr.mxu0 0.0
    %1741 = vmatpush1.msra.mxu0 %v991
    %1742 = vmatprep.subr.mxu0 0.0
    %1743 = vmatpush1.msra.mxu0 %v992
    %1744 = vmatprep.subr.mxu0 0.0
    %1745 = vmatpush1.msra.mxu0 %v993
    %1746 = vmatprep.subr.mxu0 0.0
    %1747 = vmatpush1.msra.mxu0 %v994
    %1748 = vmatprep.subr.mxu0 0.0
    %1749 = vmatpush1.msra.mxu0 %v995
    %1750 = vmatprep.subr.mxu0 0.0
    %1751 = vmatpush1.msra.mxu0 %v996
    %1752 = vmatprep.subr.mxu0 0.0
    %1753 = vmatpush1.msra.mxu0 %v997
    %1754 = vmatprep.subr.mxu0 0.0
    %1755 = vmatpush1.msra.mxu0 %v998
    %1756 = vmatprep.subr.mxu0 0.0
    %1757 = vmatpush1.msra.mxu0 %v999
    %1758 = vmatprep.subr.mxu0 0.0
    %1759 = vmatpush1.msra.mxu0 0.0
    %1760 = vmatprep.subr.mxu0 0.0
    %1761 = vmatpush1.msra.mxu0 0.0
    %1762 = vmatprep.subr.mxu0 0.0
    %1763 = vmatpush1.msra.mxu0 0.0
    %1764 = vmatprep.subr.mxu0 0.0
    %1765 = vmatpush1.msra.mxu0 0.0
    %1766 = vmatprep.subr.mxu0 0.0
    %1767 = vmatpush1.msra.mxu0 0.0
    %1768 = vmatprep.subr.mxu0 0.0
    %1769 = vmatpush1.msra.mxu0 0.0
    %1770 = vmatprep.subr.mxu0 0.0
    %1771 = vmatpush1.msra.mxu0 0.0
    %1772 = vmatprep.subr.mxu0 0.0
    %1773 = vmatpush1.msra.mxu0 0.0
    %1774 = vmatprep.subr.mxu0 0.0
    %1775 = vmatpush1.msra.mxu0 0.0
    %1776 = vmatprep.subr.mxu0 0.0
    %1777 = vmatpush1.msra.mxu0 0.0
    %1778 = vmatprep.subr.mxu0 0.0
    %1779 = vmatpush1.msra.mxu0 0.0
    %1780 = vmatprep.subr.mxu0 0.0
    %1781 = vmatpush1.msra.mxu0 0.0
    %1782 = vmatprep.subr.mxu0 0.0
    %1783 = vmatpush1.msra.mxu0 0.0
    %1784 = vmatprep.subr.mxu0 0.0
    %1785 = vmatpush1.msra.mxu0 0.0
    %1786 = vmatprep.subr.mxu0 0.0
    %1787 = vmatpush1.msra.mxu0 0.0
    %1788 = vmatprep.subr.mxu0 0.0
    %1789 = vmatpush1.msra.mxu0 0.0
    %1790 = vmatprep.mubr.f32.mxu0 0.0
    %1791 = vmatmul.mubr.f32.gmra.mrb[0].mxu0 %v1722
    %v1792 = vpop.f32.mrb[0].mxu0
    %v1793 = vadd.f32 %v1019, %v1792
    %v1794 = vpop.f32.mrb[0].mxu0
    %1795 = vmatprep.mubr.f32.mxu0 0.0
    %1796 = vmatmul.mubr.f32.gmra.mrb[0].mxu0 %v1723
    %v1797 = vpop.f32.mrb[0].mxu0
    %v1798 = vadd.f32 %v1019, %v1797
    %v1799 = vpop.f32.mrb[0].mxu0
    %1800 = vmatprep.mubr.f32.mxu0 0.0
    %1801 = vmatmul.mubr.f32.gmra.mrb[0].mxu0 %v1724
    %v1802 = vpop.f32.mrb[0].mxu0
    %v1803 = vadd.f32 %v1019, %v1802
    %v1804 = vpop.f32.mrb[0].mxu0
    %1805 = vmatprep.mubr.f32.mxu0 0.0
    %1806 = vmatmul.mubr.f32.gmra.mrb[0].mxu0 %v1725
    %v1807 = vpop.f32.mrb[0].mxu0
    %v1808 = vadd.f32 %v1019, %v1807
    %v1809 = vpop.f32.mrb[0].mxu0
    %1810 = vdwg.mxu0
    %v1811 = vmax.f32 %v1793, 0.0
    %v1812 = vmax.f32 %v1798, 0.0
    %v1813 = vmax.f32 %v1803, 0.0
    %v1814 = vmax.f32 %v1808, 0.0
    %1815 = vmatprep.subr.mxu0 0.0
    %1816 = vmatpush1.msra.mxu0 %v1000
    %1817 = vmatprep.subr.mxu0 0.0
    %1818 = vmatpush1.msra.mxu0 %v1001
    %1819 = vmatprep.subr.mxu0 0.0
    %1820 = vmatpush1.msra.mxu0 %v1002
    %1821 = vmatprep.subr.mxu0 0.0
    %1822 = vmatpush1.msra.mxu0 %v1003
    %1823 = vmatprep.subr.mxu0 0.0
    %1824 = vmatpush1.msra.mxu0 %v1004
    %1825 = vmatprep.subr.mxu0 0.0
    %1826 = vmatpush1.msra.mxu0 %v1005
    %1827 = vmatprep.subr.mxu0 0.0
    %1828 = vmatpush1.msra.mxu0 %v1006
    %1829 = vmatprep.subr.mxu0 0.0
    %1830 = vmatpush1.msra.mxu0 %v1007
    %1831 = vmatprep.subr.mxu0 0.0
    %1832 = vmatpush1.msra.mxu0 %v1008
    %1833 = vmatprep.subr.mxu0 0.0
    %1834 = vmatpush1.msra.mxu0 %v1009
    %1835 = vmatprep.subr.mxu0 0.0
    %1836 = vmatpush1.msra.mxu0 %v1010
    %1837 = vmatprep.subr.mxu0 0.0
    %1838 = vmatpush1.msra.mxu0 %v1011
    %1839 = vmatprep.subr.mxu0 0.0
    %1840 = vmatpush1.msra.mxu0 %v1012
    %1841 = vmatprep.subr.mxu0 0.0
    %1842 = vmatpush1.msra.mxu0 %v1013
    %1843 = vmatprep.subr.mxu0 0.0
    %1844 = vmatpush1.msra.mxu0 %v1014
    %1845 = vmatprep.subr.mxu0 0.0
    %1846 = vmatpush1.msra.mxu0 %v1015
    %1847 = vmatprep.subr.mxu0 0.0
    %1848 = vmatpush1.msra.mxu0 0.0
    %1849 = vmatprep.subr.mxu0 0.0
    %1850 = vmatpush1.msra.mxu0 0.0
    %1851 = vmatprep.subr.mxu0 0.0
    %1852 = vmatpush1.msra.mxu0 0.0
    %1853 = vmatprep.subr.mxu0 0.0
    %1854 = vmatpush1.msra.mxu0 0.0
    %1855 = vmatprep.subr.mxu0 0.0
    %1856 = vmatpush1.msra.mxu0 0.0
    %1857 = vmatprep.subr.mxu0 0.0
    %1858 = vmatpush1.msra.mxu0 0.0
    %1859 = vmatprep.subr.mxu0 0.0
    %1860 = vmatpush1.msra.mxu0 0.0
    %1861 = vmatprep.subr.mxu0 0.0
    %1862 = vmatpush1.msra.mxu0 0.0
    %1863 = vmatprep.subr.mxu0 0.0
    %1864 = vmatpush1.msra.mxu0 0.0
    %1865 = vmatprep.subr.mxu0 0.0
    %1866 = vmatpush1.msra.mxu0 0.0
    %1867 = vmatprep.subr.mxu0 0.0
    %1868 = vmatpush1.msra.mxu0 0.0
    %1869 = vmatprep.subr.mxu0 0.0
    %1870 = vmatpush1.msra.mxu0 0.0
    %1871 = vmatprep.subr.mxu0 0.0
    %1872 = vmatpush1.msra.mxu0 0.0
    %1873 = vmatprep.subr.mxu0 0.0
    %1874 = vmatpush1.msra.mxu0 0.0
    %1875 = vmatprep.subr.mxu0 0.0
    %1876 = vmatpush1.msra.mxu0 0.0
    %1877 = vmatprep.subr.mxu0 0.0
    %1878 = vmatpush1.msra.mxu0 0.0
    %1879 = vmatprep.mubr.f32.mxu0 0.0
    %1880 = vmatmul.mubr.f32.gmra.mrb[0].mxu0 %v1811
    %v1881 = vpop.f32.mrb[0].mxu0
    %v1882 = vadd.f32 0.0, %v1881
    %v1883 = vpop.f32.mrb[0].mxu0
    %1884 = vmatprep.mubr.f32.mxu0 0.0
    %1885 = vmatmul.mubr.f32.gmra.mrb[0].mxu0 %v1812
    %v1886 = vpop.f32.mrb[0].mxu0
    %v1887 = vadd.f32 0.0, %v1886
    %v1888 = vpop.f32.mrb[0].mxu0
    %1889 = vmatprep.mubr.f32.mxu0 0.0
    %1890 = vmatmul.mubr.f32.gmra.mrb[0].mxu0 %v1813
    %v1891 = vpop.f32.mrb[0].mxu0
    %v1892 = vadd.f32 0.0, %v1891
    %v1893 = vpop.f32.mrb[0].mxu0
    %1894 = vmatprep.mubr.f32.mxu0 0.0
    %1895 = vmatmul.mubr.f32.gmra.mrb[0].mxu0 %v1814
    %v1896 = vpop.f32.mrb[0].mxu0
    %v1897 = vadd.f32 0.0, %v1896
    %v1898 = vpop.f32.mrb[0].mxu0
    %1899 = vdwg.mxu0
    %v1900 = vmax.f32 %v1442, %v1882
    %v1901 = vmax.f32 %v1447, %v1887
    %v1902 = vmax.f32 %v1452, %v1892
    %v1903 = vmax.f32 %v1457, %v1897
    %v1904 = vsel %vm957, %v1544, -inf
    %1905 = vmax.xlane.f32.xlu0 %v1904
    %v1906 = vpop.xlane.xlu0 %1905
    %v1907 = vsel %vm957, %v1545, -inf
    %1908 = vmax.xlane.f32.xlu0 %v1907
    %v1909 = vpop.xlane.xlu0 %1908
    %v1910 = vsel %vm957, %v1546, -inf
    %1911 = vmax.xlane.f32.xlu0 %v1910
    %v1912 = vpop.xlane.xlu0 %1911
    %v1913 = vsel %vm957, %v1547, -inf
    %1914 = vmax.xlane.f32.xlu0 %v1913
    %v1915 = vpop.xlane.xlu0 %1914
    %vm1916 = vcmp.eq.f32.partialorder %v1544, %v1906
    %vm1917 = vcmp.eq.f32.partialorder %v1545, %v1909
    %vm1918 = vcmp.eq.f32.partialorder %v1546, %v1912
    %vm1919 = vcmp.eq.f32.partialorder %v1547, %v1915
    %v1920 = vsel %vm1916, %v950, 16
    %v1921 = vsel %vm1917, %v950, 16
    %v1922 = vsel %vm1918, %v950, 16
    %v1923 = vsel %vm1919, %v950, 16
    %v1924 = vsel %vm957, %v1920, 2147483647
    %v1925 = vand.u32 %v1924, 65535
    %v1926 = vshra.s32 %v1924, 16
    %v1927 = vcvt.s32.f32 %v1925
    %v1928 = vcvt.s32.f32 %v1926
    %1929 = vmin.xlane.f32.xlu0 %v1928
    %v1930 = vpop.xlane.xlu0 %1929
    %vm1931 = vcmp.eq.f32.partialorder %v1928, %v1930
    %v1932 = vsel %vm1931, %v1927, inf
    %1933 = vmin.xlane.f32.xlu0 %v1932
    %v1934 = vpop.xlane.xlu0 %1933
    %v1935 = vcvt.f32.s32 %v1934
    %v1936 = vcvt.f32.s32 %v1930
    %v1937 = vshll.u32 %v1936, 16
    %v1938 = vadd.s32 %v1937, %v1935
    %v1939 = vsel %vm957, %v1921, 2147483647
    %v1940 = vand.u32 %v1939, 65535
    %v1941 = vshra.s32 %v1939, 16
    %v1942 = vcvt.s32.f32 %v1940
    %v1943 = vcvt.s32.f32 %v1941
    %1944 = vmin.xlane.f32.xlu0 %v1943
    %v1945 = vpop.xlane.xlu0 %1944
    %vm1946 = vcmp.eq.f32.partialorder %v1943, %v1945
    %v1947 = vsel %vm1946, %v1942, inf
    %1948 = vmin.xlane.f32.xlu0 %v1947
    %v1949 = vpop.xlane.xlu0 %1948
    %v1950 = vcvt.f32.s32 %v1949
    %v1951 = vcvt.f32.s32 %v1945
    %v1952 = vshll.u32 %v1951, 16
    %v1953 = vadd.s32 %v1952, %v1950
    %v1954 = vsel %vm957, %v1922, 2147483647
    %v1955 = vand.u32 %v1954, 65535
    %v1956 = vshra.s32 %v1954, 16
    %v1957 = vcvt.s32.f32 %v1955
    %v1958 = vcvt.s32.f32 %v1956
    %1959 = vmin.xlane.f32.xlu0 %v1958
    %v1960 = vpop.xlane.xlu0 %1959
    %vm1961 = vcmp.eq.f32.partialorder %v1958, %v1960
    %v1962 = vsel %vm1961, %v1957, inf
    %1963 = vmin.xlane.f32.xlu0 %v1962
    %v1964 = vpop.xlane.xlu0 %1963
    %v1965 = vcvt.f32.s32 %v1964
    %v1966 = vcvt.f32.s32 %v1960
    %v1967 = vshll.u32 %v1966, 16
    %v1968 = vadd.s32 %v1967, %v1965
    %v1969 = vsel %vm957, %v1923, 2147483647
    %v1970 = vand.u32 %v1969, 65535
    %v1971 = vshra.s32 %v1969, 16
    %v1972 = vcvt.s32.f32 %v1970
    %v1973 = vcvt.s32.f32 %v1971
    %1974 = vmin.xlane.f32.xlu0 %v1973
    %v1975 = vpop.xlane.xlu0 %1974
    %vm1976 = vcmp.eq.f32.partialorder %v1973, %v1975
    %v1977 = vsel %vm1976, %v1972, inf
    %1978 = vmin.xlane.f32.xlu0 %v1977
    %v1979 = vpop.xlane.xlu0 %1978
    %v1980 = vcvt.f32.s32 %v1979
    %v1981 = vcvt.f32.s32 %v1975
    %v1982 = vshll.u32 %v1981, 16
    %v1983 = vadd.s32 %v1982, %v1980
    %vm1984 = vcmp.eq.s32.totalorder %v950, %v1938
    %vm1985 = vcmp.eq.s32.totalorder %v950, %v1953
    %vm1986 = vcmp.eq.s32.totalorder %v950, %v1968
    %vm1987 = vcmp.eq.s32.totalorder %v950, %v1983
    %v1988 = vsel %vm1984, 1, 0
    %v1989 = vsel %vm1985, 1, 0
    %v1990 = vsel %vm1986, 1, 0
    %v1991 = vsel %vm1987, 1, 0
    %v1992 = vcvt.s32.f32 %v1988
    %v1993 = vcvt.s32.f32 %v1989
    %v1994 = vcvt.s32.f32 %v1990
    %v1995 = vcvt.s32.f32 %v1991
    %v1997 = vsel %vm957, %v1992, 0
    %v2000 = vsel %vm957, %v1993, 0
    %2002 = vmatprep.subr.mxu0 0.0
    %2003 = vmatpush1.msra.mxu0 %v232
    %2004 = vmatprep.subr.mxu0 0.0
    %2005 = vmatpush1.msra.mxu0 %v237
    %2006 = vmatprep.subr.mxu0 0.0
    %2007 = vmatpush1.msra.mxu0 0.0
    %2008 = vmatprep.subr.mxu0 0.0
    %2009 = vmatpush1.msra.mxu0 0.0
    %2010 = vmatprep.subr.mxu0 0.0
    %2011 = vmatpush1.msra.mxu0 0.0
    %2012 = vmatprep.subr.mxu0 0.0
    %2013 = vmatpush1.msra.mxu0 0.0
    %2014 = vmatprep.subr.mxu0 0.0
    %2015 = vmatpush1.msra.mxu0 0.0
    %2016 = vmatprep.subr.mxu0 0.0
    %2017 = vmatpush1.msra.mxu0 0.0
    %2018 = vmatprep.subr.mxu0 0.0
    %2019 = vmatpush1.msra.mxu0 0.0
    %2020 = vmatprep.subr.mxu0 0.0
    %2021 = vmatpush1.msra.mxu0 0.0
    %2022 = vmatprep.subr.mxu0 0.0
    %2023 = vmatpush1.msra.mxu0 0.0
    %2024 = vmatprep.subr.mxu0 0.0
    %2025 = vmatpush1.msra.mxu0 0.0
    %2026 = vmatprep.subr.mxu0 0.0
    %2027 = vmatpush1.msra.mxu0 0.0
    %2028 = vmatprep.subr.mxu0 0.0
    %2029 = vmatpush1.msra.mxu0 0.0
    %2030 = vmatprep.subr.mxu0 0.0
    %2031 = vmatpush1.msra.mxu0 0.0
    %2032 = vmatprep.subr.mxu0 0.0
    %2033 = vmatpush1.msra.mxu0 0.0
    %2034 = vmatprep.subr.mxu0 0.0
    %2035 = vmatpush1.msra.mxu0 0.0
    %2036 = vmatprep.subr.mxu0 0.0
    %2037 = vmatpush1.msra.mxu0 0.0
    %2038 = vmatprep.subr.mxu0 0.0
    %2039 = vmatpush1.msra.mxu0 0.0
    %2040 = vmatprep.subr.mxu0 0.0
    %2041 = vmatpush1.msra.mxu0 0.0
    %2042 = vmatprep.subr.mxu0 0.0
    %2043 = vmatpush1.msra.mxu0 0.0
    %2044 = vmatprep.subr.mxu0 0.0
    %2045 = vmatpush1.msra.mxu0 0.0
    %2046 = vmatprep.subr.mxu0 0.0
    %2047 = vmatpush1.msra.mxu0 0.0
    %2048 = vmatprep.subr.mxu0 0.0
    %2049 = vmatpush1.msra.mxu0 0.0
    %2050 = vmatprep.subr.mxu0 0.0
    %2051 = vmatpush1.msra.mxu0 0.0
    %2052 = vmatprep.subr.mxu0 0.0
    %2053 = vmatpush1.msra.mxu0 0.0
    %2054 = vmatprep.subr.mxu0 0.0
    %2055 = vmatpush1.msra.mxu0 0.0
    %2056 = vmatprep.subr.mxu0 0.0
    %2057 = vmatpush1.msra.mxu0 0.0
    %2058 = vmatprep.subr.mxu0 0.0
    %2059 = vmatpush1.msra.mxu0 0.0
    %2060 = vmatprep.subr.mxu0 0.0
    %2061 = vmatpush1.msra.mxu0 0.0
    %2062 = vmatprep.subr.mxu0 0.0
    %2063 = vmatpush1.msra.mxu0 0.0
    %2064 = vmatprep.subr.mxu0 0.0
    %2065 = vmatpush1.msra.mxu0 0.0
    %2066 = vmatprep.mubr.f32.mxu0 0.0
    %2067 = vmatmul.mubr.f32.gmra.mrb[0].mxu0 %v1997
    %v2068 = vpop.f32.mrb[0].mxu0
    %v2069 = vadd.f32 0.0, %v2068
    %v2070 = vpop.f32.mrb[0].mxu0
    %2071 = vmatprep.mubr.f32.mxu0 0.0
    %2072 = vmatmul.mubr.f32.gmra.mrb[0].mxu0 %v2000
    %v2073 = vpop.f32.mrb[0].mxu0
    %v2074 = vadd.f32 0.0, %v2073
    %v2075 = vpop.f32.mrb[0].mxu0
    %2076 = vdwg.mxu0
    %v2078 = vsel %vm957, %v1994, 0
    %v2081 = vsel %vm957, %v1995, 0
    %2083 = vmatprep.subr.mxu0 0.0
    %2084 = vmatpush1.msra.mxu0 %v242
    %2085 = vmatprep.subr.mxu0 0.0
    %2086 = vmatpush1.msra.mxu0 %v247
    %2087 = vmatprep.subr.mxu0 0.0
    %2088 = vmatpush1.msra.mxu0 0.0
    %2089 = vmatprep.subr.mxu0 0.0
    %2090 = vmatpush1.msra.mxu0 0.0
    %2091 = vmatprep.subr.mxu0 0.0
    %2092 = vmatpush1.msra.mxu0 0.0
    %2093 = vmatprep.subr.mxu0 0.0
    %2094 = vmatpush1.msra.mxu0 0.0
    %2095 = vmatprep.subr.mxu0 0.0
    %2096 = vmatpush1.msra.mxu0 0.0
    %2097 = vmatprep.subr.mxu0 0.0
    %2098 = vmatpush1.msra.mxu0 0.0
    %2099 = vmatprep.subr.mxu0 0.0
    %2100 = vmatpush1.msra.mxu0 0.0
    %2101 = vmatprep.subr.mxu0 0.0
    %2102 = vmatpush1.msra.mxu0 0.0
    %2103 = vmatprep.subr.mxu0 0.0
    %2104 = vmatpush1.msra.mxu0 0.0
    %2105 = vmatprep.subr.mxu0 0.0
    %2106 = vmatpush1.msra.mxu0 0.0
    %2107 = vmatprep.subr.mxu0 0.0
    %2108 = vmatpush1.msra.mxu0 0.0
    %2109 = vmatprep.subr.mxu0 0.0
    %2110 = vmatpush1.msra.mxu0 0.0
    %2111 = vmatprep.subr.mxu0 0.0
    %2112 = vmatpush1.msra.mxu0 0.0
    %2113 = vmatprep.subr.mxu0 0.0
    %2114 = vmatpush1.msra.mxu0 0.0
    %2115 = vmatprep.subr.mxu0 0.0
    %2116 = vmatpush1.msra.mxu0 0.0
    %2117 = vmatprep.subr.mxu0 0.0
    %2118 = vmatpush1.msra.mxu0 0.0
    %2119 = vmatprep.subr.mxu0 0.0
    %2120 = vmatpush1.msra.mxu0 0.0
    %2121 = vmatprep.subr.mxu0 0.0
    %2122 = vmatpush1.msra.mxu0 0.0
    %2123 = vmatprep.subr.mxu0 0.0
    %2124 = vmatpush1.msra.mxu0 0.0
    %2125 = vmatprep.subr.mxu0 0.0
    %2126 = vmatpush1.msra.mxu0 0.0
    %2127 = vmatprep.subr.mxu0 0.0
    %2128 = vmatpush1.msra.mxu0 0.0
    %2129 = vmatprep.subr.mxu0 0.0
    %2130 = vmatpush1.msra.mxu0 0.0
    %2131 = vmatprep.subr.mxu0 0.0
    %2132 = vmatpush1.msra.mxu0 0.0
    %2133 = vmatprep.subr.mxu0 0.0
    %2134 = vmatpush1.msra.mxu0 0.0
    %2135 = vmatprep.subr.mxu0 0.0
    %2136 = vmatpush1.msra.mxu0 0.0
    %2137 = vmatprep.subr.mxu0 0.0
    %2138 = vmatpush1.msra.mxu0 0.0
    %2139 = vmatprep.subr.mxu0 0.0
    %2140 = vmatpush1.msra.mxu0 0.0
    %2141 = vmatprep.subr.mxu0 0.0
    %2142 = vmatpush1.msra.mxu0 0.0
    %2143 = vmatprep.subr.mxu0 0.0
    %2144 = vmatpush1.msra.mxu0 0.0
    %2145 = vmatprep.subr.mxu0 0.0
    %2146 = vmatpush1.msra.mxu0 0.0
    %2147 = vmatprep.mubr.f32.mxu0 0.0
    %2148 = vmatmul.mubr.f32.gmra.mrb[0].mxu0 %v2078
    %v2149 = vpop.f32.mrb[0].mxu0
    %v2150 = vadd.f32 0.0, %v2149
    %v2151 = vpop.f32.mrb[0].mxu0
    %2152 = vmatprep.mubr.f32.mxu0 0.0
    %2153 = vmatmul.mubr.f32.gmra.mrb[0].mxu0 %v2081
    %v2154 = vpop.f32.mrb[0].mxu0
    %v2155 = vadd.f32 0.0, %v2154
    %v2156 = vpop.f32.mrb[0].mxu0
    %2157 = vdwg.mxu0
    %v2158 = vadd.f32 %v2069, %v266
    %v2159 = vadd.f32 %v2074, %v267
    %v2160 = vadd.f32 %v2150, %v268
    %v2161 = vadd.f32 %v2155, %v269
    %v2162 = vmax.f32 %v2158, 0.0
    %v2163 = vmax.f32 %v2159, 0.0
    %v2164 = vmax.f32 %v2160, 0.0
    %v2165 = vmax.f32 %v2161, 0.0
    %2166 = vmatprep.subr.mxu0 0.0
    %2167 = vmatpush1.msra.mxu0 %v984
    %2168 = vmatprep.subr.mxu0 0.0
    %2169 = vmatpush1.msra.mxu0 %v985
    %2170 = vmatprep.subr.mxu0 0.0
    %2171 = vmatpush1.msra.mxu0 %v986
    %2172 = vmatprep.subr.mxu0 0.0
    %2173 = vmatpush1.msra.mxu0 %v987
    %2174 = vmatprep.subr.mxu0 0.0
    %2175 = vmatpush1.msra.mxu0 %v988
    %2176 = vmatprep.subr.mxu0 0.0
    %2177 = vmatpush1.msra.mxu0 %v989
    %2178 = vmatprep.subr.mxu0 0.0
    %2179 = vmatpush1.msra.mxu0 %v990
    %2180 = vmatprep.subr.mxu0 0.0
    %2181 = vmatpush1.msra.mxu0 %v991
    %2182 = vmatprep.subr.mxu0 0.0
    %2183 = vmatpush1.msra.mxu0 %v992
    %2184 = vmatprep.subr.mxu0 0.0
    %2185 = vmatpush1.msra.mxu0 %v993
    %2186 = vmatprep.subr.mxu0 0.0
    %2187 = vmatpush1.msra.mxu0 %v994
    %2188 = vmatprep.subr.mxu0 0.0
    %2189 = vmatpush1.msra.mxu0 %v995
    %2190 = vmatprep.subr.mxu0 0.0
    %2191 = vmatpush1.msra.mxu0 %v996
    %2192 = vmatprep.subr.mxu0 0.0
    %2193 = vmatpush1.msra.mxu0 %v997
    %2194 = vmatprep.subr.mxu0 0.0
    %2195 = vmatpush1.msra.mxu0 %v998
    %2196 = vmatprep.subr.mxu0 0.0
    %2197 = vmatpush1.msra.mxu0 %v999
    %2198 = vmatprep.subr.mxu0 0.0
    %2199 = vmatpush1.msra.mxu0 0.0
    %2200 = vmatprep.subr.mxu0 0.0
    %2201 = vmatpush1.msra.mxu0 0.0
    %2202 = vmatprep.subr.mxu0 0.0
    %2203 = vmatpush1.msra.mxu0 0.0
    %2204 = vmatprep.subr.mxu0 0.0
    %2205 = vmatpush1.msra.mxu0 0.0
    %2206 = vmatprep.subr.mxu0 0.0
    %2207 = vmatpush1.msra.mxu0 0.0
    %2208 = vmatprep.subr.mxu0 0.0
    %2209 = vmatpush1.msra.mxu0 0.0
    %2210 = vmatprep.subr.mxu0 0.0
    %2211 = vmatpush1.msra.mxu0 0.0
    %2212 = vmatprep.subr.mxu0 0.0
    %2213 = vmatpush1.msra.mxu0 0.0
    %2214 = vmatprep.subr.mxu0 0.0
    %2215 = vmatpush1.msra.mxu0 0.0
    %2216 = vmatprep.subr.mxu0 0.0
    %2217 = vmatpush1.msra.mxu0 0.0
    %2218 = vmatprep.subr.mxu0 0.0
    %2219 = vmatpush1.msra.mxu0 0.0
    %2220 = vmatprep.subr.mxu0 0.0
    %2221 = vmatpush1.msra.mxu0 0.0
    %2222 = vmatprep.subr.mxu0 0.0
    %2223 = vmatpush1.msra.mxu0 0.0
    %2224 = vmatprep.subr.mxu0 0.0
    %2225 = vmatpush1.msra.mxu0 0.0
    %2226 = vmatprep.subr.mxu0 0.0
    %2227 = vmatpush1.msra.mxu0 0.0
    %2228 = vmatprep.subr.mxu0 0.0
    %2229 = vmatpush1.msra.mxu0 0.0
    %2230 = vmatprep.mubr.f32.mxu0 0.0
    %2231 = vmatmul.mubr.f32.gmra.mrb[0].mxu0 %v2162
    %v2232 = vpop.f32.mrb[0].mxu0
    %v2233 = vadd.f32 %v1019, %v2232
    %v2234 = vpop.f32.mrb[0].mxu0
    %2235 = vmatprep.mubr.f32.mxu0 0.0
    %2236 = vmatmul.mubr.f32.gmra.mrb[0].mxu0 %v2163
    %v2237 = vpop.f32.mrb[0].mxu0
    %v2238 = vadd.f32 %v1019, %v2237
    %v2239 = vpop.f32.mrb[0].mxu0
    %2240 = vmatprep.mubr.f32.mxu0 0.0
    %2241 = vmatmul.mubr.f32.gmra.mrb[0].mxu0 %v2164
    %v2242 = vpop.f32.mrb[0].mxu0
    %v2243 = vadd.f32 %v1019, %v2242
    %v2244 = vpop.f32.mrb[0].mxu0
    %2245 = vmatprep.mubr.f32.mxu0 0.0
    %2246 = vmatmul.mubr.f32.gmra.mrb[0].mxu0 %v2165
    %v2247 = vpop.f32.mrb[0].mxu0
    %v2248 = vadd.f32 %v1019, %v2247
    %v2249 = vpop.f32.mrb[0].mxu0
    %2250 = vdwg.mxu0
    %v2251 = vmax.f32 %v2233, 0.0
    %v2252 = vmax.f32 %v2238, 0.0
    %v2253 = vmax.f32 %v2243, 0.0
    %v2254 = vmax.f32 %v2248, 0.0
    %2255 = vmatprep.subr.mxu0 0.0
    %2256 = vmatpush1.msra.mxu0 %v1000
    %2257 = vmatprep.subr.mxu0 0.0
    %2258 = vmatpush1.msra.mxu0 %v1001
    %2259 = vmatprep.subr.mxu0 0.0
    %2260 = vmatpush1.msra.mxu0 %v1002
    %2261 = vmatprep.subr.mxu0 0.0
    %2262 = vmatpush1.msra.mxu0 %v1003
    %2263 = vmatprep.subr.mxu0 0.0
    %2264 = vmatpush1.msra.mxu0 %v1004
    %2265 = vmatprep.subr.mxu0 0.0
    %2266 = vmatpush1.msra.mxu0 %v1005
    %2267 = vmatprep.subr.mxu0 0.0
    %2268 = vmatpush1.msra.mxu0 %v1006
    %2269 = vmatprep.subr.mxu0 0.0
    %2270 = vmatpush1.msra.mxu0 %v1007
    %2271 = vmatprep.subr.mxu0 0.0
    %2272 = vmatpush1.msra.mxu0 %v1008
    %2273 = vmatprep.subr.mxu0 0.0
    %2274 = vmatpush1.msra.mxu0 %v1009
    %2275 = vmatprep.subr.mxu0 0.0
    %2276 = vmatpush1.msra.mxu0 %v1010
    %2277 = vmatprep.subr.mxu0 0.0
    %2278 = vmatpush1.msra.mxu0 %v1011
    %2279 = vmatprep.subr.mxu0 0.0
    %2280 = vmatpush1.msra.mxu0 %v1012
    %2281 = vmatprep.subr.mxu0 0.0
    %2282 = vmatpush1.msra.mxu0 %v1013
    %2283 = vmatprep.subr.mxu0 0.0
    %2284 = vmatpush1.msra.mxu0 %v1014
    %2285 = vmatprep.subr.mxu0 0.0
    %2286 = vmatpush1.msra.mxu0 %v1015
    %2287 = vmatprep.subr.mxu0 0.0
    %2288 = vmatpush1.msra.mxu0 0.0
    %2289 = vmatprep.subr.mxu0 0.0
    %2290 = vmatpush1.msra.mxu0 0.0
    %2291 = vmatprep.subr.mxu0 0.0
    %2292 = vmatpush1.msra.mxu0 0.0
    %2293 = vmatprep.subr.mxu0 0.0
    %2294 = vmatpush1.msra.mxu0 0.0
    %2295 = vmatprep.subr.mxu0 0.0
    %2296 = vmatpush1.msra.mxu0 0.0
    %2297 = vmatprep.subr.mxu0 0.0
    %2298 = vmatpush1.msra.mxu0 0.0
    %2299 = vmatprep.subr.mxu0 0.0
    %2300 = vmatpush1.msra.mxu0 0.0
    %2301 = vmatprep.subr.mxu0 0.0
    %2302 = vmatpush1.msra.mxu0 0.0
    %2303 = vmatprep.subr.mxu0 0.0
    %2304 = vmatpush1.msra.mxu0 0.0
    %2305 = vmatprep.subr.mxu0 0.0
    %2306 = vmatpush1.msra.mxu0 0.0
    %2307 = vmatprep.subr.mxu0 0.0
    %2308 = vmatpush1.msra.mxu0 0.0
    %2309 = vmatprep.subr.mxu0 0.0
    %2310 = vmatpush1.msra.mxu0 0.0
    %2311 = vmatprep.subr.mxu0 0.0
    %2312 = vmatpush1.msra.mxu0 0.0
    %2313 = vmatprep.subr.mxu0 0.0
    %2314 = vmatpush1.msra.mxu0 0.0
    %2315 = vmatprep.subr.mxu0 0.0
    %2316 = vmatpush1.msra.mxu0 0.0
    %2317 = vmatprep.subr.mxu0 0.0
    %2318 = vmatpush1.msra.mxu0 0.0
    %2319 = vmatprep.mubr.f32.mxu0 0.0
    %2320 = vmatmul.mubr.f32.gmra.mrb[0].mxu0 %v2251
    %v2321 = vpop.f32.mrb[0].mxu0
    %v2322 = vadd.f32 0.0, %v2321
    %v2323 = vpop.f32.mrb[0].mxu0
    %2324 = vmatprep.mubr.f32.mxu0 0.0
    %2325 = vmatmul.mubr.f32.gmra.mrb[0].mxu0 %v2252
    %v2326 = vpop.f32.mrb[0].mxu0
    %v2327 = vadd.f32 0.0, %v2326
    %v2328 = vpop.f32.mrb[0].mxu0
    %2329 = vmatprep.mubr.f32.mxu0 0.0
    %2330 = vmatmul.mubr.f32.gmra.mrb[0].mxu0 %v2253
    %v2331 = vpop.f32.mrb[0].mxu0
    %v2332 = vadd.f32 0.0, %v2331
    %v2333 = vpop.f32.mrb[0].mxu0
    %2334 = vmatprep.mubr.f32.mxu0 0.0
    %2335 = vmatmul.mubr.f32.gmra.mrb[0].mxu0 %v2254
    %v2336 = vpop.f32.mrb[0].mxu0
    %v2337 = vadd.f32 0.0, %v2336
    %v2338 = vpop.f32.mrb[0].mxu0
    %2339 = vdwg.mxu0
    %v2340 = vmax.f32 %v1900, %v2322
    %v2341 = vmax.f32 %v1901, %v2327
    %v2342 = vmax.f32 %v1902, %v2332
    %v2343 = vmax.f32 %v1903, %v2337
    %v2344 = vlaneseq
    %v2345 = vshrl.u32 %v2344, 7
    %v2346 = vsub.s32 0, %v2345
    %v2347 = vrot.slane %v50, %v2346
    %v2348 = vadd.f32 %v2340, %v2347
    %v2349 = vadd.f32 %v2341, %v2347
    %v2350 = vadd.f32 %v2342, %v2347
    %v2351 = vadd.f32 %v2343, %v2347
    %v2352 = vadd.f32 %v781, %v41
    %v2353 = vadd.f32 %v786, %v42
    %v2354 = vadd.f32 %v791, %v43
    %v2355 = vadd.f32 %v796, %v44
    %v2356 = vadd.f32 %v2352, %v2348
    %v2357 = vadd.f32 %v2353, %v2349
    %v2358 = vadd.f32 %v2354, %v2350
    %v2359 = vadd.f32 %v2355, %v2351
    %v2360 = vmax.f32 %v2356, 0.0
    %v2361 = vmax.f32 %v2357, 0.0
    %v2362 = vmax.f32 %v2358, 0.0
    %v2363 = vmax.f32 %v2359, 0.0
    %2364 = vst.msk [vmem:[#allocation5] sm:$0xff] %vm63, %v2360
    %2365 = vst.msk [vmem:[#allocation5 + $0x8] sm:$0xff] %vm63, %v2361
    %2366 = vst.msk [vmem:[#allocation5 + $0x10] sm:$0xff] %vm63, %v2362
    %2367 = vst.msk [vmem:[#allocation5 + $0x18] sm:$0xff] %vm63, %v2363
    // Predicated region
    $region34: #{tpu_custom_call.1} parent=1 // pred_check
      _
    $region35: #{tpu_custom_call.1} parent=1 // pred_check_branch
      %2369 = sbr.rel (0) target = $region37
    $region36: #{tpu_custom_call.1} parent=1 // pred_region
      %s2371 = ssub.s32 512, 512
      %2372 = vsyncadd [#allocation4], %s2371
      %s2373 = sshll.u32 [#allocation5], 4
      %s2374 = int_to_ptr.vmem [resolvable:$true] %s2373
      %2379 = dma.vmem_to_hbm [thread:$0]  %s2374, 512, %s7, [#allocation4], 128, 128, 8
    $region37: #{tpu_custom_call.1} parent=1 // pred_fallthru
      _
    // Predicated region
    $region38: #{tpu_custom_call.1} parent=1 // pred_check
      _
    $region39: #{tpu_custom_call.1} parent=1 // pred_check_branch
      %2381 = sbr.rel (0) target = $region41
    $region40: #{tpu_custom_call.1} parent=1 // pred_region
      %2382 = dma.done [#allocation4], 512
    $region41: #{tpu_custom_call.1} parent=1 // pred_fallthru
      _
    %2383 = vsyncpa [#allocation3], 1
    %2384 = vsyncpa [#allocation4], 1

</llo_original>
